<compile_context>
chip_gen: v5e
topology: v5e:2x2
jax: 0.10.0
libtpu: 0.0.40
codegen_flags: <defaults>
</compile_context>

<pallas_src>
import functools

import jax
import jax.numpy as jnp
from jax.experimental import pallas as pl
from jax.experimental.pallas import tpu as pltpu


# dilate=True path of the PyTorch module: per block [1, 2, 4, 8, 4, 2, 1].
BLOCK_DILS = (1, 2, 4, 8, 4, 2, 1)


# -----------------------------------------------------------------------------
# Fused kernel (channel-major: activations are (C, H*W), spatial on lanes)
# -----------------------------------------------------------------------------

def _fused_resnet_kernel(uv_ref, enc_w_ref, enc_b_ref, blk_w_ref, blk_b_ref,
                         dec_w_ref, dec_b_ref, o_ref, *, n_blocks, W):
    HW = uv_ref.shape[-1]
    uv = uv_ref[0]                                       # (2, H*W) f32

    def roll_lanes(x, shift):
        # roll along the flattened row-major spatial axis; jnp.roll semantics.
        s = shift % HW
        return x if s == 0 else pltpu.roll(x, s, axis=1)

    # Per-dilation circular wrap masks over the lane (spatial) axis.  Built once
    # (JAX does not CSE broadcast/iota) and reused by every conv.
    col = jax.lax.broadcasted_iota(jnp.int32, (1, HW), 1) % W
    masks = {d: (col >= d, col < (W - d)) for d in sorted({1, *BLOCK_DILS})}

    def wshift(x, dw, d):
        # circular shift along W in (C, H*W) layout: y[:, h*W+w] = x[:, h*W + (w+dw*d)%W]
        if dw == 0:
            return x
        ge, lt = masks[d]
        if dw > 0:
            return jnp.where(lt, roll_lanes(x, -d), roll_lanes(x, W - d))
        return jnp.where(ge, roll_lanes(x, d), roll_lanes(x, d - W))

    def conv3x3_circ(x, w_t, bias, d, relu):
        # 3x3 dilated conv with circular padding as ONE MXU matmul:
        #   y = w_t (Cout, 9*Cin) @ xcol (9*Cin, H*W)
        # Tap order (row blocks of xcol == columns of w_t): dh-major, dw-minor.
        xw = [wshift(x, dw, d) for dw in (-1, 0, 1)]      # 3 W-shift variants
        taps = []
        for dh in (-1, 0, 1):
            for dw_i in range(3):
                taps.append(
                    roll_lanes(xw[dw_i], -dh * d * W).astype(jnp.bfloat16))
        xcol = jnp.concatenate(taps, axis=0)              # (9*Cin, HW) bf16
        y = jnp.dot(w_t, xcol, preferred_element_type=jnp.float32) + bias
        return jnp.maximum(y, 0.0) if relu else y

    # ---- encoder (no ReLU) ----
    x = conv3x3_circ(uv, enc_w_ref[...], enc_b_ref[...], 1, False)   # (C, HW)

    # ---- residual dilated blocks: x <- block(x) + x  (skip == x at entry) ----
    def block_body(bi, xc):
        base = bi * len(BLOCK_DILS)
        h = xc
        for j, d in enumerate(BLOCK_DILS):                # static dilations
            h = conv3x3_circ(h, blk_w_ref[base + j], blk_b_ref[base + j],
                             d, True)
        return xc + h

    x = jax.lax.fori_loop(0, n_blocks, block_body, x)

    # ---- decoder -> (4, HW): rows = (hfu, vfu, hfv, vfv) ----
    # TODO(synk): row order follows the PyTorch slicing x1[:,0..3]; real escnn
    # 2*irrep(1) decoder weights must be flattened to match this convention.
    f = conv3x3_circ(x, dec_w_ref[...], dec_b_ref[...], 1, False)

    # ---- fused flux differencing (lane-dense row arithmetic) ----
    t = f - wshift(f, 1, 1)            # hf* - hf*[:, (w+1)%W]
    s = f - roll_lanes(f, -W)          # vf* - vf*[(h+1)%H, :]
    out_u = uv[0:1, :] + t[0:1, :] + s[1:2, :]
    out_v = uv[1:2, :] + t[2:3, :] + s[3:4, :]
    o_ref[...] = jnp.concatenate([out_u, out_v], axis=0)[None]


# -----------------------------------------------------------------------------
# Parameters + forward wrapper
# -----------------------------------------------------------------------------

def init_params(key, *, blocks=2, features=4):
    """Synthetic parameters with the module's effective shapes.

    TODO(synk): escnn R2Conv weights are equivariance-constrained basis
    expansions; here we use unconstrained dense (Cout, 9*Cin) kernels of the
    same effective shape (not a checkpoint load).
    """
    c = features * 4                       # regular repr of C4 has dimension 4
    n_layers = blocks * len(BLOCK_DILS)
    ks = jax.random.split(key, 6)

    def w(k, cin, cout, n=None):
        shape = (cout, 9 * cin) if n is None else (n, cout, 9 * cin)
        return jax.random.normal(k, shape, jnp.float32) * jnp.sqrt(2.0 / (9.0 * cin))

    def b(k, cout, n=None):
        shape = (cout, 1) if n is None else (n, cout, 1)
        return 0.1 * jax.random.normal(k, shape, jnp.float32)

    return {
        "enc_w": w(ks[0], 2, c), "enc_b": b(ks[1], c),
        "blk_w": w(ks[2], c, c, n_layers), "blk_b": b(ks[3], c, n_layers),
        "dec_w": w(ks[4], c, 4), "dec_b": b(ks[5], 4),
    }


def dilated_resnet_forward(params, u, v):
    B, H, W = u.shape
    HW = H * W
    n_layers = params["blk_w"].shape[0]
    n_blocks = n_layers // len(BLOCK_DILS)
    c = params["enc_w"].shape[0]

    # Lane-dense kernel I/O: (B, 2, H*W); spatial reshape stays in the wrapper.
    uv = jnp.stack([u.reshape(B, HW), v.reshape(B, HW)], axis=1)

    # Matmul operands in bf16 (f32 accumulation inside the kernel).
    enc_w = params["enc_w"].astype(jnp.bfloat16)
    blk_w = params["blk_w"].astype(jnp.bfloat16)
    dec_w = params["dec_w"].astype(jnp.bfloat16)
    enc_b, blk_b, dec_b = params["enc_b"], params["blk_b"], params["dec_b"]

    flops = 2 * B * HW * (9 * 2 * c + n_layers * 9 * c * c + 9 * c * 4)
    bytes_accessed = (2 * uv.size * 4
                      + 2 * (enc_w.size + blk_w.size + dec_w.size)
                      + 4 * (enc_b.size + blk_b.size + dec_b.size))

    out = pl.pallas_call(
        functools.partial(_fused_resnet_kernel, n_blocks=n_blocks, W=W),
        out_shape=jax.ShapeDtypeStruct((B, 2, HW), jnp.float32),
        grid=(B,),
        in_specs=[
            pl.BlockSpec((1, 2, HW), lambda b: (b, 0, 0)),        # uv
            pl.BlockSpec(enc_w.shape, lambda b: (0, 0)),          # weights stay
            pl.BlockSpec(enc_b.shape, lambda b: (0, 0)),          # VMEM-resident
            pl.BlockSpec(blk_w.shape, lambda b: (0, 0, 0)),
            pl.BlockSpec(blk_b.shape, lambda b: (0, 0, 0)),
            pl.BlockSpec(dec_w.shape, lambda b: (0, 0)),
            pl.BlockSpec(dec_b.shape, lambda b: (0, 0)),
        ],
        out_specs=pl.BlockSpec((1, 2, HW), lambda b: (b, 0, 0)),
        compiler_params=pltpu.CompilerParams(
            dimension_semantics=("parallel",),       # B>=2 -> both v7x TCs busy
            vmem_limit_bytes=32 * 1024 * 1024),      # explicit budget; retile
                                                     # spatially when scaling H/W
        cost_estimate=pl.CostEstimate(
            flops=flops, transcendentals=0, bytes_accessed=bytes_accessed),
    )(uv, enc_w, enc_b, blk_w, blk_b, dec_w, dec_b)

    return out[:, 0, :].reshape(B, H, W), out[:, 1, :].reshape(B, H, W)


# -----------------------------------------------------------------------------
# Pure-JAX reference (same bf16 matmul rounding) for in-script validation
# -----------------------------------------------------------------------------

def reference_forward(params, u, v):
    B, H, W = u.shape
    x = jnp.stack([u, v], axis=-1)                    # (B, H, W, 2)

    def conv(xin, w_t, bias, d, relu):
        cin = xin.shape[-1]
        cout = w_t.shape[0]
        taps = [jnp.roll(xin, shift=(-dh * d, -dw * d), axis=(1, 2))
                for dh in (-1, 0, 1) for dw in (-1, 0, 1)]
        xcol = jnp.concatenate(taps, axis=-1).reshape(B * H * W, 9 * cin)
        y = jnp.dot(xcol.astype(jnp.bfloat16), w_t.astype(jnp.bfloat16).T,
                    preferred_element_type=jnp.float32)
        y = y.reshape(B, H, W, cout) + bias[:, 0][None, None, None, :]
        return jnp.maximum(y, 0.0) if relu else y

    xh = conv(x, params["enc_w"], params["enc_b"], 1, False)
    n_blocks = params["blk_w"].shape[0] // len(BLOCK_DILS)
    for bi in range(n_blocks):
        h = xh
        for j, d in enumerate(BLOCK_DILS):
            li = bi * len(BLOCK_DILS) + j
            h = conv(h, params["blk_w"][li], params["blk_b"][li], d, True)
        xh = xh + h
    f = conv(xh, params["dec_w"], params["dec_b"], 1, False)
    hfu, vfu, hfv, vfv = f[..., 0], f[..., 1], f[..., 2], f[..., 3]
    out_u = u + hfu - jnp.roll(hfu, -1, axis=2) + vfu - jnp.roll(vfu, -1, axis=1)
    out_v = v + hfv - jnp.roll(hfv, -1, axis=2) + vfv - jnp.roll(vfv, -1, axis=1)
    return out_u, out_v


# -----------------------------------------------------------------------------
# Main
# -----------------------------------------------------------------------------

if __name__ == "__main__":
    B, H, W = 2, 16, 16
    BLOCKS, FEATURES = 2, 4          # hidden channels = FEATURES * 4 = 16

    key = jax.random.PRNGKey(0)
    k_params, k_u, k_v = jax.random.split(key, 3)
    params = init_params(k_params, blocks=BLOCKS, features=FEATURES)
    u = jax.random.normal(k_u, (B, H, W), jnp.float32)
    v = jax.random.normal(k_v, (B, H, W), jnp.float32)

    fwd = jax.jit(dilated_resnet_forward)
    out_u, out_v = fwd(params, u, v)
    jax.block_until_ready((out_u, out_v))

    assert out_u.shape == (B, H, W) and out_v.shape == (B, H, W)
    assert bool(jnp.all(jnp.isfinite(out_u))) and bool(jnp.all(jnp.isfinite(out_v)))

    ref_u, ref_v = jax.jit(reference_forward)(params, u, v)
    jax.block_until_ready((ref_u, ref_v))
    err = float(jnp.max(jnp.maximum(jnp.abs(out_u - ref_u), jnp.abs(out_v - ref_v))))
    scale = float(jnp.max(jnp.maximum(jnp.abs(ref_u), jnp.abs(ref_v)))) + 1.0
    assert err <= 2e-2 * scale, f"kernel/reference mismatch: err={err:.3e} scale={scale:.3e}"

    print("KERNEL_OK")
</pallas_src>

<mosaic_0001>
module attributes {stable_mosaic.version = 11 : i64} {
  func.func @_fused_resnet_kernel(%arg0: i32, %arg1: memref<1x2x256xf32, #tpu.memory_space<vmem>>, %arg2: memref<16x18xbf16, #tpu.memory_space<vmem>>, %arg3: memref<16x1xf32, #tpu.memory_space<vmem>>, %arg4: memref<14x16x144xbf16, #tpu.memory_space<vmem>>, %arg5: memref<14x16x1xf32, #tpu.memory_space<vmem>>, %arg6: memref<4x144xbf16, #tpu.memory_space<vmem>>, %arg7: memref<4x1xf32, #tpu.memory_space<vmem>>, %arg8: memref<1x2x256xf32, #tpu.memory_space<vmem>>) attributes {dimension_semantics = [#tpu.dimension_semantics<parallel>], iteration_bounds = array<i64: 2>, scalar_prefetch = 0 : i64, scratch_operands = 0 : i64, tpu.core_type = #tpu.core_type<tc>, window_params = [{transform_indices = @transform_0, window_bounds = array<i64: 1, 2, 256>}, {pipeline_mode = #tpu.pipeline_mode<synchronous>, transform_indices = @transform_1, window_bounds = array<i64: 16, 18>}, {pipeline_mode = #tpu.pipeline_mode<synchronous>, transform_indices = @transform_2, window_bounds = array<i64: 16, 1>}, {pipeline_mode = #tpu.pipeline_mode<synchronous>, transform_indices = @transform_3, window_bounds = array<i64: 14, 16, 144>}, {pipeline_mode = #tpu.pipeline_mode<synchronous>, transform_indices = @transform_4, window_bounds = array<i64: 14, 16, 1>}, {pipeline_mode = #tpu.pipeline_mode<synchronous>, transform_indices = @transform_5, window_bounds = array<i64: 4, 144>}, {pipeline_mode = #tpu.pipeline_mode<synchronous>, transform_indices = @transform_6, window_bounds = array<i64: 4, 1>}, {transform_indices = @transform_7, window_bounds = array<i64: 1, 2, 256>}]} {
    %c0 = arith.constant 0 : index
    %c0_0 = arith.constant 0 : index
    %c0_1 = arith.constant 0 : index
    %0 = vector.load %arg1[%c0, %c0_0, %c0_1] : memref<1x2x256xf32, #tpu.memory_space<vmem>>, vector<1x2x256xf32>
    %1 = vector.shape_cast %0 : vector<1x2x256xf32> to vector<2x256xf32>
    %2 = tpu.iota {dimensions = array<i32: 1>} : vector<1x256xi32>
    %c16_i32 = arith.constant 16 : i32
    %c0_i32 = arith.constant 0 : i32
    %3 = arith.cmpi eq, %c16_i32, %c0_i32 : i32
    %c1_i32 = arith.constant 1 : i32
    %4 = arith.select %3, %c1_i32, %c16_i32 : i32
    %5 = vector.broadcast %4 : i32 to vector<1x256xi32>
    %6 = arith.remsi %2, %5 : vector<1x256xi32>
    %c0_i32_2 = arith.constant 0 : i32
    %7 = vector.broadcast %c0_i32_2 : i32 to vector<1x256xi32>
    %8 = arith.cmpi ne, %6, %7 : vector<1x256xi32>
    %c0_i32_3 = arith.constant 0 : i32
    %9 = vector.broadcast %c0_i32_3 : i32 to vector<1x256xi32>
    %10 = arith.cmpi slt, %6, %9 : vector<1x256xi32>
    %c0_i32_4 = arith.constant 0 : i32
    %11 = arith.cmpi slt, %4, %c0_i32_4 : i32
    %12 = vector.broadcast %11 : i1 to vector<1x256xi1>
    %13 = vector.broadcast %12 : vector<1x256xi1> to vector<1x256xi1>
    %14 = arith.xori %10, %13 : vector<1x256xi1>
    %15 = arith.andi %14, %8 : vector<1x256xi1>
    %16 = vector.broadcast %4 : i32 to vector<1x256xi32>
    %17 = arith.addi %6, %16 : vector<1x256xi32>
    %18 = arith.select %15, %17, %6 : vector<1x256xi1>, vector<1x256xi32>
    %c1_i32_5 = arith.constant 1 : i32
    %19 = vector.broadcast %c1_i32_5 : i32 to vector<1x256xi32>
    %20 = arith.cmpi sge, %18, %19 : vector<1x256xi32>
    %c15_i32 = arith.constant 15 : i32
    %21 = vector.broadcast %c15_i32 : i32 to vector<1x256xi32>
    %22 = arith.cmpi slt, %18, %21 : vector<1x256xi32>
    %c2_i32 = arith.constant 2 : i32
    %23 = vector.broadcast %c2_i32 : i32 to vector<1x256xi32>
    %24 = arith.cmpi sge, %18, %23 : vector<1x256xi32>
    %c14_i32 = arith.constant 14 : i32
    %25 = vector.broadcast %c14_i32 : i32 to vector<1x256xi32>
    %26 = arith.cmpi slt, %18, %25 : vector<1x256xi32>
    %c4_i32 = arith.constant 4 : i32
    %27 = vector.broadcast %c4_i32 : i32 to vector<1x256xi32>
    %28 = arith.cmpi sge, %18, %27 : vector<1x256xi32>
    %c12_i32 = arith.constant 12 : i32
    %29 = vector.broadcast %c12_i32 : i32 to vector<1x256xi32>
    %30 = arith.cmpi slt, %18, %29 : vector<1x256xi32>
    %c8_i32 = arith.constant 8 : i32
    %31 = vector.broadcast %c8_i32 : i32 to vector<1x256xi32>
    %32 = arith.cmpi sge, %18, %31 : vector<1x256xi32>
    %c8_i32_6 = arith.constant 8 : i32
    %33 = vector.broadcast %c8_i32_6 : i32 to vector<1x256xi32>
    %34 = arith.cmpi slt, %18, %33 : vector<1x256xi32>
    %c0_7 = arith.constant 0 : index
    %c0_8 = arith.constant 0 : index
    %35 = vector.load %arg2[%c0_7, %c0_8] : memref<16x18xbf16, #tpu.memory_space<vmem>>, vector<16x18xbf16>
    %c0_9 = arith.constant 0 : index
    %c0_10 = arith.constant 0 : index
    %36 = vector.load %arg3[%c0_9, %c0_10] : memref<16x1xf32, #tpu.memory_space<vmem>>, vector<16x1xf32>
    %c1_i32_11 = arith.constant 1 : i32
    %37 = tpu.dynamic_rotate %1 by %c1_i32_11 dim 1 : vector<2x256xf32>, i32 -> vector<2x256xf32>
    %c241_i32 = arith.constant 241 : i32
    %38 = tpu.dynamic_rotate %1 by %c241_i32 dim 1 : vector<2x256xf32>, i32 -> vector<2x256xf32>
    %39 = vector.shape_cast %20 : vector<1x256xi1> to vector<1x256xi1>
    %40 = vector.broadcast %39 : vector<1x256xi1> to vector<2x256xi1>
    %41 = arith.select %40, %37, %38 : vector<2x256xi1>, vector<2x256xf32>
    %c255_i32 = arith.constant 255 : i32
    %42 = tpu.dynamic_rotate %1 by %c255_i32 dim 1 : vector<2x256xf32>, i32 -> vector<2x256xf32>
    %c15_i32_12 = arith.constant 15 : i32
    %43 = tpu.dynamic_rotate %1 by %c15_i32_12 dim 1 : vector<2x256xf32>, i32 -> vector<2x256xf32>
    %44 = vector.shape_cast %22 : vector<1x256xi1> to vector<1x256xi1>
    %45 = vector.broadcast %44 : vector<1x256xi1> to vector<2x256xi1>
    %46 = arith.select %45, %42, %43 : vector<2x256xi1>, vector<2x256xf32>
    %c16_i32_13 = arith.constant 16 : i32
    %47 = tpu.dynamic_rotate %41 by %c16_i32_13 dim 1 : vector<2x256xf32>, i32 -> vector<2x256xf32>
    %48 = arith.truncf %47 : vector<2x256xf32> to vector<2x256xbf16>
    %c16_i32_14 = arith.constant 16 : i32
    %49 = tpu.dynamic_rotate %1 by %c16_i32_14 dim 1 : vector<2x256xf32>, i32 -> vector<2x256xf32>
    %50 = arith.truncf %49 : vector<2x256xf32> to vector<2x256xbf16>
    %c16_i32_15 = arith.constant 16 : i32
    %51 = tpu.dynamic_rotate %46 by %c16_i32_15 dim 1 : vector<2x256xf32>, i32 -> vector<2x256xf32>
    %52 = arith.truncf %51 : vector<2x256xf32> to vector<2x256xbf16>
    %53 = arith.truncf %41 : vector<2x256xf32> to vector<2x256xbf16>
    %54 = arith.truncf %1 : vector<2x256xf32> to vector<2x256xbf16>
    %55 = arith.truncf %46 : vector<2x256xf32> to vector<2x256xbf16>
    %c240_i32 = arith.constant 240 : i32
    %56 = tpu.dynamic_rotate %41 by %c240_i32 dim 1 : vector<2x256xf32>, i32 -> vector<2x256xf32>
    %57 = arith.truncf %56 : vector<2x256xf32> to vector<2x256xbf16>
    %c240_i32_16 = arith.constant 240 : i32
    %58 = tpu.dynamic_rotate %1 by %c240_i32_16 dim 1 : vector<2x256xf32>, i32 -> vector<2x256xf32>
    %59 = arith.truncf %58 : vector<2x256xf32> to vector<2x256xbf16>
    %c240_i32_17 = arith.constant 240 : i32
    %60 = tpu.dynamic_rotate %46 by %c240_i32_17 dim 1 : vector<2x256xf32>, i32 -> vector<2x256xf32>
    %61 = arith.truncf %60 : vector<2x256xf32> to vector<2x256xbf16>
    %62 = tpu.concatenate %48, %50, %52, %53, %54, %55, %57, %59, %61 in 0 : vector<2x256xbf16>, vector<2x256xbf16>, vector<2x256xbf16>, vector<2x256xbf16>, vector<2x256xbf16>, vector<2x256xbf16>, vector<2x256xbf16>, vector<2x256xbf16>, vector<2x256xbf16> -> vector<18x256xbf16>
    %cst = arith.constant dense<0.000000e+00> : vector<16x256xf32>
    %63 = tpu.matmul %35, %62, %cst {dimension_numbers = #tpu.dot_dimension_numbers<[1], [0], [0], [1], [0, 0, 1, 1], [], []>} : vector<16x18xbf16>, vector<18x256xbf16>, vector<16x256xf32> -> vector<16x256xf32>
    %64 = vector.broadcast %36 : vector<16x1xf32> to vector<16x256xf32>
    %65 = arith.addf %63, %64 : vector<16x256xf32>
    %c0_i32_18 = arith.constant 0 : i32
    %c2_i32_19 = arith.constant 2 : i32
    %66 = arith.addi %c0_i32_18, %c2_i32_19 : i32
    %c1_i32_20 = arith.constant 1 : i32
    %67 = scf.for %arg9 = %c0_i32_18 to %66 step %c1_i32_20 iter_args(%arg10 = %65) -> (vector<16x256xf32>)  : i32 {
      %c7_i32 = arith.constant 7 : i32
      %120 = arith.muli %arg9, %c7_i32 : i32
      %c0_i32_43 = arith.constant 0 : i32
      %121 = arith.addi %120, %c0_i32_43 : i32
      %122 = arith.index_cast %121 : i32 to index
      %c0_44 = arith.constant 0 : index
      %c0_45 = arith.constant 0 : index
      %123 = vector.load %arg4[%122, %c0_44, %c0_45] : memref<14x16x144xbf16, #tpu.memory_space<vmem>>, vector<1x16x144xbf16>
      %124 = vector.shape_cast %123 : vector<1x16x144xbf16> to vector<16x144xbf16>
      %c0_i32_46 = arith.constant 0 : i32
      %125 = arith.addi %120, %c0_i32_46 : i32
      %126 = arith.index_cast %125 : i32 to index
      %c0_47 = arith.constant 0 : index
      %c0_48 = arith.constant 0 : index
      %127 = vector.load %arg5[%126, %c0_47, %c0_48] : memref<14x16x1xf32, #tpu.memory_space<vmem>>, vector<1x16x1xf32>
      %128 = vector.shape_cast %127 : vector<1x16x1xf32> to vector<16x1xf32>
      %c1_i32_49 = arith.constant 1 : i32
      %129 = tpu.dynamic_rotate %arg10 by %c1_i32_49 dim 1 : vector<16x256xf32>, i32 -> vector<16x256xf32>
      %c241_i32_50 = arith.constant 241 : i32
      %130 = tpu.dynamic_rotate %arg10 by %c241_i32_50 dim 1 : vector<16x256xf32>, i32 -> vector<16x256xf32>
      %131 = vector.shape_cast %20 : vector<1x256xi1> to vector<1x256xi1>
      %132 = vector.broadcast %131 : vector<1x256xi1> to vector<16x256xi1>
      %133 = arith.select %132, %129, %130 : vector<16x256xi1>, vector<16x256xf32>
      %c255_i32_51 = arith.constant 255 : i32
      %134 = tpu.dynamic_rotate %arg10 by %c255_i32_51 dim 1 : vector<16x256xf32>, i32 -> vector<16x256xf32>
      %c15_i32_52 = arith.constant 15 : i32
      %135 = tpu.dynamic_rotate %arg10 by %c15_i32_52 dim 1 : vector<16x256xf32>, i32 -> vector<16x256xf32>
      %136 = vector.shape_cast %22 : vector<1x256xi1> to vector<1x256xi1>
      %137 = vector.broadcast %136 : vector<1x256xi1> to vector<16x256xi1>
      %138 = arith.select %137, %134, %135 : vector<16x256xi1>, vector<16x256xf32>
      %c16_i32_53 = arith.constant 16 : i32
      %139 = tpu.dynamic_rotate %133 by %c16_i32_53 dim 1 : vector<16x256xf32>, i32 -> vector<16x256xf32>
      %140 = arith.truncf %139 : vector<16x256xf32> to vector<16x256xbf16>
      %c16_i32_54 = arith.constant 16 : i32
      %141 = tpu.dynamic_rotate %arg10 by %c16_i32_54 dim 1 : vector<16x256xf32>, i32 -> vector<16x256xf32>
      %142 = arith.truncf %141 : vector<16x256xf32> to vector<16x256xbf16>
      %c16_i32_55 = arith.constant 16 : i32
      %143 = tpu.dynamic_rotate %138 by %c16_i32_55 dim 1 : vector<16x256xf32>, i32 -> vector<16x256xf32>
      %144 = arith.truncf %143 : vector<16x256xf32> to vector<16x256xbf16>
      %145 = arith.truncf %133 : vector<16x256xf32> to vector<16x256xbf16>
      %146 = arith.truncf %arg10 : vector<16x256xf32> to vector<16x256xbf16>
      %147 = arith.truncf %138 : vector<16x256xf32> to vector<16x256xbf16>
      %c240_i32_56 = arith.constant 240 : i32
      %148 = tpu.dynamic_rotate %133 by %c240_i32_56 dim 1 : vector<16x256xf32>, i32 -> vector<16x256xf32>
      %149 = arith.truncf %148 : vector<16x256xf32> to vector<16x256xbf16>
      %c240_i32_57 = arith.constant 240 : i32
      %150 = tpu.dynamic_rotate %arg10 by %c240_i32_57 dim 1 : vector<16x256xf32>, i32 -> vector<16x256xf32>
      %151 = arith.truncf %150 : vector<16x256xf32> to vector<16x256xbf16>
      %c240_i32_58 = arith.constant 240 : i32
      %152 = tpu.dynamic_rotate %138 by %c240_i32_58 dim 1 : vector<16x256xf32>, i32 -> vector<16x256xf32>
      %153 = arith.truncf %152 : vector<16x256xf32> to vector<16x256xbf16>
      %154 = tpu.concatenate %140, %142, %144, %145, %146, %147, %149, %151, %153 in 0 : vector<16x256xbf16>, vector<16x256xbf16>, vector<16x256xbf16>, vector<16x256xbf16>, vector<16x256xbf16>, vector<16x256xbf16>, vector<16x256xbf16>, vector<16x256xbf16>, vector<16x256xbf16> -> vector<144x256xbf16>
      %cst_59 = arith.constant dense<0.000000e+00> : vector<16x256xf32>
      %155 = tpu.matmul %124, %154, %cst_59 {dimension_numbers = #tpu.dot_dimension_numbers<[1], [0], [0], [1], [0, 0, 1, 1], [], []>} : vector<16x144xbf16>, vector<144x256xbf16>, vector<16x256xf32> -> vector<16x256xf32>
      %156 = vector.broadcast %128 : vector<16x1xf32> to vector<16x256xf32>
      %157 = arith.addf %155, %156 : vector<16x256xf32>
      %cst_60 = arith.constant 0.000000e+00 : f32
      %158 = vector.broadcast %cst_60 : f32 to vector<16x256xf32>
      %159 = arith.maximumf %157, %158 : vector<16x256xf32>
      %c1_i32_61 = arith.constant 1 : i32
      %160 = arith.addi %120, %c1_i32_61 : i32
      %161 = arith.index_cast %160 : i32 to index
      %c0_62 = arith.constant 0 : index
      %c0_63 = arith.constant 0 : index
      %162 = vector.load %arg4[%161, %c0_62, %c0_63] : memref<14x16x144xbf16, #tpu.memory_space<vmem>>, vector<1x16x144xbf16>
      %163 = vector.shape_cast %162 : vector<1x16x144xbf16> to vector<16x144xbf16>
      %c1_i32_64 = arith.constant 1 : i32
      %164 = arith.addi %120, %c1_i32_64 : i32
      %165 = arith.index_cast %164 : i32 to index
      %c0_65 = arith.constant 0 : index
      %c0_66 = arith.constant 0 : index
      %166 = vector.load %arg5[%165, %c0_65, %c0_66] : memref<14x16x1xf32, #tpu.memory_space<vmem>>, vector<1x16x1xf32>
      %167 = vector.shape_cast %166 : vector<1x16x1xf32> to vector<16x1xf32>
      %c2_i32_67 = arith.constant 2 : i32
      %168 = tpu.dynamic_rotate %159 by %c2_i32_67 dim 1 : vector<16x256xf32>, i32 -> vector<16x256xf32>
      %c242_i32 = arith.constant 242 : i32
      %169 = tpu.dynamic_rotate %159 by %c242_i32 dim 1 : vector<16x256xf32>, i32 -> vector<16x256xf32>
      %170 = vector.shape_cast %24 : vector<1x256xi1> to vector<1x256xi1>
      %171 = vector.broadcast %170 : vector<1x256xi1> to vector<16x256xi1>
      %172 = arith.select %171, %168, %169 : vector<16x256xi1>, vector<16x256xf32>
      %c254_i32 = arith.constant 254 : i32
      %173 = tpu.dynamic_rotate %159 by %c254_i32 dim 1 : vector<16x256xf32>, i32 -> vector<16x256xf32>
      %c14_i32_68 = arith.constant 14 : i32
      %174 = tpu.dynamic_rotate %159 by %c14_i32_68 dim 1 : vector<16x256xf32>, i32 -> vector<16x256xf32>
      %175 = vector.shape_cast %26 : vector<1x256xi1> to vector<1x256xi1>
      %176 = vector.broadcast %175 : vector<1x256xi1> to vector<16x256xi1>
      %177 = arith.select %176, %173, %174 : vector<16x256xi1>, vector<16x256xf32>
      %c32_i32 = arith.constant 32 : i32
      %178 = tpu.dynamic_rotate %172 by %c32_i32 dim 1 : vector<16x256xf32>, i32 -> vector<16x256xf32>
      %179 = arith.truncf %178 : vector<16x256xf32> to vector<16x256xbf16>
      %c32_i32_69 = arith.constant 32 : i32
      %180 = tpu.dynamic_rotate %159 by %c32_i32_69 dim 1 : vector<16x256xf32>, i32 -> vector<16x256xf32>
      %181 = arith.truncf %180 : vector<16x256xf32> to vector<16x256xbf16>
      %c32_i32_70 = arith.constant 32 : i32
      %182 = tpu.dynamic_rotate %177 by %c32_i32_70 dim 1 : vector<16x256xf32>, i32 -> vector<16x256xf32>
      %183 = arith.truncf %182 : vector<16x256xf32> to vector<16x256xbf16>
      %184 = arith.truncf %172 : vector<16x256xf32> to vector<16x256xbf16>
      %185 = arith.truncf %159 : vector<16x256xf32> to vector<16x256xbf16>
      %186 = arith.truncf %177 : vector<16x256xf32> to vector<16x256xbf16>
      %c224_i32 = arith.constant 224 : i32
      %187 = tpu.dynamic_rotate %172 by %c224_i32 dim 1 : vector<16x256xf32>, i32 -> vector<16x256xf32>
      %188 = arith.truncf %187 : vector<16x256xf32> to vector<16x256xbf16>
      %c224_i32_71 = arith.constant 224 : i32
      %189 = tpu.dynamic_rotate %159 by %c224_i32_71 dim 1 : vector<16x256xf32>, i32 -> vector<16x256xf32>
      %190 = arith.truncf %189 : vector<16x256xf32> to vector<16x256xbf16>
      %c224_i32_72 = arith.constant 224 : i32
      %191 = tpu.dynamic_rotate %177 by %c224_i32_72 dim 1 : vector<16x256xf32>, i32 -> vector<16x256xf32>
      %192 = arith.truncf %191 : vector<16x256xf32> to vector<16x256xbf16>
      %193 = tpu.concatenate %179, %181, %183, %184, %185, %186, %188, %190, %192 in 0 : vector<16x256xbf16>, vector<16x256xbf16>, vector<16x256xbf16>, vector<16x256xbf16>, vector<16x256xbf16>, vector<16x256xbf16>, vector<16x256xbf16>, vector<16x256xbf16>, vector<16x256xbf16> -> vector<144x256xbf16>
      %cst_73 = arith.constant dense<0.000000e+00> : vector<16x256xf32>
      %194 = tpu.matmul %163, %193, %cst_73 {dimension_numbers = #tpu.dot_dimension_numbers<[1], [0], [0], [1], [0, 0, 1, 1], [], []>} : vector<16x144xbf16>, vector<144x256xbf16>, vector<16x256xf32> -> vector<16x256xf32>
      %195 = vector.broadcast %167 : vector<16x1xf32> to vector<16x256xf32>
      %196 = arith.addf %194, %195 : vector<16x256xf32>
      %cst_74 = arith.constant 0.000000e+00 : f32
      %197 = vector.broadcast %cst_74 : f32 to vector<16x256xf32>
      %198 = arith.maximumf %196, %197 : vector<16x256xf32>
      %c2_i32_75 = arith.constant 2 : i32
      %199 = arith.addi %120, %c2_i32_75 : i32
      %200 = arith.index_cast %199 : i32 to index
      %c0_76 = arith.constant 0 : index
      %c0_77 = arith.constant 0 : index
      %201 = vector.load %arg4[%200, %c0_76, %c0_77] : memref<14x16x144xbf16, #tpu.memory_space<vmem>>, vector<1x16x144xbf16>
      %202 = vector.shape_cast %201 : vector<1x16x144xbf16> to vector<16x144xbf16>
      %c2_i32_78 = arith.constant 2 : i32
      %203 = arith.addi %120, %c2_i32_78 : i32
      %204 = arith.index_cast %203 : i32 to index
      %c0_79 = arith.constant 0 : index
      %c0_80 = arith.constant 0 : index
      %205 = vector.load %arg5[%204, %c0_79, %c0_80] : memref<14x16x1xf32, #tpu.memory_space<vmem>>, vector<1x16x1xf32>
      %206 = vector.shape_cast %205 : vector<1x16x1xf32> to vector<16x1xf32>
      %c4_i32_81 = arith.constant 4 : i32
      %207 = tpu.dynamic_rotate %198 by %c4_i32_81 dim 1 : vector<16x256xf32>, i32 -> vector<16x256xf32>
      %c244_i32 = arith.constant 244 : i32
      %208 = tpu.dynamic_rotate %198 by %c244_i32 dim 1 : vector<16x256xf32>, i32 -> vector<16x256xf32>
      %209 = vector.shape_cast %28 : vector<1x256xi1> to vector<1x256xi1>
      %210 = vector.broadcast %209 : vector<1x256xi1> to vector<16x256xi1>
      %211 = arith.select %210, %207, %208 : vector<16x256xi1>, vector<16x256xf32>
      %c252_i32 = arith.constant 252 : i32
      %212 = tpu.dynamic_rotate %198 by %c252_i32 dim 1 : vector<16x256xf32>, i32 -> vector<16x256xf32>
      %c12_i32_82 = arith.constant 12 : i32
      %213 = tpu.dynamic_rotate %198 by %c12_i32_82 dim 1 : vector<16x256xf32>, i32 -> vector<16x256xf32>
      %214 = vector.shape_cast %30 : vector<1x256xi1> to vector<1x256xi1>
      %215 = vector.broadcast %214 : vector<1x256xi1> to vector<16x256xi1>
      %216 = arith.select %215, %212, %213 : vector<16x256xi1>, vector<16x256xf32>
      %c64_i32 = arith.constant 64 : i32
      %217 = tpu.dynamic_rotate %211 by %c64_i32 dim 1 : vector<16x256xf32>, i32 -> vector<16x256xf32>
      %218 = arith.truncf %217 : vector<16x256xf32> to vector<16x256xbf16>
      %c64_i32_83 = arith.constant 64 : i32
      %219 = tpu.dynamic_rotate %198 by %c64_i32_83 dim 1 : vector<16x256xf32>, i32 -> vector<16x256xf32>
      %220 = arith.truncf %219 : vector<16x256xf32> to vector<16x256xbf16>
      %c64_i32_84 = arith.constant 64 : i32
      %221 = tpu.dynamic_rotate %216 by %c64_i32_84 dim 1 : vector<16x256xf32>, i32 -> vector<16x256xf32>
      %222 = arith.truncf %221 : vector<16x256xf32> to vector<16x256xbf16>
      %223 = arith.truncf %211 : vector<16x256xf32> to vector<16x256xbf16>
      %224 = arith.truncf %198 : vector<16x256xf32> to vector<16x256xbf16>
      %225 = arith.truncf %216 : vector<16x256xf32> to vector<16x256xbf16>
      %c192_i32 = arith.constant 192 : i32
      %226 = tpu.dynamic_rotate %211 by %c192_i32 dim 1 : vector<16x256xf32>, i32 -> vector<16x256xf32>
      %227 = arith.truncf %226 : vector<16x256xf32> to vector<16x256xbf16>
      %c192_i32_85 = arith.constant 192 : i32
      %228 = tpu.dynamic_rotate %198 by %c192_i32_85 dim 1 : vector<16x256xf32>, i32 -> vector<16x256xf32>
      %229 = arith.truncf %228 : vector<16x256xf32> to vector<16x256xbf16>
      %c192_i32_86 = arith.constant 192 : i32
      %230 = tpu.dynamic_rotate %216 by %c192_i32_86 dim 1 : vector<16x256xf32>, i32 -> vector<16x256xf32>
      %231 = arith.truncf %230 : vector<16x256xf32> to vector<16x256xbf16>
      %232 = tpu.concatenate %218, %220, %222, %223, %224, %225, %227, %229, %231 in 0 : vector<16x256xbf16>, vector<16x256xbf16>, vector<16x256xbf16>, vector<16x256xbf16>, vector<16x256xbf16>, vector<16x256xbf16>, vector<16x256xbf16>, vector<16x256xbf16>, vector<16x256xbf16> -> vector<144x256xbf16>
      %cst_87 = arith.constant dense<0.000000e+00> : vector<16x256xf32>
      %233 = tpu.matmul %202, %232, %cst_87 {dimension_numbers = #tpu.dot_dimension_numbers<[1], [0], [0], [1], [0, 0, 1, 1], [], []>} : vector<16x144xbf16>, vector<144x256xbf16>, vector<16x256xf32> -> vector<16x256xf32>
      %234 = vector.broadcast %206 : vector<16x1xf32> to vector<16x256xf32>
      %235 = arith.addf %233, %234 : vector<16x256xf32>
      %cst_88 = arith.constant 0.000000e+00 : f32
      %236 = vector.broadcast %cst_88 : f32 to vector<16x256xf32>
      %237 = arith.maximumf %235, %236 : vector<16x256xf32>
      %c3_i32 = arith.constant 3 : i32
      %238 = arith.addi %120, %c3_i32 : i32
      %239 = arith.index_cast %238 : i32 to index
      %c0_89 = arith.constant 0 : index
      %c0_90 = arith.constant 0 : index
      %240 = vector.load %arg4[%239, %c0_89, %c0_90] : memref<14x16x144xbf16, #tpu.memory_space<vmem>>, vector<1x16x144xbf16>
      %241 = vector.shape_cast %240 : vector<1x16x144xbf16> to vector<16x144xbf16>
      %c3_i32_91 = arith.constant 3 : i32
      %242 = arith.addi %120, %c3_i32_91 : i32
      %243 = arith.index_cast %242 : i32 to index
      %c0_92 = arith.constant 0 : index
      %c0_93 = arith.constant 0 : index
      %244 = vector.load %arg5[%243, %c0_92, %c0_93] : memref<14x16x1xf32, #tpu.memory_space<vmem>>, vector<1x16x1xf32>
      %245 = vector.shape_cast %244 : vector<1x16x1xf32> to vector<16x1xf32>
      %c8_i32_94 = arith.constant 8 : i32
      %246 = tpu.dynamic_rotate %237 by %c8_i32_94 dim 1 : vector<16x256xf32>, i32 -> vector<16x256xf32>
      %c248_i32 = arith.constant 248 : i32
      %247 = tpu.dynamic_rotate %237 by %c248_i32 dim 1 : vector<16x256xf32>, i32 -> vector<16x256xf32>
      %248 = vector.shape_cast %32 : vector<1x256xi1> to vector<1x256xi1>
      %249 = vector.broadcast %248 : vector<1x256xi1> to vector<16x256xi1>
      %250 = arith.select %249, %246, %247 : vector<16x256xi1>, vector<16x256xf32>
      %c248_i32_95 = arith.constant 248 : i32
      %251 = tpu.dynamic_rotate %237 by %c248_i32_95 dim 1 : vector<16x256xf32>, i32 -> vector<16x256xf32>
      %c8_i32_96 = arith.constant 8 : i32
      %252 = tpu.dynamic_rotate %237 by %c8_i32_96 dim 1 : vector<16x256xf32>, i32 -> vector<16x256xf32>
      %253 = vector.shape_cast %34 : vector<1x256xi1> to vector<1x256xi1>
      %254 = vector.broadcast %253 : vector<1x256xi1> to vector<16x256xi1>
      %255 = arith.select %254, %251, %252 : vector<16x256xi1>, vector<16x256xf32>
      %c128_i32 = arith.constant 128 : i32
      %256 = tpu.dynamic_rotate %250 by %c128_i32 dim 1 : vector<16x256xf32>, i32 -> vector<16x256xf32>
      %257 = arith.truncf %256 : vector<16x256xf32> to vector<16x256xbf16>
      %c128_i32_97 = arith.constant 128 : i32
      %258 = tpu.dynamic_rotate %237 by %c128_i32_97 dim 1 : vector<16x256xf32>, i32 -> vector<16x256xf32>
      %259 = arith.truncf %258 : vector<16x256xf32> to vector<16x256xbf16>
      %c128_i32_98 = arith.constant 128 : i32
      %260 = tpu.dynamic_rotate %255 by %c128_i32_98 dim 1 : vector<16x256xf32>, i32 -> vector<16x256xf32>
      %261 = arith.truncf %260 : vector<16x256xf32> to vector<16x256xbf16>
      %262 = arith.truncf %250 : vector<16x256xf32> to vector<16x256xbf16>
      %263 = arith.truncf %237 : vector<16x256xf32> to vector<16x256xbf16>
      %264 = arith.truncf %255 : vector<16x256xf32> to vector<16x256xbf16>
      %c128_i32_99 = arith.constant 128 : i32
      %265 = tpu.dynamic_rotate %250 by %c128_i32_99 dim 1 : vector<16x256xf32>, i32 -> vector<16x256xf32>
      %266 = arith.truncf %265 : vector<16x256xf32> to vector<16x256xbf16>
      %c128_i32_100 = arith.constant 128 : i32
      %267 = tpu.dynamic_rotate %237 by %c128_i32_100 dim 1 : vector<16x256xf32>, i32 -> vector<16x256xf32>
      %268 = arith.truncf %267 : vector<16x256xf32> to vector<16x256xbf16>
      %c128_i32_101 = arith.constant 128 : i32
      %269 = tpu.dynamic_rotate %255 by %c128_i32_101 dim 1 : vector<16x256xf32>, i32 -> vector<16x256xf32>
      %270 = arith.truncf %269 : vector<16x256xf32> to vector<16x256xbf16>
      %271 = tpu.concatenate %257, %259, %261, %262, %263, %264, %266, %268, %270 in 0 : vector<16x256xbf16>, vector<16x256xbf16>, vector<16x256xbf16>, vector<16x256xbf16>, vector<16x256xbf16>, vector<16x256xbf16>, vector<16x256xbf16>, vector<16x256xbf16>, vector<16x256xbf16> -> vector<144x256xbf16>
      %cst_102 = arith.constant dense<0.000000e+00> : vector<16x256xf32>
      %272 = tpu.matmul %241, %271, %cst_102 {dimension_numbers = #tpu.dot_dimension_numbers<[1], [0], [0], [1], [0, 0, 1, 1], [], []>} : vector<16x144xbf16>, vector<144x256xbf16>, vector<16x256xf32> -> vector<16x256xf32>
      %273 = vector.broadcast %245 : vector<16x1xf32> to vector<16x256xf32>
      %274 = arith.addf %272, %273 : vector<16x256xf32>
      %cst_103 = arith.constant 0.000000e+00 : f32
      %275 = vector.broadcast %cst_103 : f32 to vector<16x256xf32>
      %276 = arith.maximumf %274, %275 : vector<16x256xf32>
      %c4_i32_104 = arith.constant 4 : i32
      %277 = arith.addi %120, %c4_i32_104 : i32
      %278 = arith.index_cast %277 : i32 to index
      %c0_105 = arith.constant 0 : index
      %c0_106 = arith.constant 0 : index
      %279 = vector.load %arg4[%278, %c0_105, %c0_106] : memref<14x16x144xbf16, #tpu.memory_space<vmem>>, vector<1x16x144xbf16>
      %280 = vector.shape_cast %279 : vector<1x16x144xbf16> to vector<16x144xbf16>
      %c4_i32_107 = arith.constant 4 : i32
      %281 = arith.addi %120, %c4_i32_107 : i32
      %282 = arith.index_cast %281 : i32 to index
      %c0_108 = arith.constant 0 : index
      %c0_109 = arith.constant 0 : index
      %283 = vector.load %arg5[%282, %c0_108, %c0_109] : memref<14x16x1xf32, #tpu.memory_space<vmem>>, vector<1x16x1xf32>
      %284 = vector.shape_cast %283 : vector<1x16x1xf32> to vector<16x1xf32>
      %c4_i32_110 = arith.constant 4 : i32
      %285 = tpu.dynamic_rotate %276 by %c4_i32_110 dim 1 : vector<16x256xf32>, i32 -> vector<16x256xf32>
      %c244_i32_111 = arith.constant 244 : i32
      %286 = tpu.dynamic_rotate %276 by %c244_i32_111 dim 1 : vector<16x256xf32>, i32 -> vector<16x256xf32>
      %287 = vector.shape_cast %28 : vector<1x256xi1> to vector<1x256xi1>
      %288 = vector.broadcast %287 : vector<1x256xi1> to vector<16x256xi1>
      %289 = arith.select %288, %285, %286 : vector<16x256xi1>, vector<16x256xf32>
      %c252_i32_112 = arith.constant 252 : i32
      %290 = tpu.dynamic_rotate %276 by %c252_i32_112 dim 1 : vector<16x256xf32>, i32 -> vector<16x256xf32>
      %c12_i32_113 = arith.constant 12 : i32
      %291 = tpu.dynamic_rotate %276 by %c12_i32_113 dim 1 : vector<16x256xf32>, i32 -> vector<16x256xf32>
      %292 = vector.shape_cast %30 : vector<1x256xi1> to vector<1x256xi1>
      %293 = vector.broadcast %292 : vector<1x256xi1> to vector<16x256xi1>
      %294 = arith.select %293, %290, %291 : vector<16x256xi1>, vector<16x256xf32>
      %c64_i32_114 = arith.constant 64 : i32
      %295 = tpu.dynamic_rotate %289 by %c64_i32_114 dim 1 : vector<16x256xf32>, i32 -> vector<16x256xf32>
      %296 = arith.truncf %295 : vector<16x256xf32> to vector<16x256xbf16>
      %c64_i32_115 = arith.constant 64 : i32
      %297 = tpu.dynamic_rotate %276 by %c64_i32_115 dim 1 : vector<16x256xf32>, i32 -> vector<16x256xf32>
      %298 = arith.truncf %297 : vector<16x256xf32> to vector<16x256xbf16>
      %c64_i32_116 = arith.constant 64 : i32
      %299 = tpu.dynamic_rotate %294 by %c64_i32_116 dim 1 : vector<16x256xf32>, i32 -> vector<16x256xf32>
      %300 = arith.truncf %299 : vector<16x256xf32> to vector<16x256xbf16>
      %301 = arith.truncf %289 : vector<16x256xf32> to vector<16x256xbf16>
      %302 = arith.truncf %276 : vector<16x256xf32> to vector<16x256xbf16>
      %303 = arith.truncf %294 : vector<16x256xf32> to vector<16x256xbf16>
      %c192_i32_117 = arith.constant 192 : i32
      %304 = tpu.dynamic_rotate %289 by %c192_i32_117 dim 1 : vector<16x256xf32>, i32 -> vector<16x256xf32>
      %305 = arith.truncf %304 : vector<16x256xf32> to vector<16x256xbf16>
      %c192_i32_118 = arith.constant 192 : i32
      %306 = tpu.dynamic_rotate %276 by %c192_i32_118 dim 1 : vector<16x256xf32>, i32 -> vector<16x256xf32>
      %307 = arith.truncf %306 : vector<16x256xf32> to vector<16x256xbf16>
      %c192_i32_119 = arith.constant 192 : i32
      %308 = tpu.dynamic_rotate %294 by %c192_i32_119 dim 1 : vector<16x256xf32>, i32 -> vector<16x256xf32>
      %309 = arith.truncf %308 : vector<16x256xf32> to vector<16x256xbf16>
      %310 = tpu.concatenate %296, %298, %300, %301, %302, %303, %305, %307, %309 in 0 : vector<16x256xbf16>, vector<16x256xbf16>, vector<16x256xbf16>, vector<16x256xbf16>, vector<16x256xbf16>, vector<16x256xbf16>, vector<16x256xbf16>, vector<16x256xbf16>, vector<16x256xbf16> -> vector<144x256xbf16>
      %cst_120 = arith.constant dense<0.000000e+00> : vector<16x256xf32>
      %311 = tpu.matmul %280, %310, %cst_120 {dimension_numbers = #tpu.dot_dimension_numbers<[1], [0], [0], [1], [0, 0, 1, 1], [], []>} : vector<16x144xbf16>, vector<144x256xbf16>, vector<16x256xf32> -> vector<16x256xf32>
      %312 = vector.broadcast %284 : vector<16x1xf32> to vector<16x256xf32>
      %313 = arith.addf %311, %312 : vector<16x256xf32>
      %cst_121 = arith.constant 0.000000e+00 : f32
      %314 = vector.broadcast %cst_121 : f32 to vector<16x256xf32>
      %315 = arith.maximumf %313, %314 : vector<16x256xf32>
      %c5_i32 = arith.constant 5 : i32
      %316 = arith.addi %120, %c5_i32 : i32
      %317 = arith.index_cast %316 : i32 to index
      %c0_122 = arith.constant 0 : index
      %c0_123 = arith.constant 0 : index
      %318 = vector.load %arg4[%317, %c0_122, %c0_123] : memref<14x16x144xbf16, #tpu.memory_space<vmem>>, vector<1x16x144xbf16>
      %319 = vector.shape_cast %318 : vector<1x16x144xbf16> to vector<16x144xbf16>
      %c5_i32_124 = arith.constant 5 : i32
      %320 = arith.addi %120, %c5_i32_124 : i32
      %321 = arith.index_cast %320 : i32 to index
      %c0_125 = arith.constant 0 : index
      %c0_126 = arith.constant 0 : index
      %322 = vector.load %arg5[%321, %c0_125, %c0_126] : memref<14x16x1xf32, #tpu.memory_space<vmem>>, vector<1x16x1xf32>
      %323 = vector.shape_cast %322 : vector<1x16x1xf32> to vector<16x1xf32>
      %c2_i32_127 = arith.constant 2 : i32
      %324 = tpu.dynamic_rotate %315 by %c2_i32_127 dim 1 : vector<16x256xf32>, i32 -> vector<16x256xf32>
      %c242_i32_128 = arith.constant 242 : i32
      %325 = tpu.dynamic_rotate %315 by %c242_i32_128 dim 1 : vector<16x256xf32>, i32 -> vector<16x256xf32>
      %326 = vector.shape_cast %24 : vector<1x256xi1> to vector<1x256xi1>
      %327 = vector.broadcast %326 : vector<1x256xi1> to vector<16x256xi1>
      %328 = arith.select %327, %324, %325 : vector<16x256xi1>, vector<16x256xf32>
      %c254_i32_129 = arith.constant 254 : i32
      %329 = tpu.dynamic_rotate %315 by %c254_i32_129 dim 1 : vector<16x256xf32>, i32 -> vector<16x256xf32>
      %c14_i32_130 = arith.constant 14 : i32
      %330 = tpu.dynamic_rotate %315 by %c14_i32_130 dim 1 : vector<16x256xf32>, i32 -> vector<16x256xf32>
      %331 = vector.shape_cast %26 : vector<1x256xi1> to vector<1x256xi1>
      %332 = vector.broadcast %331 : vector<1x256xi1> to vector<16x256xi1>
      %333 = arith.select %332, %329, %330 : vector<16x256xi1>, vector<16x256xf32>
      %c32_i32_131 = arith.constant 32 : i32
      %334 = tpu.dynamic_rotate %328 by %c32_i32_131 dim 1 : vector<16x256xf32>, i32 -> vector<16x256xf32>
      %335 = arith.truncf %334 : vector<16x256xf32> to vector<16x256xbf16>
      %c32_i32_132 = arith.constant 32 : i32
      %336 = tpu.dynamic_rotate %315 by %c32_i32_132 dim 1 : vector<16x256xf32>, i32 -> vector<16x256xf32>
      %337 = arith.truncf %336 : vector<16x256xf32> to vector<16x256xbf16>
      %c32_i32_133 = arith.constant 32 : i32
      %338 = tpu.dynamic_rotate %333 by %c32_i32_133 dim 1 : vector<16x256xf32>, i32 -> vector<16x256xf32>
      %339 = arith.truncf %338 : vector<16x256xf32> to vector<16x256xbf16>
      %340 = arith.truncf %328 : vector<16x256xf32> to vector<16x256xbf16>
      %341 = arith.truncf %315 : vector<16x256xf32> to vector<16x256xbf16>
      %342 = arith.truncf %333 : vector<16x256xf32> to vector<16x256xbf16>
      %c224_i32_134 = arith.constant 224 : i32
      %343 = tpu.dynamic_rotate %328 by %c224_i32_134 dim 1 : vector<16x256xf32>, i32 -> vector<16x256xf32>
      %344 = arith.truncf %343 : vector<16x256xf32> to vector<16x256xbf16>
      %c224_i32_135 = arith.constant 224 : i32
      %345 = tpu.dynamic_rotate %315 by %c224_i32_135 dim 1 : vector<16x256xf32>, i32 -> vector<16x256xf32>
      %346 = arith.truncf %345 : vector<16x256xf32> to vector<16x256xbf16>
      %c224_i32_136 = arith.constant 224 : i32
      %347 = tpu.dynamic_rotate %333 by %c224_i32_136 dim 1 : vector<16x256xf32>, i32 -> vector<16x256xf32>
      %348 = arith.truncf %347 : vector<16x256xf32> to vector<16x256xbf16>
      %349 = tpu.concatenate %335, %337, %339, %340, %341, %342, %344, %346, %348 in 0 : vector<16x256xbf16>, vector<16x256xbf16>, vector<16x256xbf16>, vector<16x256xbf16>, vector<16x256xbf16>, vector<16x256xbf16>, vector<16x256xbf16>, vector<16x256xbf16>, vector<16x256xbf16> -> vector<144x256xbf16>
      %cst_137 = arith.constant dense<0.000000e+00> : vector<16x256xf32>
      %350 = tpu.matmul %319, %349, %cst_137 {dimension_numbers = #tpu.dot_dimension_numbers<[1], [0], [0], [1], [0, 0, 1, 1], [], []>} : vector<16x144xbf16>, vector<144x256xbf16>, vector<16x256xf32> -> vector<16x256xf32>
      %351 = vector.broadcast %323 : vector<16x1xf32> to vector<16x256xf32>
      %352 = arith.addf %350, %351 : vector<16x256xf32>
      %cst_138 = arith.constant 0.000000e+00 : f32
      %353 = vector.broadcast %cst_138 : f32 to vector<16x256xf32>
      %354 = arith.maximumf %352, %353 : vector<16x256xf32>
      %c6_i32 = arith.constant 6 : i32
      %355 = arith.addi %120, %c6_i32 : i32
      %356 = arith.index_cast %355 : i32 to index
      %c0_139 = arith.constant 0 : index
      %c0_140 = arith.constant 0 : index
      %357 = vector.load %arg4[%356, %c0_139, %c0_140] : memref<14x16x144xbf16, #tpu.memory_space<vmem>>, vector<1x16x144xbf16>
      %358 = vector.shape_cast %357 : vector<1x16x144xbf16> to vector<16x144xbf16>
      %c6_i32_141 = arith.constant 6 : i32
      %359 = arith.addi %120, %c6_i32_141 : i32
      %360 = arith.index_cast %359 : i32 to index
      %c0_142 = arith.constant 0 : index
      %c0_143 = arith.constant 0 : index
      %361 = vector.load %arg5[%360, %c0_142, %c0_143] : memref<14x16x1xf32, #tpu.memory_space<vmem>>, vector<1x16x1xf32>
      %362 = vector.shape_cast %361 : vector<1x16x1xf32> to vector<16x1xf32>
      %c1_i32_144 = arith.constant 1 : i32
      %363 = tpu.dynamic_rotate %354 by %c1_i32_144 dim 1 : vector<16x256xf32>, i32 -> vector<16x256xf32>
      %c241_i32_145 = arith.constant 241 : i32
      %364 = tpu.dynamic_rotate %354 by %c241_i32_145 dim 1 : vector<16x256xf32>, i32 -> vector<16x256xf32>
      %365 = vector.shape_cast %20 : vector<1x256xi1> to vector<1x256xi1>
      %366 = vector.broadcast %365 : vector<1x256xi1> to vector<16x256xi1>
      %367 = arith.select %366, %363, %364 : vector<16x256xi1>, vector<16x256xf32>
      %c255_i32_146 = arith.constant 255 : i32
      %368 = tpu.dynamic_rotate %354 by %c255_i32_146 dim 1 : vector<16x256xf32>, i32 -> vector<16x256xf32>
      %c15_i32_147 = arith.constant 15 : i32
      %369 = tpu.dynamic_rotate %354 by %c15_i32_147 dim 1 : vector<16x256xf32>, i32 -> vector<16x256xf32>
      %370 = vector.shape_cast %22 : vector<1x256xi1> to vector<1x256xi1>
      %371 = vector.broadcast %370 : vector<1x256xi1> to vector<16x256xi1>
      %372 = arith.select %371, %368, %369 : vector<16x256xi1>, vector<16x256xf32>
      %c16_i32_148 = arith.constant 16 : i32
      %373 = tpu.dynamic_rotate %367 by %c16_i32_148 dim 1 : vector<16x256xf32>, i32 -> vector<16x256xf32>
      %374 = arith.truncf %373 : vector<16x256xf32> to vector<16x256xbf16>
      %c16_i32_149 = arith.constant 16 : i32
      %375 = tpu.dynamic_rotate %354 by %c16_i32_149 dim 1 : vector<16x256xf32>, i32 -> vector<16x256xf32>
      %376 = arith.truncf %375 : vector<16x256xf32> to vector<16x256xbf16>
      %c16_i32_150 = arith.constant 16 : i32
      %377 = tpu.dynamic_rotate %372 by %c16_i32_150 dim 1 : vector<16x256xf32>, i32 -> vector<16x256xf32>
      %378 = arith.truncf %377 : vector<16x256xf32> to vector<16x256xbf16>
      %379 = arith.truncf %367 : vector<16x256xf32> to vector<16x256xbf16>
      %380 = arith.truncf %354 : vector<16x256xf32> to vector<16x256xbf16>
      %381 = arith.truncf %372 : vector<16x256xf32> to vector<16x256xbf16>
      %c240_i32_151 = arith.constant 240 : i32
      %382 = tpu.dynamic_rotate %367 by %c240_i32_151 dim 1 : vector<16x256xf32>, i32 -> vector<16x256xf32>
      %383 = arith.truncf %382 : vector<16x256xf32> to vector<16x256xbf16>
      %c240_i32_152 = arith.constant 240 : i32
      %384 = tpu.dynamic_rotate %354 by %c240_i32_152 dim 1 : vector<16x256xf32>, i32 -> vector<16x256xf32>
      %385 = arith.truncf %384 : vector<16x256xf32> to vector<16x256xbf16>
      %c240_i32_153 = arith.constant 240 : i32
      %386 = tpu.dynamic_rotate %372 by %c240_i32_153 dim 1 : vector<16x256xf32>, i32 -> vector<16x256xf32>
      %387 = arith.truncf %386 : vector<16x256xf32> to vector<16x256xbf16>
      %388 = tpu.concatenate %374, %376, %378, %379, %380, %381, %383, %385, %387 in 0 : vector<16x256xbf16>, vector<16x256xbf16>, vector<16x256xbf16>, vector<16x256xbf16>, vector<16x256xbf16>, vector<16x256xbf16>, vector<16x256xbf16>, vector<16x256xbf16>, vector<16x256xbf16> -> vector<144x256xbf16>
      %cst_154 = arith.constant dense<0.000000e+00> : vector<16x256xf32>
      %389 = tpu.matmul %358, %388, %cst_154 {dimension_numbers = #tpu.dot_dimension_numbers<[1], [0], [0], [1], [0, 0, 1, 1], [], []>} : vector<16x144xbf16>, vector<144x256xbf16>, vector<16x256xf32> -> vector<16x256xf32>
      %390 = vector.broadcast %362 : vector<16x1xf32> to vector<16x256xf32>
      %391 = arith.addf %389, %390 : vector<16x256xf32>
      %cst_155 = arith.constant 0.000000e+00 : f32
      %392 = vector.broadcast %cst_155 : f32 to vector<16x256xf32>
      %393 = arith.maximumf %391, %392 : vector<16x256xf32>
      %394 = arith.addf %arg10, %393 : vector<16x256xf32>
      scf.yield %394 : vector<16x256xf32>
    }
    %c2_i32_21 = arith.constant 2 : i32
    %c0_22 = arith.constant 0 : index
    %c0_23 = arith.constant 0 : index
    %68 = vector.load %arg6[%c0_22, %c0_23] : memref<4x144xbf16, #tpu.memory_space<vmem>>, vector<4x144xbf16>
    %c0_24 = arith.constant 0 : index
    %c0_25 = arith.constant 0 : index
    %69 = vector.load %arg7[%c0_24, %c0_25] : memref<4x1xf32, #tpu.memory_space<vmem>>, vector<4x1xf32>
    %c1_i32_26 = arith.constant 1 : i32
    %70 = tpu.dynamic_rotate %67 by %c1_i32_26 dim 1 : vector<16x256xf32>, i32 -> vector<16x256xf32>
    %c241_i32_27 = arith.constant 241 : i32
    %71 = tpu.dynamic_rotate %67 by %c241_i32_27 dim 1 : vector<16x256xf32>, i32 -> vector<16x256xf32>
    %72 = vector.shape_cast %20 : vector<1x256xi1> to vector<1x256xi1>
    %73 = vector.broadcast %72 : vector<1x256xi1> to vector<16x256xi1>
    %74 = arith.select %73, %70, %71 : vector<16x256xi1>, vector<16x256xf32>
    %c255_i32_28 = arith.constant 255 : i32
    %75 = tpu.dynamic_rotate %67 by %c255_i32_28 dim 1 : vector<16x256xf32>, i32 -> vector<16x256xf32>
    %c15_i32_29 = arith.constant 15 : i32
    %76 = tpu.dynamic_rotate %67 by %c15_i32_29 dim 1 : vector<16x256xf32>, i32 -> vector<16x256xf32>
    %77 = vector.shape_cast %22 : vector<1x256xi1> to vector<1x256xi1>
    %78 = vector.broadcast %77 : vector<1x256xi1> to vector<16x256xi1>
    %79 = arith.select %78, %75, %76 : vector<16x256xi1>, vector<16x256xf32>
    %c16_i32_30 = arith.constant 16 : i32
    %80 = tpu.dynamic_rotate %74 by %c16_i32_30 dim 1 : vector<16x256xf32>, i32 -> vector<16x256xf32>
    %81 = arith.truncf %80 : vector<16x256xf32> to vector<16x256xbf16>
    %c16_i32_31 = arith.constant 16 : i32
    %82 = tpu.dynamic_rotate %67 by %c16_i32_31 dim 1 : vector<16x256xf32>, i32 -> vector<16x256xf32>
    %83 = arith.truncf %82 : vector<16x256xf32> to vector<16x256xbf16>
    %c16_i32_32 = arith.constant 16 : i32
    %84 = tpu.dynamic_rotate %79 by %c16_i32_32 dim 1 : vector<16x256xf32>, i32 -> vector<16x256xf32>
    %85 = arith.truncf %84 : vector<16x256xf32> to vector<16x256xbf16>
    %86 = arith.truncf %74 : vector<16x256xf32> to vector<16x256xbf16>
    %87 = arith.truncf %67 : vector<16x256xf32> to vector<16x256xbf16>
    %88 = arith.truncf %79 : vector<16x256xf32> to vector<16x256xbf16>
    %c240_i32_33 = arith.constant 240 : i32
    %89 = tpu.dynamic_rotate %74 by %c240_i32_33 dim 1 : vector<16x256xf32>, i32 -> vector<16x256xf32>
    %90 = arith.truncf %89 : vector<16x256xf32> to vector<16x256xbf16>
    %c240_i32_34 = arith.constant 240 : i32
    %91 = tpu.dynamic_rotate %67 by %c240_i32_34 dim 1 : vector<16x256xf32>, i32 -> vector<16x256xf32>
    %92 = arith.truncf %91 : vector<16x256xf32> to vector<16x256xbf16>
    %c240_i32_35 = arith.constant 240 : i32
    %93 = tpu.dynamic_rotate %79 by %c240_i32_35 dim 1 : vector<16x256xf32>, i32 -> vector<16x256xf32>
    %94 = arith.truncf %93 : vector<16x256xf32> to vector<16x256xbf16>
    %95 = tpu.concatenate %81, %83, %85, %86, %87, %88, %90, %92, %94 in 0 : vector<16x256xbf16>, vector<16x256xbf16>, vector<16x256xbf16>, vector<16x256xbf16>, vector<16x256xbf16>, vector<16x256xbf16>, vector<16x256xbf16>, vector<16x256xbf16>, vector<16x256xbf16> -> vector<144x256xbf16>
    %cst_36 = arith.constant dense<0.000000e+00> : vector<4x256xf32>
    %96 = tpu.matmul %68, %95, %cst_36 {dimension_numbers = #tpu.dot_dimension_numbers<[1], [0], [0], [1], [0, 0, 1, 1], [], []>} : vector<4x144xbf16>, vector<144x256xbf16>, vector<4x256xf32> -> vector<4x256xf32>
    %97 = vector.broadcast %69 : vector<4x1xf32> to vector<4x256xf32>
    %98 = arith.addf %96, %97 : vector<4x256xf32>
    %c255_i32_37 = arith.constant 255 : i32
    %99 = tpu.dynamic_rotate %98 by %c255_i32_37 dim 1 : vector<4x256xf32>, i32 -> vector<4x256xf32>
    %c15_i32_38 = arith.constant 15 : i32
    %100 = tpu.dynamic_rotate %98 by %c15_i32_38 dim 1 : vector<4x256xf32>, i32 -> vector<4x256xf32>
    %101 = vector.shape_cast %22 : vector<1x256xi1> to vector<1x256xi1>
    %102 = vector.broadcast %101 : vector<1x256xi1> to vector<4x256xi1>
    %103 = arith.select %102, %99, %100 : vector<4x256xi1>, vector<4x256xf32>
    %104 = arith.subf %98, %103 : vector<4x256xf32>
    %c240_i32_39 = arith.constant 240 : i32
    %105 = tpu.dynamic_rotate %98 by %c240_i32_39 dim 1 : vector<4x256xf32>, i32 -> vector<4x256xf32>
    %106 = arith.subf %98, %105 : vector<4x256xf32>
    %107 = vector.extract_strided_slice %1 {offsets = [0, 0], sizes = [1, 256], strides = [1, 1]} : vector<2x256xf32> to vector<1x256xf32>
    %108 = vector.extract_strided_slice %104 {offsets = [0, 0], sizes = [1, 256], strides = [1, 1]} : vector<4x256xf32> to vector<1x256xf32>
    %109 = arith.addf %107, %108 : vector<1x256xf32>
    %110 = vector.extract_strided_slice %106 {offsets = [1, 0], sizes = [1, 256], strides = [1, 1]} : vector<4x256xf32> to vector<1x256xf32>
    %111 = arith.addf %109, %110 : vector<1x256xf32>
    %112 = vector.extract_strided_slice %1 {offsets = [1, 0], sizes = [1, 256], strides = [1, 1]} : vector<2x256xf32> to vector<1x256xf32>
    %113 = vector.extract_strided_slice %104 {offsets = [2, 0], sizes = [1, 256], strides = [1, 1]} : vector<4x256xf32> to vector<1x256xf32>
    %114 = arith.addf %112, %113 : vector<1x256xf32>
    %115 = vector.extract_strided_slice %106 {offsets = [3, 0], sizes = [1, 256], strides = [1, 1]} : vector<4x256xf32> to vector<1x256xf32>
    %116 = arith.addf %114, %115 : vector<1x256xf32>
    %117 = tpu.concatenate %111, %116 in 0 : vector<1x256xf32>, vector<1x256xf32> -> vector<2x256xf32>
    %118 = vector.shape_cast %117 : vector<2x256xf32> to vector<1x2x256xf32>
    %c0_40 = arith.constant 0 : index
    %c0_41 = arith.constant 0 : index
    %c0_42 = arith.constant 0 : index
    %119 = vector.load %arg8[%c0_40, %c0_41, %c0_42] : memref<1x2x256xf32, #tpu.memory_space<vmem>>, vector<1x2x256xf32>
    tpu.vector_store %arg8[%c0_40, %c0_41, %c0_42], %118 {strides = array<i32>} : memref<1x2x256xf32, #tpu.memory_space<vmem>>, vector<1x2x256xf32>,
    return
  }
  func.func @transform_0(%arg0: i32) -> (i32, i32, i32) {
    %c0_i32 = arith.constant 0 : i32
    %c0_i32_0 = arith.constant 0 : i32
    %c0_i32_1 = arith.constant 0 : i32
    return %arg0, %c0_i32, %c0_i32_0 : i32, i32, i32
  }
  func.func @transform_1(%arg0: i32) -> (i32, i32) {
    %c0_i32 = arith.constant 0 : i32
    %c0_i32_0 = arith.constant 0 : i32
    %c0_i32_1 = arith.constant 0 : i32
    return %c0_i32, %c0_i32_0 : i32, i32
  }
  func.func @transform_2(%arg0: i32) -> (i32, i32) {
    %c0_i32 = arith.constant 0 : i32
    %c0_i32_0 = arith.constant 0 : i32
    %c0_i32_1 = arith.constant 0 : i32
    return %c0_i32, %c0_i32_0 : i32, i32
  }
  func.func @transform_3(%arg0: i32) -> (i32, i32, i32) {
    %c0_i32 = arith.constant 0 : i32
    %c0_i32_0 = arith.constant 0 : i32
    %c0_i32_1 = arith.constant 0 : i32
    %c0_i32_2 = arith.constant 0 : i32
    return %c0_i32, %c0_i32_0, %c0_i32_1 : i32, i32, i32
  }
  func.func @transform_4(%arg0: i32) -> (i32, i32, i32) {
    %c0_i32 = arith.constant 0 : i32
    %c0_i32_0 = arith.constant 0 : i32
    %c0_i32_1 = arith.constant 0 : i32
    %c0_i32_2 = arith.constant 0 : i32
    return %c0_i32, %c0_i32_0, %c0_i32_1 : i32, i32, i32
  }
  func.func @transform_5(%arg0: i32) -> (i32, i32) {
    %c0_i32 = arith.constant 0 : i32
    %c0_i32_0 = arith.constant 0 : i32
    %c0_i32_1 = arith.constant 0 : i32
    return %c0_i32, %c0_i32_0 : i32, i32
  }
  func.func @transform_6(%arg0: i32) -> (i32, i32) {
    %c0_i32 = arith.constant 0 : i32
    %c0_i32_0 = arith.constant 0 : i32
    %c0_i32_1 = arith.constant 0 : i32
    return %c0_i32, %c0_i32_0 : i32, i32
  }
  func.func @transform_7(%arg0: i32) -> (i32, i32, i32) {
    %c0_i32 = arith.constant 0 : i32
    %c0_i32_0 = arith.constant 0 : i32
    %c0_i32_1 = arith.constant 0 : i32
    return %arg0, %c0_i32, %c0_i32_0 : i32, i32, i32
  }
}

</mosaic_0001>

<llo_original>
// kernel: squeeze.3
$region0: #{squeeze.3}
  %s0 = inlined_call_operand.vmem [shape: f32[2,256], index: 0, kind: input, shape index: {}]
  %s1 = inlined_call_operand.hbm [shape: f32[2,16,16], index: 1, kind: output, shape index: {}]
  $region1: #{squeeze.3} parent=0
    #allocation0 [shape = 'u8[16384]{0}', space=vmem, size = 0x4000, scoped, tag = 'operand span for operand 1']
    #allocation1 [shape = 's32[1]{0}', space=sflag, size = 0x4, scoped, tag = 'scoped memory for squeeze.3']
    #allocation2 [shape = 'u8[8192]{0}', space=vmem, size = 0x2000, scoped, tag = 'scoped mem for input reshape']
    %2 = vsyncpa [#allocation1], 0
    %s4 = ssub.s32 4, 1
    %s5 = scalar_lea.vmem %s0, 2
    %v6 = vld [vmem:[%s5] sm:%s4]
    %s7 = scalar_lea.vmem [#allocation2], 8
    %8 = vst [vmem:[%s7] sm:%s4] %v6
    %v9 = vld [vmem:[%s0] sm:%s4]
    %10 = vst [vmem:[#allocation2] sm:%s4] %v9
    %v11 = vld [vmem:[#allocation2] sm:$0x3]
    %vm12 = vcmask 130048
    %13 = vst.msk [vmem:[#allocation0] ss:$16 sm:$0x3] %vm12, %v11
    %s14 = scalar_lea.vmem [#allocation2], 8
    %v15 = vld [vmem:[%s14] sm:$0x3]
    %vm16 = vcmask 130048
    %s17 = scalar_lea.vmem [#allocation0], 8
    %18 = vst.msk [vmem:[%s17] ss:$16 sm:$0x3] %vm16, %v15
    %v19 = vld.sshfl [vmem:[#allocation2] sm:$0xff pattern:$0x99999180]
    %20 = vrot.lane.b32.xlu0 %v19, 112
    %v21 = vpop.permute.xlu0 %20
    %vm22 = vcmask 130048
    %s23 = scalar_lea.vmem [#allocation0], 1
    %24 = vst.msk [vmem:[%s23] ss:$8 sm:$0xf] %vm22, %v21
    %v25 = vld.sshfl [vmem:[#allocation2] sm:$0xff pattern:$0x99999180]
    %26 = vrot.lane.b32.xlu0 %v25, 96
    %v27 = vpop.permute.xlu0 %26
    %vm28 = vcmask 130048
    %s29 = scalar_lea.vmem [#allocation0], 2
    %30 = vst.msk [vmem:[%s29] ss:$8 sm:$0xf] %vm28, %v27
    %v31 = vld.sshfl [vmem:[#allocation2] sm:$0xff pattern:$0x99999180]
    %32 = vrot.lane.b32.xlu0 %v31, 80
    %v33 = vpop.permute.xlu0 %32
    %vm34 = vcmask 130048
    %s35 = scalar_lea.vmem [#allocation0], 3
    %36 = vst.msk [vmem:[%s35] ss:$8 sm:$0xf] %vm34, %v33
    %v37 = vld.sshfl [vmem:[#allocation2] sm:$0xff pattern:$0x99999180]
    %38 = vrot.lane.b32.xlu0 %v37, 64
    %v39 = vpop.permute.xlu0 %38
    %vm40 = vcmask 130048
    %s41 = scalar_lea.vmem [#allocation0], 4
    %42 = vst.msk [vmem:[%s41] ss:$8 sm:$0xf] %vm40, %v39
    %v43 = vld.sshfl [vmem:[#allocation2] sm:$0xff pattern:$0x99999180]
    %44 = vrot.lane.b32.xlu0 %v43, 48
    %v45 = vpop.permute.xlu0 %44
    %vm46 = vcmask 130048
    %s47 = scalar_lea.vmem [#allocation0], 5
    %48 = vst.msk [vmem:[%s47] ss:$8 sm:$0xf] %vm46, %v45
    %v49 = vld.sshfl [vmem:[#allocation2] sm:$0xff pattern:$0x99999180]
    %50 = vrot.lane.b32.xlu0 %v49, 32
    %v51 = vpop.permute.xlu0 %50
    %vm52 = vcmask 130048
    %s53 = scalar_lea.vmem [#allocation0], 6
    %54 = vst.msk [vmem:[%s53] ss:$8 sm:$0xf] %vm52, %v51
    %v55 = vld.sshfl [vmem:[#allocation2] sm:$0xff pattern:$0x99999180]
    %56 = vrot.lane.b32.xlu0 %v55, 16
    %v57 = vpop.permute.xlu0 %56
    %vm58 = vcmask 130048
    %s59 = scalar_lea.vmem [#allocation0], 7
    %60 = vst.msk [vmem:[%s59] ss:$8 sm:$0xf] %vm58, %v57
    %62 = vsyncadd [#allocation1], 0
    %s64 = sshll.u32 [#allocation0], 4
    %s65 = int_to_ptr.vmem [resolvable:$true] %s64
    %s66 = sshll.u32 %s1, 4
    %s67 = int_to_ptr.hbm [resolvable:$true] %s66
    %69 = dma.vmem_to_hbm [thread:$0]  %s65, 512, %s67, [#allocation1]
    %71 = dma.done [#allocation1], 512
    %72 = vsyncpa [#allocation1], 1

// kernel: dilated_resnet_forward.1
$region0: #{dilated_resnet_forward.1}
  #allocation0 [shape = 'u32[]', space=smem, size = 0x4, offset = 0x4, fixed_abs, tag = 'smem constant byte address 0x4 - core index']
  #allocation1 [shape = 'u32[72,128]{1,0:T(1,128)}', space=vmem, size = 0x9000, scoped, tag = 'internal scratch']
  %s0 = inlined_call_operand.vmem [shape: f32[2,2,256], index: 0, kind: input, shape index: {}]
  %s1 = inlined_call_operand.vmem [shape: bf16[16,18], index: 1, kind: input, shape index: {}]
  %s2 = inlined_call_operand.vmem [shape: f32[16,1], index: 2, kind: input, shape index: {}]
  %s3 = inlined_call_operand.vmem [shape: bf16[14,16,144], index: 3, kind: input, shape index: {}]
  %s4 = inlined_call_operand.vmem [shape: f32[14,16,1], index: 4, kind: input, shape index: {}]
  %s5 = inlined_call_operand.vmem [shape: bf16[4,144], index: 5, kind: input, shape index: {}]
  %s6 = inlined_call_operand.vmem [shape: f32[4,1], index: 6, kind: input, shape index: {}]
  %s7 = inlined_call_operand.vmem [shape: f32[2,2,256], index: 7, kind: output, shape index: {}]
  %s8 = sld [smem:[#allocation0]]
  $region68: #{dilated_resnet_forward.1} parent=0
    _
  %s10 = ssub.s32 1, %s8
  %s11 = scalar_select 0, %s10, %s8
  loop: start=0, step=1, limit=4
  $region2: #{dilated_resnet_forward.1} parent=0 // loop_pre_header
    _
  $region3: #{dilated_resnet_forward.1} parent=0 // loop_header
    %s13 = sphi 0, %s17
    %p14 = scmp.ge.s32.totalorder %s13, 4
    %s23 = sphi 0, %s25
    %s26 = sphi 0, %s23
    %s27 = sphi 0, %s26
    %s43 = sphi 0, %s27
    %s47 = sphi 0, %s47
    %s49 = sphi 0, %s47
    %s50 = sphi 0, %s49
    %s64 = sphi 0, %s50
    %s68 = sphi 0, %s68
    %s70 = sphi 0, %s68
    %s71 = sphi 0, %s70
    %s85 = sphi 0, %s71
    %s89 = sphi 0, %s89
    %s91 = sphi 0, %s89
    %s92 = sphi 0, %s91
    %s106 = sphi 0, %s92
    %s110 = sphi 0, %s110
    %s112 = sphi 0, %s110
    %s113 = sphi 0, %s112
    %s127 = sphi 0, %s113
    %s131 = sphi 0, %s131
    %s133 = sphi 0, %s131
    %s134 = sphi 0, %s133
    %s148 = sphi 0, %s134
    %s152 = sphi 0, %s152
    %s154 = sphi 0, %s152
    %s155 = sphi 0, %s154
    %s169 = sphi 0, %s155
    %s175 = sphi 0, %s177
    %s178 = sphi 0, %s175
    %s179 = sphi 0, %s178
    %s195 = sphi 0, %s179
  $region4: #{dilated_resnet_forward.1} parent=0 // loop_header_branch
    %16 = sbr.rel (%p14) target = $region8
  $region5: #{dilated_resnet_forward.1} parent=0 // loop_body
    %s18 = ssub.s32 %s13, 1
    %s19 = ssub.s32 %s13, 2
    %s20 = sadd.s32 %s13, 1
    %s21 = ssub.s32 %s13, %s20
    %p22 = scmp.eq.s32.totalorder %s21, 0
    %s24 = sadd.s32 %s23, 1
    %s25 = scalar_select %p22, %s23, %s24
    %p28 = pneg %p22
    %p29 = scmp.eq.s32.totalorder %s13, 1
    %p30 = por %p28, %p29
    %p31 = scmp.ne.s32.totalorder %s23, %s26
    %p32 = scmp.eq.s32.totalorder %s13, 0
    %p33 = por %p31, %p32
    %p34 = scmp.ne.s32.totalorder %s23, %s26
    %p35 = scmp.eq.s32.totalorder %s18, 1
    %p36 = por %p34, %p35
    %p37 = scmp.ne.s32.totalorder %s26, %s27
    %p38 = scmp.eq.s32.totalorder %s18, 0
    %p39 = por %p37, %p38
    %p40 = scmp.ne.s32.totalorder %s26, %s27
    %p41 = scmp.eq.s32.totalorder %s19, 1
    %p42 = por %p40, %p41
    %p44 = scmp.ne.s32.totalorder %s27, %s43
    %p45 = scmp.eq.s32.totalorder %s19, 0
    %p46 = por %p44, %p45
    %s48 = sadd.s32 %s47, 1
    %p51 = scmp.eq.s32.totalorder %s13, 1
    %p52 = scmp.ne.s32.totalorder %s47, %s49
    %p53 = scmp.eq.s32.totalorder %s13, 0
    %p54 = por %p52, %p53
    %p55 = scmp.ne.s32.totalorder %s47, %s49
    %p56 = scmp.eq.s32.totalorder %s18, 1
    %p57 = por %p55, %p56
    %p58 = scmp.ne.s32.totalorder %s49, %s50
    %p59 = scmp.eq.s32.totalorder %s18, 0
    %p60 = por %p58, %p59
    %p61 = scmp.ne.s32.totalorder %s49, %s50
    %p62 = scmp.eq.s32.totalorder %s19, 1
    %p63 = por %p61, %p62
    %p65 = scmp.ne.s32.totalorder %s50, %s64
    %p66 = scmp.eq.s32.totalorder %s19, 0
    %p67 = por %p65, %p66
    %s69 = sadd.s32 %s68, 1
    %p72 = scmp.eq.s32.totalorder %s13, 1
    %p73 = scmp.ne.s32.totalorder %s68, %s70
    %p74 = scmp.eq.s32.totalorder %s13, 0
    %p75 = por %p73, %p74
    %p76 = scmp.ne.s32.totalorder %s68, %s70
    %p77 = scmp.eq.s32.totalorder %s18, 1
    %p78 = por %p76, %p77
    %p79 = scmp.ne.s32.totalorder %s70, %s71
    %p80 = scmp.eq.s32.totalorder %s18, 0
    %p81 = por %p79, %p80
    %p82 = scmp.ne.s32.totalorder %s70, %s71
    %p83 = scmp.eq.s32.totalorder %s19, 1
    %p84 = por %p82, %p83
    %p86 = scmp.ne.s32.totalorder %s71, %s85
    %p87 = scmp.eq.s32.totalorder %s19, 0
    %p88 = por %p86, %p87
    %s90 = sadd.s32 %s89, 1
    %p93 = scmp.eq.s32.totalorder %s13, 1
    %p94 = scmp.ne.s32.totalorder %s89, %s91
    %p95 = scmp.eq.s32.totalorder %s13, 0
    %p96 = por %p94, %p95
    %p97 = scmp.ne.s32.totalorder %s89, %s91
    %p98 = scmp.eq.s32.totalorder %s18, 1
    %p99 = por %p97, %p98
    %p100 = scmp.ne.s32.totalorder %s91, %s92
    %p101 = scmp.eq.s32.totalorder %s18, 0
    %p102 = por %p100, %p101
    %p103 = scmp.ne.s32.totalorder %s91, %s92
    %p104 = scmp.eq.s32.totalorder %s19, 1
    %p105 = por %p103, %p104
    %p107 = scmp.ne.s32.totalorder %s92, %s106
    %p108 = scmp.eq.s32.totalorder %s19, 0
    %p109 = por %p107, %p108
    %s111 = sadd.s32 %s110, 1
    %p114 = scmp.eq.s32.totalorder %s13, 1
    %p115 = scmp.ne.s32.totalorder %s110, %s112
    %p116 = scmp.eq.s32.totalorder %s13, 0
    %p117 = por %p115, %p116
    %p118 = scmp.ne.s32.totalorder %s110, %s112
    %p119 = scmp.eq.s32.totalorder %s18, 1
    %p120 = por %p118, %p119
    %p121 = scmp.ne.s32.totalorder %s112, %s113
    %p122 = scmp.eq.s32.totalorder %s18, 0
    %p123 = por %p121, %p122
    %p124 = scmp.ne.s32.totalorder %s112, %s113
    %p125 = scmp.eq.s32.totalorder %s19, 1
    %p126 = por %p124, %p125
    %p128 = scmp.ne.s32.totalorder %s113, %s127
    %p129 = scmp.eq.s32.totalorder %s19, 0
    %p130 = por %p128, %p129
    %s132 = sadd.s32 %s131, 1
    %p135 = scmp.eq.s32.totalorder %s13, 1
    %p136 = scmp.ne.s32.totalorder %s131, %s133
    %p137 = scmp.eq.s32.totalorder %s13, 0
    %p138 = por %p136, %p137
    %p139 = scmp.ne.s32.totalorder %s131, %s133
    %p140 = scmp.eq.s32.totalorder %s18, 1
    %p141 = por %p139, %p140
    %p142 = scmp.ne.s32.totalorder %s133, %s134
    %p143 = scmp.eq.s32.totalorder %s18, 0
    %p144 = por %p142, %p143
    %p145 = scmp.ne.s32.totalorder %s133, %s134
    %p146 = scmp.eq.s32.totalorder %s19, 1
    %p147 = por %p145, %p146
    %p149 = scmp.ne.s32.totalorder %s134, %s148
    %p150 = scmp.eq.s32.totalorder %s19, 0
    %p151 = por %p149, %p150
    %s153 = sadd.s32 %s152, 1
    %p156 = scmp.eq.s32.totalorder %s13, 1
    %p157 = scmp.ne.s32.totalorder %s152, %s154
    %p158 = scmp.eq.s32.totalorder %s13, 0
    %p159 = por %p157, %p158
    %p160 = scmp.ne.s32.totalorder %s152, %s154
    %p161 = scmp.eq.s32.totalorder %s18, 1
    %p162 = por %p160, %p161
    %p163 = scmp.ne.s32.totalorder %s154, %s155
    %p164 = scmp.eq.s32.totalorder %s18, 0
    %p165 = por %p163, %p164
    %p166 = scmp.ne.s32.totalorder %s154, %s155
    %p167 = scmp.eq.s32.totalorder %s19, 1
    %p168 = por %p166, %p167
    %p170 = scmp.ne.s32.totalorder %s155, %s169
    %p171 = scmp.eq.s32.totalorder %s19, 0
    %p172 = por %p170, %p171
    %s173 = ssub.s32 %s13, %s20
    %p174 = scmp.eq.s32.totalorder %s173, 0
    %s176 = sadd.s32 %s175, 1
    %s177 = scalar_select %p174, %s175, %s176
    %p180 = pneg %p174
    %p181 = scmp.eq.s32.totalorder %s13, 1
    %p182 = por %p180, %p181
    %p183 = scmp.ne.s32.totalorder %s175, %s178
    %p184 = scmp.eq.s32.totalorder %s13, 0
    %p185 = por %p183, %p184
    %p186 = scmp.ne.s32.totalorder %s175, %s178
    %p187 = scmp.eq.s32.totalorder %s18, 1
    %p188 = por %p186, %p187
    %p189 = scmp.ne.s32.totalorder %s178, %s179
    %p190 = scmp.eq.s32.totalorder %s18, 0
    %p191 = por %p189, %p190
    %p192 = scmp.ne.s32.totalorder %s178, %s179
    %p193 = scmp.eq.s32.totalorder %s19, 1
    %p194 = por %p192, %p193
    %p196 = scmp.ne.s32.totalorder %s179, %s195
    %p197 = scmp.eq.s32.totalorder %s19, 0
    %p198 = por %p196, %p197
    %p199 = scmp.le.s32.totalorder 1, %s13
    %p200 = scmp.lt.s32.totalorder %s13, 3
    %p201 = pnand %p199, %p200
    %p202 = pneg %p201
    // Predicated region
    $region9: #{dilated_resnet_forward.1} parent=5 // pred_check
      _
    $region10: #{dilated_resnet_forward.1} parent=5 // pred_check_branch
      %204 = sbr.rel (%p201) target = $region12
    $region11: #{dilated_resnet_forward.1} parent=5 // pred_region
      %s205 = ssub.s32 %s13, 1
      // Predicated region
      $region13: #{dilated_resnet_forward.1} parent=11 // pred_check
        %p206 = pneg %p60
      $region14: #{dilated_resnet_forward.1} parent=11 // pred_check_branch
        %208 = sbr.rel (%p206) target = $region16
      $region15: #{dilated_resnet_forward.1} parent=11 // pred_region
        _
      $region16: #{dilated_resnet_forward.1} parent=11 // pred_fallthru
        _
      // Predicated region
      $region17: #{dilated_resnet_forward.1} parent=11 // pred_check
        %p209 = pneg %p81
      $region18: #{dilated_resnet_forward.1} parent=11 // pred_check_branch
        %211 = sbr.rel (%p209) target = $region20
      $region19: #{dilated_resnet_forward.1} parent=11 // pred_region
        _
      $region20: #{dilated_resnet_forward.1} parent=11 // pred_fallthru
        _
      // Predicated region
      $region21: #{dilated_resnet_forward.1} parent=11 // pred_check
        %p212 = pneg %p102
      $region22: #{dilated_resnet_forward.1} parent=11 // pred_check_branch
        %214 = sbr.rel (%p212) target = $region24
      $region23: #{dilated_resnet_forward.1} parent=11 // pred_region
        _
      $region24: #{dilated_resnet_forward.1} parent=11 // pred_fallthru
        _
      // Predicated region
      $region25: #{dilated_resnet_forward.1} parent=11 // pred_check
        %p215 = pneg %p123
      $region26: #{dilated_resnet_forward.1} parent=11 // pred_check_branch
        %217 = sbr.rel (%p215) target = $region28
      $region27: #{dilated_resnet_forward.1} parent=11 // pred_region
        _
      $region28: #{dilated_resnet_forward.1} parent=11 // pred_fallthru
        _
      // Predicated region
      $region29: #{dilated_resnet_forward.1} parent=11 // pred_check
        %p218 = pneg %p144
      $region30: #{dilated_resnet_forward.1} parent=11 // pred_check_branch
        %220 = sbr.rel (%p218) target = $region32
      $region31: #{dilated_resnet_forward.1} parent=11 // pred_region
        _
      $region32: #{dilated_resnet_forward.1} parent=11 // pred_fallthru
        _
      // Predicated region
      $region33: #{dilated_resnet_forward.1} parent=11 // pred_check
        %p221 = pneg %p165
      $region34: #{dilated_resnet_forward.1} parent=11 // pred_check_branch
        %223 = sbr.rel (%p221) target = $region36
      $region35: #{dilated_resnet_forward.1} parent=11 // pred_region
        _
      $region36: #{dilated_resnet_forward.1} parent=11 // pred_fallthru
        _
    $region12: #{dilated_resnet_forward.1} parent=5 // pred_fallthru
      _
    %p224 = scmp.lt.s32.totalorder %s13, 2
    // Predicated region
    $region37: #{dilated_resnet_forward.1} parent=5 // pred_check
      %p225 = pneg %p224
    $region38: #{dilated_resnet_forward.1} parent=5 // pred_check_branch
      %227 = sbr.rel (%p225) target = $region40
    $region39: #{dilated_resnet_forward.1} parent=5 // pred_region
      // Predicated region
      $region41: #{dilated_resnet_forward.1} parent=39 // pred_check
        %p228 = pneg %p33
      $region42: #{dilated_resnet_forward.1} parent=39 // pred_check_branch
        %230 = sbr.rel (%p228) target = $region44
      $region43: #{dilated_resnet_forward.1} parent=39 // pred_region
        %p231 = scmp.lt.s32.totalorder %s13, 1
        %s232 = scalar_select %p231, %s13, 1
        %s233 = smul.addr %s232, 2
        %s234 = smul.addr %s233, 2
        %s235 = scalar_lea.vmem %s0, %s234
      $region44: #{dilated_resnet_forward.1} parent=39 // pred_fallthru
        _
    $region40: #{dilated_resnet_forward.1} parent=5 // pred_fallthru
      _
    %p236 = scmp.le.s32.totalorder 1, %s13
    %p237 = scmp.lt.s32.totalorder %s13, 3
    %p238 = pnand %p236, %p237
    %p239 = pneg %p238
    // Predicated region
    $region45: #{dilated_resnet_forward.1} parent=5 // pred_check
      _
    $region46: #{dilated_resnet_forward.1} parent=5 // pred_check_branch
      %241 = sbr.rel (%p238) target = $region48
    $region47: #{dilated_resnet_forward.1} parent=5 // pred_region
      %s242 = ssub.s32 %s13, 1
      %p243 = scmp.lt.s32.totalorder %s18, 1
      %s244 = scalar_select %p243, %s18, 1
      %s245 = smul.addr %s244, 2
      %s246 = smul.addr %s245, 2
      %s247 = scalar_lea.vmem %s0, %s246
      %p248 = pneg %p39
      %p249 = pneg %p36
      %p250 = pneg %p60
      %p251 = pneg %p57
      %p252 = pneg %p81
      %p253 = pneg %p78
      %p254 = pneg %p102
      %p255 = pneg %p99
      %p256 = pneg %p123
      %p257 = pneg %p120
      %p258 = pneg %p144
      %p259 = pneg %p141
      %p260 = pneg %p165
      %p261 = pneg %p162
      %p262 = pneg %p191
      %p263 = pneg %p188
      %p264 = scmp.lt.s32.totalorder %s18, 1
      %s265 = scalar_select %p264, %s18, 1
      %s266 = smul.addr %s265, 2
      %s267 = smul.addr %s266, 2
      %s268 = scalar_lea.vmem %s7, %s267
      %p269 = scmp.lt.s32.totalorder %s18, 1
      %s270 = scalar_select %p269, %s18, 1
      %s271 = smul.addr %s270, 2
      %s272 = smul.addr %s271, 2
      %s273 = scalar_lea.vmem %s0, %s272
      %p274 = scmp.lt.s32.totalorder %s18, 1
      %s275 = scalar_select %p274, %s18, 1
      %s276 = smul.addr %s275, 2
      %s277 = smul.addr %s276, 2
      %s278 = scalar_lea.vmem %s7, %s277
      %v280 = vld [vmem:[%s273] sm:$0xf]
      %v281 = vlaneseq
      %v282 = vand.u32 %v281, 127
      %v283 = vadd.s32 %v282, 128
      %vm284 = vcmp.lt.s32.totalorder %v282, 0
      %v285 = vsub.s32 0, %v282
      %v286 = vsel %vm284, %v285, %v282
      %v287 = vshrl.u32 %v286, 4
      %v288 = vand.u32 %v286, 15
      %v289 = vsub.s32 0, %v288
      %v290 = vsel %vm284, %v289, %v288
      %vm291 = vcmp.lt.s32.totalorder %v283, 0
      %v292 = vsub.s32 0, %v283
      %v293 = vsel %vm291, %v292, %v283
      %v294 = vshrl.u32 %v293, 4
      %v295 = vand.u32 %v293, 15
      %v296 = vsub.s32 0, %v295
      %v297 = vsel %vm291, %v296, %v295
      %vm298 = vcmp.ne.s32.totalorder %v290, 0
      %vm299 = vcmp.ne.s32.totalorder %v297, 0
      %vm300 = vcmp.lt.s32.totalorder %v290, 0
      %vm301 = vcmp.lt.s32.totalorder %v297, 0
      %vm302 = vmand %vm300, %vm298
      %vm303 = vmand %vm301, %vm299
      %v304 = vadd.s32 %v290, 16
      %v305 = vadd.s32 %v297, 16
      %v306 = vsel %vm302, %v304, %v290
      %v307 = vsel %vm303, %v305, %v297
      %vm308 = vcmp.ge.s32.totalorder %v306, 1
      %vm309 = vcmp.ge.s32.totalorder %v307, 1
      %vm310 = vcmp.lt.s32.totalorder %v306, 15
      %vm311 = vcmp.lt.s32.totalorder %v307, 15
      %vm312 = vcmp.ge.s32.totalorder %v306, 2
      %vm313 = vcmp.ge.s32.totalorder %v307, 2
      %vm314 = vcmp.lt.s32.totalorder %v306, 14
      %vm315 = vcmp.lt.s32.totalorder %v307, 14
      %vm316 = vcmp.ge.s32.totalorder %v306, 4
      %vm317 = vcmp.ge.s32.totalorder %v307, 4
      %vm318 = vcmp.lt.s32.totalorder %v306, 12
      %vm319 = vcmp.lt.s32.totalorder %v307, 12
      %vm320 = vcmp.ge.s32.totalorder %v306, 8
      %vm321 = vcmp.ge.s32.totalorder %v307, 8
      %vm322 = vcmp.lt.s32.totalorder %v306, 8
      %vm323 = vcmp.lt.s32.totalorder %v307, 8
      %v324 = vld [vmem:[%s1] sm:$0xf]
      %v325 = vld [vmem:[%s1 + $0x4] sm:$0xf]
      %v326 = vld [vmem:[%s2] sm:$0xff]
      %v327 = vld [vmem:[%s2 + $0x8] sm:$0xff]
      %329 = vst [vmem:[#allocation1] ss:$4 sm:$0xff] %v280
      %v330 = vld.sshfl [vmem:[#allocation1] sm:$0xff pattern:$0x73625140]
      %v331 = vld.sshfl [vmem:[#allocation1 + $0x8] sm:$0xff pattern:$0x73625140]
      %334 = vrot.lane.b32.xlu0 %v330, 1
      %v335 = vpop.permute.xlu0 %334
      %336 = vrot.lane.b32.xlu0 %v331, 1
      %v337 = vpop.permute.xlu0 %336
      %vm338 = vcmp.lt.s32.totalorder %v282, 1
      %v339 = vsel %vm338, %v335, %v337
      %v340 = vsel %vm338, %v337, %v335
      %341 = vst [vmem:[#allocation1] ss:$4 sm:$0xff] %v280
      %v342 = vld.sshfl [vmem:[#allocation1] sm:$0xff pattern:$0x73625140]
      %v343 = vld.sshfl [vmem:[#allocation1 + $0x8] sm:$0xff pattern:$0x73625140]
      %346 = vrot.lane.b32.xlu0 %v342, 113
      %v347 = vpop.permute.xlu0 %346
      %348 = vrot.lane.b32.xlu0 %v343, 113
      %v349 = vpop.permute.xlu0 %348
      %vm350 = vcmp.lt.s32.totalorder %v282, 113
      %v351 = vsel %vm350, %v347, %v349
      %v352 = vsel %vm350, %v349, %v347
      %v353 = vsel %vm308, 1, 0
      %v354 = vsel %vm309, 1, 0
      %vm355 = vcmp.eq.s32.totalorder %v353, 1
      %vm356 = vcmp.eq.s32.totalorder %v354, 1
      %v357 = vsel %vm355, %v340, %v351
      %v358 = vsel %vm356, %v339, %v352
      %359 = vst [vmem:[#allocation1] ss:$4 sm:$0xff] %v280
      %v360 = vld.sshfl [vmem:[#allocation1] sm:$0xff pattern:$0x73625140]
      %v361 = vld.sshfl [vmem:[#allocation1 + $0x8] sm:$0xff pattern:$0x73625140]
      %364 = vrot.lane.b32.xlu0 %v360, 127
      %v365 = vpop.permute.xlu0 %364
      %366 = vrot.lane.b32.xlu0 %v361, 127
      %v367 = vpop.permute.xlu0 %366
      %vm368 = vcmp.lt.s32.totalorder %v282, 127
      %v369 = vsel %vm368, %v365, %v367
      %v370 = vsel %vm368, %v367, %v365
      %371 = vst [vmem:[#allocation1] ss:$4 sm:$0xff] %v280
      %v372 = vld.sshfl [vmem:[#allocation1] sm:$0xff pattern:$0x73625140]
      %v373 = vld.sshfl [vmem:[#allocation1 + $0x8] sm:$0xff pattern:$0x73625140]
      %376 = vrot.lane.b32.xlu0 %v372, 15
      %v377 = vpop.permute.xlu0 %376
      %378 = vrot.lane.b32.xlu0 %v373, 15
      %v379 = vpop.permute.xlu0 %378
      %vm380 = vcmp.lt.s32.totalorder %v282, 15
      %v381 = vsel %vm380, %v377, %v379
      %v382 = vsel %vm380, %v379, %v377
      %v383 = vsel %vm310, 1, 0
      %v384 = vsel %vm311, 1, 0
      %vm385 = vcmp.eq.s32.totalorder %v383, 1
      %vm386 = vcmp.eq.s32.totalorder %v384, 1
      %v387 = vsel %vm385, %v369, %v382
      %v388 = vsel %vm386, %v370, %v381
      %389 = vrot.lane.b32.xlu0 %v357, 16
      %v390 = vpop.permute.xlu0 %389
      %391 = vrot.lane.b32.xlu0 %v358, 16
      %v392 = vpop.permute.xlu0 %391
      %vm393 = vcmp.lt.s32.totalorder %v282, 16
      %v394 = vsel %vm393, %v390, %v392
      %v395 = vsel %vm393, %v392, %v390
      %v396 = vpack.c.bf16 %v394, %v395
      %397 = vst [vmem:[#allocation1] ss:$4 sm:$0xff] %v280
      %v398 = vld.sshfl [vmem:[#allocation1] sm:$0xff pattern:$0x73625140]
      %v399 = vld.sshfl [vmem:[#allocation1 + $0x8] sm:$0xff pattern:$0x73625140]
      %402 = vrot.lane.b32.xlu0 %v398, 16
      %v403 = vpop.permute.xlu0 %402
      %404 = vrot.lane.b32.xlu0 %v399, 16
      %v405 = vpop.permute.xlu0 %404
      %v406 = vsel %vm393, %v403, %v405
      %v407 = vsel %vm393, %v405, %v403
      %v408 = vpack.c.bf16 %v406, %v407
      %409 = vrot.lane.b32.xlu0 %v387, 16
      %v410 = vpop.permute.xlu0 %409
      %411 = vrot.lane.b32.xlu0 %v388, 16
      %v412 = vpop.permute.xlu0 %411
      %v413 = vsel %vm393, %v410, %v412
      %v414 = vsel %vm393, %v412, %v410
      %v415 = vpack.c.bf16 %v413, %v414
      %v416 = vpack.c.bf16 %v358, %v357
      %417 = vst [vmem:[#allocation1] ss:$4 sm:$0xff] %v280
      %v418 = vld.sshfl [vmem:[#allocation1] sm:$0xff pattern:$0x73625140]
      %v419 = vld.sshfl [vmem:[#allocation1 + $0x8] sm:$0xff pattern:$0x73625140]
      %v422 = vpack.c.bf16 %v419, %v418
      %v423 = vpack.c.bf16 %v388, %v387
      %424 = vrot.lane.b32.xlu0 %v357, 112
      %v425 = vpop.permute.xlu0 %424
      %426 = vrot.lane.b32.xlu0 %v358, 112
      %v427 = vpop.permute.xlu0 %426
      %vm428 = vcmp.lt.s32.totalorder %v282, 112
      %v429 = vsel %vm428, %v425, %v427
      %v430 = vsel %vm428, %v427, %v425
      %v431 = vpack.c.bf16 %v430, %v429
      %432 = vst [vmem:[#allocation1] ss:$4 sm:$0xff] %v280
      %v433 = vld.sshfl [vmem:[#allocation1] sm:$0xff pattern:$0x73625140]
      %v434 = vld.sshfl [vmem:[#allocation1 + $0x8] sm:$0xff pattern:$0x73625140]
      %437 = vrot.lane.b32.xlu0 %v433, 112
      %v438 = vpop.permute.xlu0 %437
      %439 = vrot.lane.b32.xlu0 %v434, 112
      %v440 = vpop.permute.xlu0 %439
      %v441 = vsel %vm428, %v438, %v440
      %v442 = vsel %vm428, %v440, %v438
      %v443 = vpack.c.bf16 %v442, %v441
      %444 = vrot.lane.b32.xlu0 %v387, 112
      %v445 = vpop.permute.xlu0 %444
      %446 = vrot.lane.b32.xlu0 %v388, 112
      %v447 = vpop.permute.xlu0 %446
      %v448 = vsel %vm428, %v445, %v447
      %v449 = vsel %vm428, %v447, %v445
      %v450 = vpack.c.bf16 %v449, %v448
      %v452 = vunpack.c.l.b16 %v396
      %v453 = vunpack.c.h.b16 %v396
      %v454 = vpack.c.b16 %v452, %v452
      %v455 = vpack.c.b16 %v453, %v453
      %v457 = vunpack.c.l.b16 %v408
      %v458 = vunpack.c.h.b16 %v408
      %v459 = vpack.c.b16 %v457, %v457
      %v460 = vpack.c.b16 %v458, %v458
      %v461 = vrot.slane %v459, 7
      %v462 = vrot.slane %v460, 7
      %v464 = vunpack.c.l.b16 %v415
      %v465 = vunpack.c.h.b16 %v415
      %v466 = vpack.c.b16 %v464, %v464
      %v467 = vpack.c.b16 %v465, %v465
      %v468 = vrot.slane %v466, 6
      %v469 = vrot.slane %v467, 6
      %v471 = vunpack.c.l.b16 %v416
      %v472 = vunpack.c.h.b16 %v416
      %v473 = vpack.c.b16 %v471, %v471
      %v474 = vpack.c.b16 %v472, %v472
      %v475 = vrot.slane %v473, 5
      %v476 = vrot.slane %v474, 5
      %v478 = vunpack.c.l.b16 %v422
      %v479 = vunpack.c.h.b16 %v422
      %v480 = vpack.c.b16 %v478, %v478
      %v481 = vpack.c.b16 %v479, %v479
      %v483 = vunpack.c.l.b16 %v423
      %v484 = vunpack.c.h.b16 %v423
      %v485 = vpack.c.b16 %v483, %v483
      %v486 = vpack.c.b16 %v484, %v484
      %v487 = vrot.slane %v485, 3
      %v488 = vrot.slane %v486, 3
      %v490 = vunpack.c.l.b16 %v431
      %v491 = vunpack.c.h.b16 %v431
      %v492 = vpack.c.b16 %v490, %v490
      %v493 = vpack.c.b16 %v491, %v491
      %v494 = vrot.slane %v492, 2
      %v495 = vrot.slane %v493, 2
      %v497 = vunpack.c.l.b16 %v443
      %v498 = vunpack.c.h.b16 %v443
      %v499 = vpack.c.b16 %v497, %v497
      %v500 = vpack.c.b16 %v498, %v498
      %v501 = vrot.slane %v499, 1
      %v502 = vrot.slane %v500, 1
      %v504 = vunpack.c.l.b16 %v450
      %v505 = vunpack.c.h.b16 %v450
      %v506 = vpack.c.b16 %v504, %v504
      %v507 = vpack.c.b16 %v505, %v505
      %vm508 = vcmask 1040384
      %v511 = vsel %vm508, %v454, %v461
      %v514 = vsel %vm508, %v455, %v462
      %vm515 = vcmask 1041408
      %v517 = vsel %vm515, %v511, %v468
      %v519 = vsel %vm515, %v514, %v469
      %vm520 = vcmask 1042432
      %v522 = vsel %vm520, %v517, %v475
      %v524 = vsel %vm520, %v519, %v476
      %vm525 = vcmask 1043456
      %v527 = vsel %vm525, %v522, %v480
      %v529 = vsel %vm525, %v524, %v481
      %vm530 = vcmask 1044480
      %v532 = vsel %vm530, %v527, %v487
      %v534 = vsel %vm530, %v529, %v488
      %vm535 = vcmask 1045504
      %v537 = vsel %vm535, %v532, %v494
      %v539 = vsel %vm535, %v534, %v495
      %vm540 = vcmask 1046528
      %v542 = vsel %vm540, %v537, %v501
      %v545 = vsel %vm540, %v539, %v502
      %548 = vset.pattern.permute.xlu0 0
      %549 = vperm.xlu0 %548, %v326
      %v550 = vpop.permute.xlu0 %549
      %553 = vset.pattern.permute.xlu0 0
      %554 = vperm.xlu0 %553, %v327
      %v555 = vpop.permute.xlu0 %554
      %v559 = vunpack.c.l.b16 %v324
      %v560 = vunpack.c.l.b16 %v325
      %v561 = vpack.c.b16 %v560, %v559
      %vm562 = vcmask 146432
      %v564 = vsel %vm562, %v561, 0
      %v567 = vsel %vm508, %v506, 0
      %v570 = vsel %vm508, %v507, 0
      %572 = vmatpush.bf16.msra.mxu0 0
      %573 = vmatpush.bf16.msra.mxu0 0
      %574 = vmatpush.bf16.msra.mxu0 0
      %575 = vmatpush.bf16.msra.mxu0 0
      %576 = vmatpush.bf16.msra.mxu0 0
      %577 = vmatpush.bf16.msra.mxu0 0
      %578 = vmatpush.bf16.msra.mxu0 %v567
      %579 = vmatpush.bf16.msra.mxu0 %v542
      %580 = vmatmul.bf16.gmra.mxu0 %v564
      %v581 = vpop.f32.mrf.mxu0
      %v582 = vadd.f32 %v550, %v581
      %v583 = vpop.f32.mrf.mxu0
      %v584 = vadd.f32 %v555, %v583
      %585 = vdwg.mxu0
      %586 = vmatpush.bf16.msra.mxu0 0
      %587 = vmatpush.bf16.msra.mxu0 0
      %588 = vmatpush.bf16.msra.mxu0 0
      %589 = vmatpush.bf16.msra.mxu0 0
      %590 = vmatpush.bf16.msra.mxu0 0
      %591 = vmatpush.bf16.msra.mxu0 0
      %592 = vmatpush.bf16.msra.mxu0 %v570
      %593 = vmatpush.bf16.msra.mxu0 %v545
      %594 = vmatmul.bf16.gmra.mxu0 %v564
      %v595 = vpop.f32.mrf.mxu0
      %v596 = vadd.f32 %v550, %v595
      %v597 = vpop.f32.mrf.mxu0
      %v598 = vadd.f32 %v555, %v597
      %599 = vdwg.mxu0
      loop: start=0, step=1, limit=2
      $region49: #{dilated_resnet_forward.1} parent=47 // loop_pre_header
        _
      $region50: #{dilated_resnet_forward.1} parent=47 // loop_header
        %s601 = sphi 0, %s605
        %p602 = scmp.ge.s32.totalorder %s601, 2
        %v606 = vphi %v582, %v2740
        %v607 = vphi %v596, %v2741
        %v608 = vphi %v584, %v2742
        %v609 = vphi %v598, %v2743
      $region51: #{dilated_resnet_forward.1} parent=47 // loop_header_branch
        %604 = sbr.rel (%p602) target = $region55
      $region52: #{dilated_resnet_forward.1} parent=47 // loop_body
        %s610 = smul.u32 %s601, 7
        %s611 = smul.u32 %s610, 4
        %s612 = smul.addr %s611, 4
        %s613 = scalar_lea.vmem %s3, %s612
        %v614 = vld [vmem:[%s613] sm:$0xff]
        %v615 = vld [vmem:[%s613 + $0x8] sm:$0xff]
        %s616 = smul.u32 %s610, 16
        %s617 = scalar_lea.vmem %s4, %s616
        %v618 = vld [vmem:[%s617] sm:$0xff]
        %v619 = vld [vmem:[%s617 + $0x8] sm:$0xff]
        %620 = vrot.lane.b32.xlu0 %v606, 1
        %v621 = vpop.permute.xlu0 %620
        %622 = vrot.lane.b32.xlu0 %v608, 1
        %v623 = vpop.permute.xlu0 %622
        %624 = vrot.lane.b32.xlu0 %v607, 1
        %v625 = vpop.permute.xlu0 %624
        %626 = vrot.lane.b32.xlu0 %v609, 1
        %v627 = vpop.permute.xlu0 %626
        %v628 = vsel %vm338, %v621, %v625
        %v629 = vsel %vm338, %v623, %v627
        %v630 = vsel %vm338, %v625, %v621
        %v631 = vsel %vm338, %v627, %v623
        %632 = vrot.lane.b32.xlu0 %v606, 113
        %v633 = vpop.permute.xlu0 %632
        %634 = vrot.lane.b32.xlu0 %v608, 113
        %v635 = vpop.permute.xlu0 %634
        %636 = vrot.lane.b32.xlu0 %v607, 113
        %v637 = vpop.permute.xlu0 %636
        %638 = vrot.lane.b32.xlu0 %v609, 113
        %v639 = vpop.permute.xlu0 %638
        %v640 = vsel %vm350, %v633, %v637
        %v641 = vsel %vm350, %v635, %v639
        %v642 = vsel %vm350, %v637, %v633
        %v643 = vsel %vm350, %v639, %v635
        %v644 = vsel %vm355, %v630, %v640
        %v645 = vsel %vm356, %v628, %v642
        %v646 = vsel %vm355, %v631, %v641
        %v647 = vsel %vm356, %v629, %v643
        %648 = vrot.lane.b32.xlu0 %v606, 127
        %v649 = vpop.permute.xlu0 %648
        %650 = vrot.lane.b32.xlu0 %v608, 127
        %v651 = vpop.permute.xlu0 %650
        %652 = vrot.lane.b32.xlu0 %v607, 127
        %v653 = vpop.permute.xlu0 %652
        %654 = vrot.lane.b32.xlu0 %v609, 127
        %v655 = vpop.permute.xlu0 %654
        %v656 = vsel %vm368, %v649, %v653
        %v657 = vsel %vm368, %v651, %v655
        %v658 = vsel %vm368, %v653, %v649
        %v659 = vsel %vm368, %v655, %v651
        %660 = vrot.lane.b32.xlu0 %v606, 15
        %v661 = vpop.permute.xlu0 %660
        %662 = vrot.lane.b32.xlu0 %v608, 15
        %v663 = vpop.permute.xlu0 %662
        %664 = vrot.lane.b32.xlu0 %v607, 15
        %v665 = vpop.permute.xlu0 %664
        %666 = vrot.lane.b32.xlu0 %v609, 15
        %v667 = vpop.permute.xlu0 %666
        %v668 = vsel %vm380, %v661, %v665
        %v669 = vsel %vm380, %v663, %v667
        %v670 = vsel %vm380, %v665, %v661
        %v671 = vsel %vm380, %v667, %v663
        %v672 = vsel %vm385, %v656, %v670
        %v673 = vsel %vm386, %v658, %v668
        %v674 = vsel %vm385, %v657, %v671
        %v675 = vsel %vm386, %v659, %v669
        %676 = vrot.lane.b32.xlu0 %v644, 16
        %v677 = vpop.permute.xlu0 %676
        %678 = vrot.lane.b32.xlu0 %v646, 16
        %v679 = vpop.permute.xlu0 %678
        %680 = vrot.lane.b32.xlu0 %v645, 16
        %v681 = vpop.permute.xlu0 %680
        %682 = vrot.lane.b32.xlu0 %v647, 16
        %v683 = vpop.permute.xlu0 %682
        %v684 = vsel %vm393, %v677, %v681
        %v685 = vsel %vm393, %v679, %v683
        %v686 = vsel %vm393, %v681, %v677
        %v687 = vsel %vm393, %v683, %v679
        %v688 = vpack.c.bf16 %v684, %v686
        %v689 = vpack.c.bf16 %v685, %v687
        %690 = vrot.lane.b32.xlu0 %v606, 16
        %v691 = vpop.permute.xlu0 %690
        %692 = vrot.lane.b32.xlu0 %v608, 16
        %v693 = vpop.permute.xlu0 %692
        %694 = vrot.lane.b32.xlu0 %v607, 16
        %v695 = vpop.permute.xlu0 %694
        %696 = vrot.lane.b32.xlu0 %v609, 16
        %v697 = vpop.permute.xlu0 %696
        %v698 = vsel %vm393, %v691, %v695
        %v699 = vsel %vm393, %v693, %v697
        %v700 = vsel %vm393, %v695, %v691
        %v701 = vsel %vm393, %v697, %v693
        %v702 = vpack.c.bf16 %v698, %v700
        %v703 = vpack.c.bf16 %v699, %v701
        %704 = vrot.lane.b32.xlu0 %v672, 16
        %v705 = vpop.permute.xlu0 %704
        %706 = vrot.lane.b32.xlu0 %v674, 16
        %v707 = vpop.permute.xlu0 %706
        %708 = vrot.lane.b32.xlu0 %v673, 16
        %v709 = vpop.permute.xlu0 %708
        %710 = vrot.lane.b32.xlu0 %v675, 16
        %v711 = vpop.permute.xlu0 %710
        %v712 = vsel %vm393, %v705, %v709
        %v713 = vsel %vm393, %v707, %v711
        %v714 = vsel %vm393, %v709, %v705
        %v715 = vsel %vm393, %v711, %v707
        %v716 = vpack.c.bf16 %v712, %v714
        %v717 = vpack.c.bf16 %v713, %v715
        %v718 = vpack.c.bf16 %v645, %v644
        %v719 = vpack.c.bf16 %v647, %v646
        %v720 = vpack.c.bf16 %v607, %v606
        %v721 = vpack.c.bf16 %v609, %v608
        %v722 = vpack.c.bf16 %v673, %v672
        %v723 = vpack.c.bf16 %v675, %v674
        %724 = vrot.lane.b32.xlu0 %v644, 112
        %v725 = vpop.permute.xlu0 %724
        %726 = vrot.lane.b32.xlu0 %v646, 112
        %v727 = vpop.permute.xlu0 %726
        %728 = vrot.lane.b32.xlu0 %v645, 112
        %v729 = vpop.permute.xlu0 %728
        %730 = vrot.lane.b32.xlu0 %v647, 112
        %v731 = vpop.permute.xlu0 %730
        %v732 = vsel %vm428, %v725, %v729
        %v733 = vsel %vm428, %v727, %v731
        %v734 = vsel %vm428, %v729, %v725
        %v735 = vsel %vm428, %v731, %v727
        %v736 = vpack.c.bf16 %v734, %v732
        %v737 = vpack.c.bf16 %v735, %v733
        %738 = vrot.lane.b32.xlu0 %v606, 112
        %v739 = vpop.permute.xlu0 %738
        %740 = vrot.lane.b32.xlu0 %v608, 112
        %v741 = vpop.permute.xlu0 %740
        %742 = vrot.lane.b32.xlu0 %v607, 112
        %v743 = vpop.permute.xlu0 %742
        %744 = vrot.lane.b32.xlu0 %v609, 112
        %v745 = vpop.permute.xlu0 %744
        %v746 = vsel %vm428, %v739, %v743
        %v747 = vsel %vm428, %v741, %v745
        %v748 = vsel %vm428, %v743, %v739
        %v749 = vsel %vm428, %v745, %v741
        %v750 = vpack.c.bf16 %v748, %v746
        %v751 = vpack.c.bf16 %v749, %v747
        %752 = vrot.lane.b32.xlu0 %v672, 112
        %v753 = vpop.permute.xlu0 %752
        %754 = vrot.lane.b32.xlu0 %v674, 112
        %v755 = vpop.permute.xlu0 %754
        %756 = vrot.lane.b32.xlu0 %v673, 112
        %v757 = vpop.permute.xlu0 %756
        %758 = vrot.lane.b32.xlu0 %v675, 112
        %v759 = vpop.permute.xlu0 %758
        %v760 = vsel %vm428, %v753, %v757
        %v761 = vsel %vm428, %v755, %v759
        %v762 = vsel %vm428, %v757, %v753
        %v763 = vsel %vm428, %v759, %v755
        %v764 = vpack.c.bf16 %v762, %v760
        %v765 = vpack.c.bf16 %v763, %v761
        %v768 = vunpack.c.l.b16 %v688
        %v769 = vunpack.c.h.b16 %v688
        %v770 = vunpack.c.l.b16 %v689
        %v771 = vunpack.c.h.b16 %v689
        %v772 = vpack.c.b16 %v770, %v768
        %v773 = vpack.c.b16 %v771, %v769
        %v778 = vunpack.c.l.b16 %v702
        %v779 = vunpack.c.h.b16 %v702
        %v780 = vunpack.c.l.b16 %v703
        %v781 = vunpack.c.h.b16 %v703
        %v782 = vpack.c.b16 %v780, %v778
        %v783 = vpack.c.b16 %v781, %v779
        %v788 = vunpack.c.l.b16 %v716
        %v789 = vunpack.c.h.b16 %v716
        %v790 = vunpack.c.l.b16 %v717
        %v791 = vunpack.c.h.b16 %v717
        %v792 = vpack.c.b16 %v790, %v788
        %v793 = vpack.c.b16 %v791, %v789
        %v798 = vunpack.c.l.b16 %v718
        %v799 = vunpack.c.h.b16 %v718
        %v800 = vunpack.c.l.b16 %v719
        %v801 = vunpack.c.h.b16 %v719
        %v802 = vpack.c.b16 %v800, %v798
        %v803 = vpack.c.b16 %v801, %v799
        %v808 = vunpack.c.l.b16 %v720
        %v809 = vunpack.c.h.b16 %v720
        %v810 = vunpack.c.l.b16 %v721
        %v811 = vunpack.c.h.b16 %v721
        %v812 = vpack.c.b16 %v810, %v808
        %v813 = vpack.c.b16 %v811, %v809
        %v818 = vunpack.c.l.b16 %v722
        %v819 = vunpack.c.h.b16 %v722
        %v820 = vunpack.c.l.b16 %v723
        %v821 = vunpack.c.h.b16 %v723
        %v822 = vpack.c.b16 %v820, %v818
        %v823 = vpack.c.b16 %v821, %v819
        %v828 = vunpack.c.l.b16 %v736
        %v829 = vunpack.c.h.b16 %v736
        %v830 = vunpack.c.l.b16 %v737
        %v831 = vunpack.c.h.b16 %v737
        %v832 = vpack.c.b16 %v830, %v828
        %v833 = vpack.c.b16 %v831, %v829
        %v838 = vunpack.c.l.b16 %v750
        %v839 = vunpack.c.h.b16 %v750
        %v840 = vunpack.c.l.b16 %v751
        %v841 = vunpack.c.h.b16 %v751
        %v842 = vpack.c.b16 %v840, %v838
        %v843 = vpack.c.b16 %v841, %v839
        %v848 = vunpack.c.l.b16 %v764
        %v849 = vunpack.c.h.b16 %v764
        %v850 = vunpack.c.l.b16 %v765
        %v851 = vunpack.c.h.b16 %v765
        %v852 = vpack.c.b16 %v850, %v848
        %v853 = vpack.c.b16 %v851, %v849
        %857 = vset.pattern.permute.xlu0 0
        %858 = vperm.xlu0 %857, %v618
        %v859 = vpop.permute.xlu0 %858
        %862 = vset.pattern.permute.xlu0 0
        %863 = vperm.xlu0 %862, %v619
        %v864 = vpop.permute.xlu0 %863
        %v868 = vunpack.c.l.b16 %v614
        %v869 = vunpack.c.h.b16 %v614
        %v870 = vunpack.c.l.b16 %v615
        %v871 = vunpack.c.h.b16 %v615
        %v872 = vpack.c.b16 %v870, %v868
        %v873 = vpack.c.b16 %v871, %v869
        %vm875 = vcmask 130048
        %v877 = vsel %vm875, %v873, 0
        %879 = vmatpush.bf16.msra.mxu0 %v842
        %880 = vmatpush.bf16.msra.mxu0 %v832
        %881 = vmatpush.bf16.msra.mxu0 %v822
        %882 = vmatpush.bf16.msra.mxu0 %v812
        %883 = vmatpush.bf16.msra.mxu0 %v802
        %884 = vmatpush.bf16.msra.mxu0 %v792
        %885 = vmatpush.bf16.msra.mxu0 %v782
        %886 = vmatpush.bf16.msra.mxu0 %v772
        %887 = vmatmul.bf16.gmra.mxu0 %v872
        %v888 = vpop.f32.mrf.mxu0
        %v889 = vadd.f32 %v859, %v888
        %v890 = vpop.f32.mrf.mxu0
        %v891 = vadd.f32 %v864, %v890
        %892 = vdwg.mxu0
        %893 = vmatpush.bf16.msra.mxu0 0
        %894 = vmatpush.bf16.msra.mxu0 0
        %895 = vmatpush.bf16.msra.mxu0 0
        %896 = vmatpush.bf16.msra.mxu0 0
        %897 = vmatpush.bf16.msra.mxu0 0
        %898 = vmatpush.bf16.msra.mxu0 0
        %899 = vmatpush.bf16.msra.mxu0 0
        %900 = vmatpush.bf16.msra.mxu0 %v852
        %901 = vmatmul.bf16.gmra.mxu0 %v877
        %v902 = vpop.f32.mrf.mxu0
        %v903 = vadd.f32 %v889, %v902
        %v904 = vpop.f32.mrf.mxu0
        %v905 = vadd.f32 %v891, %v904
        %906 = vdwg.mxu0
        %907 = vmatpush.bf16.msra.mxu0 %v843
        %908 = vmatpush.bf16.msra.mxu0 %v833
        %909 = vmatpush.bf16.msra.mxu0 %v823
        %910 = vmatpush.bf16.msra.mxu0 %v813
        %911 = vmatpush.bf16.msra.mxu0 %v803
        %912 = vmatpush.bf16.msra.mxu0 %v793
        %913 = vmatpush.bf16.msra.mxu0 %v783
        %914 = vmatpush.bf16.msra.mxu0 %v773
        %915 = vmatmul.bf16.gmra.mxu0 %v872
        %v916 = vpop.f32.mrf.mxu0
        %v917 = vadd.f32 %v859, %v916
        %v918 = vpop.f32.mrf.mxu0
        %v919 = vadd.f32 %v864, %v918
        %920 = vdwg.mxu0
        %921 = vmatpush.bf16.msra.mxu0 0
        %922 = vmatpush.bf16.msra.mxu0 0
        %923 = vmatpush.bf16.msra.mxu0 0
        %924 = vmatpush.bf16.msra.mxu0 0
        %925 = vmatpush.bf16.msra.mxu0 0
        %926 = vmatpush.bf16.msra.mxu0 0
        %927 = vmatpush.bf16.msra.mxu0 0
        %928 = vmatpush.bf16.msra.mxu0 %v853
        %929 = vmatmul.bf16.gmra.mxu0 %v877
        %v930 = vpop.f32.mrf.mxu0
        %v931 = vadd.f32 %v917, %v930
        %v932 = vpop.f32.mrf.mxu0
        %v933 = vadd.f32 %v919, %v932
        %934 = vdwg.mxu0
        %v935 = vmax.f32 %v903, 0.0
        %v936 = vmax.f32 %v931, 0.0
        %v937 = vmax.f32 %v905, 0.0
        %v938 = vmax.f32 %v933, 0.0
        %s939 = sadd.s32 %s610, 1
        %s940 = smul.u32 %s939, 4
        %s941 = smul.addr %s940, 4
        %s942 = scalar_lea.vmem %s3, %s941
        %v943 = vld [vmem:[%s942] sm:$0xff]
        %v944 = vld [vmem:[%s942 + $0x8] sm:$0xff]
        %s945 = smul.u32 %s939, 16
        %s946 = scalar_lea.vmem %s4, %s945
        %v947 = vld [vmem:[%s946] sm:$0xff]
        %v948 = vld [vmem:[%s946 + $0x8] sm:$0xff]
        %949 = vrot.lane.b32.xlu0 %v935, 2
        %v950 = vpop.permute.xlu0 %949
        %951 = vrot.lane.b32.xlu0 %v937, 2
        %v952 = vpop.permute.xlu0 %951
        %953 = vrot.lane.b32.xlu0 %v936, 2
        %v954 = vpop.permute.xlu0 %953
        %955 = vrot.lane.b32.xlu0 %v938, 2
        %v956 = vpop.permute.xlu0 %955
        %vm957 = vcmp.lt.s32.totalorder %v282, 2
        %v958 = vsel %vm957, %v950, %v954
        %v959 = vsel %vm957, %v952, %v956
        %v960 = vsel %vm957, %v954, %v950
        %v961 = vsel %vm957, %v956, %v952
        %962 = vrot.lane.b32.xlu0 %v935, 114
        %v963 = vpop.permute.xlu0 %962
        %964 = vrot.lane.b32.xlu0 %v937, 114
        %v965 = vpop.permute.xlu0 %964
        %966 = vrot.lane.b32.xlu0 %v936, 114
        %v967 = vpop.permute.xlu0 %966
        %968 = vrot.lane.b32.xlu0 %v938, 114
        %v969 = vpop.permute.xlu0 %968
        %vm970 = vcmp.lt.s32.totalorder %v282, 114
        %v971 = vsel %vm970, %v963, %v967
        %v972 = vsel %vm970, %v965, %v969
        %v973 = vsel %vm970, %v967, %v963
        %v974 = vsel %vm970, %v969, %v965
        %v975 = vsel %vm312, 1, 0
        %v976 = vsel %vm313, 1, 0
        %vm977 = vcmp.eq.s32.totalorder %v975, 1
        %vm978 = vcmp.eq.s32.totalorder %v976, 1
        %v979 = vsel %vm977, %v960, %v971
        %v980 = vsel %vm978, %v958, %v973
        %v981 = vsel %vm977, %v961, %v972
        %v982 = vsel %vm978, %v959, %v974
        %983 = vrot.lane.b32.xlu0 %v935, 126
        %v984 = vpop.permute.xlu0 %983
        %985 = vrot.lane.b32.xlu0 %v937, 126
        %v986 = vpop.permute.xlu0 %985
        %987 = vrot.lane.b32.xlu0 %v936, 126
        %v988 = vpop.permute.xlu0 %987
        %989 = vrot.lane.b32.xlu0 %v938, 126
        %v990 = vpop.permute.xlu0 %989
        %vm991 = vcmp.lt.s32.totalorder %v282, 126
        %v992 = vsel %vm991, %v984, %v988
        %v993 = vsel %vm991, %v986, %v990
        %v994 = vsel %vm991, %v988, %v984
        %v995 = vsel %vm991, %v990, %v986
        %996 = vrot.lane.b32.xlu0 %v935, 14
        %v997 = vpop.permute.xlu0 %996
        %998 = vrot.lane.b32.xlu0 %v937, 14
        %v999 = vpop.permute.xlu0 %998
        %1000 = vrot.lane.b32.xlu0 %v936, 14
        %v1001 = vpop.permute.xlu0 %1000
        %1002 = vrot.lane.b32.xlu0 %v938, 14
        %v1003 = vpop.permute.xlu0 %1002
        %vm1004 = vcmp.lt.s32.totalorder %v282, 14
        %v1005 = vsel %vm1004, %v997, %v1001
        %v1006 = vsel %vm1004, %v999, %v1003
        %v1007 = vsel %vm1004, %v1001, %v997
        %v1008 = vsel %vm1004, %v1003, %v999
        %v1009 = vsel %vm314, 1, 0
        %v1010 = vsel %vm315, 1, 0
        %vm1011 = vcmp.eq.s32.totalorder %v1009, 1
        %vm1012 = vcmp.eq.s32.totalorder %v1010, 1
        %v1013 = vsel %vm1011, %v992, %v1007
        %v1014 = vsel %vm1012, %v994, %v1005
        %v1015 = vsel %vm1011, %v993, %v1008
        %v1016 = vsel %vm1012, %v995, %v1006
        %1017 = vrot.lane.b32.xlu0 %v979, 32
        %v1018 = vpop.permute.xlu0 %1017
        %1019 = vrot.lane.b32.xlu0 %v981, 32
        %v1020 = vpop.permute.xlu0 %1019
        %1021 = vrot.lane.b32.xlu0 %v980, 32
        %v1022 = vpop.permute.xlu0 %1021
        %1023 = vrot.lane.b32.xlu0 %v982, 32
        %v1024 = vpop.permute.xlu0 %1023
        %vm1025 = vcmp.lt.s32.totalorder %v282, 32
        %v1026 = vsel %vm1025, %v1018, %v1022
        %v1027 = vsel %vm1025, %v1020, %v1024
        %v1028 = vsel %vm1025, %v1022, %v1018
        %v1029 = vsel %vm1025, %v1024, %v1020
        %v1030 = vpack.c.bf16 %v1026, %v1028
        %v1031 = vpack.c.bf16 %v1027, %v1029
        %1032 = vrot.lane.b32.xlu0 %v935, 32
        %v1033 = vpop.permute.xlu0 %1032
        %1034 = vrot.lane.b32.xlu0 %v937, 32
        %v1035 = vpop.permute.xlu0 %1034
        %1036 = vrot.lane.b32.xlu0 %v936, 32
        %v1037 = vpop.permute.xlu0 %1036
        %1038 = vrot.lane.b32.xlu0 %v938, 32
        %v1039 = vpop.permute.xlu0 %1038
        %v1040 = vsel %vm1025, %v1033, %v1037
        %v1041 = vsel %vm1025, %v1035, %v1039
        %v1042 = vsel %vm1025, %v1037, %v1033
        %v1043 = vsel %vm1025, %v1039, %v1035
        %v1044 = vpack.c.bf16 %v1040, %v1042
        %v1045 = vpack.c.bf16 %v1041, %v1043
        %1046 = vrot.lane.b32.xlu0 %v1013, 32
        %v1047 = vpop.permute.xlu0 %1046
        %1048 = vrot.lane.b32.xlu0 %v1015, 32
        %v1049 = vpop.permute.xlu0 %1048
        %1050 = vrot.lane.b32.xlu0 %v1014, 32
        %v1051 = vpop.permute.xlu0 %1050
        %1052 = vrot.lane.b32.xlu0 %v1016, 32
        %v1053 = vpop.permute.xlu0 %1052
        %v1054 = vsel %vm1025, %v1047, %v1051
        %v1055 = vsel %vm1025, %v1049, %v1053
        %v1056 = vsel %vm1025, %v1051, %v1047
        %v1057 = vsel %vm1025, %v1053, %v1049
        %v1058 = vpack.c.bf16 %v1054, %v1056
        %v1059 = vpack.c.bf16 %v1055, %v1057
        %v1060 = vpack.c.bf16 %v980, %v979
        %v1061 = vpack.c.bf16 %v982, %v981
        %v1062 = vpack.c.bf16 %v936, %v935
        %v1063 = vpack.c.bf16 %v938, %v937
        %v1064 = vpack.c.bf16 %v1014, %v1013
        %v1065 = vpack.c.bf16 %v1016, %v1015
        %1066 = vrot.lane.b32.xlu0 %v979, 96
        %v1067 = vpop.permute.xlu0 %1066
        %1068 = vrot.lane.b32.xlu0 %v981, 96
        %v1069 = vpop.permute.xlu0 %1068
        %1070 = vrot.lane.b32.xlu0 %v980, 96
        %v1071 = vpop.permute.xlu0 %1070
        %1072 = vrot.lane.b32.xlu0 %v982, 96
        %v1073 = vpop.permute.xlu0 %1072
        %vm1074 = vcmp.lt.s32.totalorder %v282, 96
        %v1075 = vsel %vm1074, %v1067, %v1071
        %v1076 = vsel %vm1074, %v1069, %v1073
        %v1077 = vsel %vm1074, %v1071, %v1067
        %v1078 = vsel %vm1074, %v1073, %v1069
        %v1079 = vpack.c.bf16 %v1077, %v1075
        %v1080 = vpack.c.bf16 %v1078, %v1076
        %1081 = vrot.lane.b32.xlu0 %v935, 96
        %v1082 = vpop.permute.xlu0 %1081
        %1083 = vrot.lane.b32.xlu0 %v937, 96
        %v1084 = vpop.permute.xlu0 %1083
        %1085 = vrot.lane.b32.xlu0 %v936, 96
        %v1086 = vpop.permute.xlu0 %1085
        %1087 = vrot.lane.b32.xlu0 %v938, 96
        %v1088 = vpop.permute.xlu0 %1087
        %v1089 = vsel %vm1074, %v1082, %v1086
        %v1090 = vsel %vm1074, %v1084, %v1088
        %v1091 = vsel %vm1074, %v1086, %v1082
        %v1092 = vsel %vm1074, %v1088, %v1084
        %v1093 = vpack.c.bf16 %v1091, %v1089
        %v1094 = vpack.c.bf16 %v1092, %v1090
        %1095 = vrot.lane.b32.xlu0 %v1013, 96
        %v1096 = vpop.permute.xlu0 %1095
        %1097 = vrot.lane.b32.xlu0 %v1015, 96
        %v1098 = vpop.permute.xlu0 %1097
        %1099 = vrot.lane.b32.xlu0 %v1014, 96
        %v1100 = vpop.permute.xlu0 %1099
        %1101 = vrot.lane.b32.xlu0 %v1016, 96
        %v1102 = vpop.permute.xlu0 %1101
        %v1103 = vsel %vm1074, %v1096, %v1100
        %v1104 = vsel %vm1074, %v1098, %v1102
        %v1105 = vsel %vm1074, %v1100, %v1096
        %v1106 = vsel %vm1074, %v1102, %v1098
        %v1107 = vpack.c.bf16 %v1105, %v1103
        %v1108 = vpack.c.bf16 %v1106, %v1104
        %v1111 = vunpack.c.l.b16 %v1030
        %v1112 = vunpack.c.h.b16 %v1030
        %v1113 = vunpack.c.l.b16 %v1031
        %v1114 = vunpack.c.h.b16 %v1031
        %v1115 = vpack.c.b16 %v1113, %v1111
        %v1116 = vpack.c.b16 %v1114, %v1112
        %v1121 = vunpack.c.l.b16 %v1044
        %v1122 = vunpack.c.h.b16 %v1044
        %v1123 = vunpack.c.l.b16 %v1045
        %v1124 = vunpack.c.h.b16 %v1045
        %v1125 = vpack.c.b16 %v1123, %v1121
        %v1126 = vpack.c.b16 %v1124, %v1122
        %v1131 = vunpack.c.l.b16 %v1058
        %v1132 = vunpack.c.h.b16 %v1058
        %v1133 = vunpack.c.l.b16 %v1059
        %v1134 = vunpack.c.h.b16 %v1059
        %v1135 = vpack.c.b16 %v1133, %v1131
        %v1136 = vpack.c.b16 %v1134, %v1132
        %v1141 = vunpack.c.l.b16 %v1060
        %v1142 = vunpack.c.h.b16 %v1060
        %v1143 = vunpack.c.l.b16 %v1061
        %v1144 = vunpack.c.h.b16 %v1061
        %v1145 = vpack.c.b16 %v1143, %v1141
        %v1146 = vpack.c.b16 %v1144, %v1142
        %v1151 = vunpack.c.l.b16 %v1062
        %v1152 = vunpack.c.h.b16 %v1062
        %v1153 = vunpack.c.l.b16 %v1063
        %v1154 = vunpack.c.h.b16 %v1063
        %v1155 = vpack.c.b16 %v1153, %v1151
        %v1156 = vpack.c.b16 %v1154, %v1152
        %v1161 = vunpack.c.l.b16 %v1064
        %v1162 = vunpack.c.h.b16 %v1064
        %v1163 = vunpack.c.l.b16 %v1065
        %v1164 = vunpack.c.h.b16 %v1065
        %v1165 = vpack.c.b16 %v1163, %v1161
        %v1166 = vpack.c.b16 %v1164, %v1162
        %v1171 = vunpack.c.l.b16 %v1079
        %v1172 = vunpack.c.h.b16 %v1079
        %v1173 = vunpack.c.l.b16 %v1080
        %v1174 = vunpack.c.h.b16 %v1080
        %v1175 = vpack.c.b16 %v1173, %v1171
        %v1176 = vpack.c.b16 %v1174, %v1172
        %v1181 = vunpack.c.l.b16 %v1093
        %v1182 = vunpack.c.h.b16 %v1093
        %v1183 = vunpack.c.l.b16 %v1094
        %v1184 = vunpack.c.h.b16 %v1094
        %v1185 = vpack.c.b16 %v1183, %v1181
        %v1186 = vpack.c.b16 %v1184, %v1182
        %v1191 = vunpack.c.l.b16 %v1107
        %v1192 = vunpack.c.h.b16 %v1107
        %v1193 = vunpack.c.l.b16 %v1108
        %v1194 = vunpack.c.h.b16 %v1108
        %v1195 = vpack.c.b16 %v1193, %v1191
        %v1196 = vpack.c.b16 %v1194, %v1192
        %1200 = vset.pattern.permute.xlu0 0
        %1201 = vperm.xlu0 %1200, %v947
        %v1202 = vpop.permute.xlu0 %1201
        %1205 = vset.pattern.permute.xlu0 0
        %1206 = vperm.xlu0 %1205, %v948
        %v1207 = vpop.permute.xlu0 %1206
        %v1211 = vunpack.c.l.b16 %v943
        %v1212 = vunpack.c.h.b16 %v943
        %v1213 = vunpack.c.l.b16 %v944
        %v1214 = vunpack.c.h.b16 %v944
        %v1215 = vpack.c.b16 %v1213, %v1211
        %v1216 = vpack.c.b16 %v1214, %v1212
        %v1219 = vsel %vm875, %v1216, 0
        %1221 = vmatpush.bf16.msra.mxu0 %v1185
        %1222 = vmatpush.bf16.msra.mxu0 %v1175
        %1223 = vmatpush.bf16.msra.mxu0 %v1165
        %1224 = vmatpush.bf16.msra.mxu0 %v1155
        %1225 = vmatpush.bf16.msra.mxu0 %v1145
        %1226 = vmatpush.bf16.msra.mxu0 %v1135
        %1227 = vmatpush.bf16.msra.mxu0 %v1125
        %1228 = vmatpush.bf16.msra.mxu0 %v1115
        %1229 = vmatmul.bf16.gmra.mxu0 %v1215
        %v1230 = vpop.f32.mrf.mxu0
        %v1231 = vadd.f32 %v1202, %v1230
        %v1232 = vpop.f32.mrf.mxu0
        %v1233 = vadd.f32 %v1207, %v1232
        %1234 = vdwg.mxu0
        %1235 = vmatpush.bf16.msra.mxu0 0
        %1236 = vmatpush.bf16.msra.mxu0 0
        %1237 = vmatpush.bf16.msra.mxu0 0
        %1238 = vmatpush.bf16.msra.mxu0 0
        %1239 = vmatpush.bf16.msra.mxu0 0
        %1240 = vmatpush.bf16.msra.mxu0 0
        %1241 = vmatpush.bf16.msra.mxu0 0
        %1242 = vmatpush.bf16.msra.mxu0 %v1195
        %1243 = vmatmul.bf16.gmra.mxu0 %v1219
        %v1244 = vpop.f32.mrf.mxu0
        %v1245 = vadd.f32 %v1231, %v1244
        %v1246 = vpop.f32.mrf.mxu0
        %v1247 = vadd.f32 %v1233, %v1246
        %1248 = vdwg.mxu0
        %1249 = vmatpush.bf16.msra.mxu0 %v1186
        %1250 = vmatpush.bf16.msra.mxu0 %v1176
        %1251 = vmatpush.bf16.msra.mxu0 %v1166
        %1252 = vmatpush.bf16.msra.mxu0 %v1156
        %1253 = vmatpush.bf16.msra.mxu0 %v1146
        %1254 = vmatpush.bf16.msra.mxu0 %v1136
        %1255 = vmatpush.bf16.msra.mxu0 %v1126
        %1256 = vmatpush.bf16.msra.mxu0 %v1116
        %1257 = vmatmul.bf16.gmra.mxu0 %v1215
        %v1258 = vpop.f32.mrf.mxu0
        %v1259 = vadd.f32 %v1202, %v1258
        %v1260 = vpop.f32.mrf.mxu0
        %v1261 = vadd.f32 %v1207, %v1260
        %1262 = vdwg.mxu0
        %1263 = vmatpush.bf16.msra.mxu0 0
        %1264 = vmatpush.bf16.msra.mxu0 0
        %1265 = vmatpush.bf16.msra.mxu0 0
        %1266 = vmatpush.bf16.msra.mxu0 0
        %1267 = vmatpush.bf16.msra.mxu0 0
        %1268 = vmatpush.bf16.msra.mxu0 0
        %1269 = vmatpush.bf16.msra.mxu0 0
        %1270 = vmatpush.bf16.msra.mxu0 %v1196
        %1271 = vmatmul.bf16.gmra.mxu0 %v1219
        %v1272 = vpop.f32.mrf.mxu0
        %v1273 = vadd.f32 %v1259, %v1272
        %v1274 = vpop.f32.mrf.mxu0
        %v1275 = vadd.f32 %v1261, %v1274
        %1276 = vdwg.mxu0
        %v1277 = vmax.f32 %v1245, 0.0
        %v1278 = vmax.f32 %v1273, 0.0
        %v1279 = vmax.f32 %v1247, 0.0
        %v1280 = vmax.f32 %v1275, 0.0
        %s1281 = sadd.s32 %s610, 2
        %s1282 = smul.u32 %s1281, 4
        %s1283 = smul.addr %s1282, 4
        %s1284 = scalar_lea.vmem %s3, %s1283
        %v1285 = vld [vmem:[%s1284] sm:$0xff]
        %v1286 = vld [vmem:[%s1284 + $0x8] sm:$0xff]
        %s1287 = smul.u32 %s1281, 16
        %s1288 = scalar_lea.vmem %s4, %s1287
        %v1289 = vld [vmem:[%s1288] sm:$0xff]
        %v1290 = vld [vmem:[%s1288 + $0x8] sm:$0xff]
        %1291 = vrot.lane.b32.xlu0 %v1277, 4
        %v1292 = vpop.permute.xlu0 %1291
        %1293 = vrot.lane.b32.xlu0 %v1279, 4
        %v1294 = vpop.permute.xlu0 %1293
        %1295 = vrot.lane.b32.xlu0 %v1278, 4
        %v1296 = vpop.permute.xlu0 %1295
        %1297 = vrot.lane.b32.xlu0 %v1280, 4
        %v1298 = vpop.permute.xlu0 %1297
        %vm1299 = vcmp.lt.s32.totalorder %v282, 4
        %v1300 = vsel %vm1299, %v1292, %v1296
        %v1301 = vsel %vm1299, %v1294, %v1298
        %v1302 = vsel %vm1299, %v1296, %v1292
        %v1303 = vsel %vm1299, %v1298, %v1294
        %1304 = vrot.lane.b32.xlu0 %v1277, 116
        %v1305 = vpop.permute.xlu0 %1304
        %1306 = vrot.lane.b32.xlu0 %v1279, 116
        %v1307 = vpop.permute.xlu0 %1306
        %1308 = vrot.lane.b32.xlu0 %v1278, 116
        %v1309 = vpop.permute.xlu0 %1308
        %1310 = vrot.lane.b32.xlu0 %v1280, 116
        %v1311 = vpop.permute.xlu0 %1310
        %vm1312 = vcmp.lt.s32.totalorder %v282, 116
        %v1313 = vsel %vm1312, %v1305, %v1309
        %v1314 = vsel %vm1312, %v1307, %v1311
        %v1315 = vsel %vm1312, %v1309, %v1305
        %v1316 = vsel %vm1312, %v1311, %v1307
        %v1317 = vsel %vm316, 1, 0
        %v1318 = vsel %vm317, 1, 0
        %vm1319 = vcmp.eq.s32.totalorder %v1317, 1
        %vm1320 = vcmp.eq.s32.totalorder %v1318, 1
        %v1321 = vsel %vm1319, %v1302, %v1313
        %v1322 = vsel %vm1320, %v1300, %v1315
        %v1323 = vsel %vm1319, %v1303, %v1314
        %v1324 = vsel %vm1320, %v1301, %v1316
        %1325 = vrot.lane.b32.xlu0 %v1277, 124
        %v1326 = vpop.permute.xlu0 %1325
        %1327 = vrot.lane.b32.xlu0 %v1279, 124
        %v1328 = vpop.permute.xlu0 %1327
        %1329 = vrot.lane.b32.xlu0 %v1278, 124
        %v1330 = vpop.permute.xlu0 %1329
        %1331 = vrot.lane.b32.xlu0 %v1280, 124
        %v1332 = vpop.permute.xlu0 %1331
        %vm1333 = vcmp.lt.s32.totalorder %v282, 124
        %v1334 = vsel %vm1333, %v1326, %v1330
        %v1335 = vsel %vm1333, %v1328, %v1332
        %v1336 = vsel %vm1333, %v1330, %v1326
        %v1337 = vsel %vm1333, %v1332, %v1328
        %1338 = vrot.lane.b32.xlu0 %v1277, 12
        %v1339 = vpop.permute.xlu0 %1338
        %1340 = vrot.lane.b32.xlu0 %v1279, 12
        %v1341 = vpop.permute.xlu0 %1340
        %1342 = vrot.lane.b32.xlu0 %v1278, 12
        %v1343 = vpop.permute.xlu0 %1342
        %1344 = vrot.lane.b32.xlu0 %v1280, 12
        %v1345 = vpop.permute.xlu0 %1344
        %vm1346 = vcmp.lt.s32.totalorder %v282, 12
        %v1347 = vsel %vm1346, %v1339, %v1343
        %v1348 = vsel %vm1346, %v1341, %v1345
        %v1349 = vsel %vm1346, %v1343, %v1339
        %v1350 = vsel %vm1346, %v1345, %v1341
        %v1351 = vsel %vm318, 1, 0
        %v1352 = vsel %vm319, 1, 0
        %vm1353 = vcmp.eq.s32.totalorder %v1351, 1
        %vm1354 = vcmp.eq.s32.totalorder %v1352, 1
        %v1355 = vsel %vm1353, %v1334, %v1349
        %v1356 = vsel %vm1354, %v1336, %v1347
        %v1357 = vsel %vm1353, %v1335, %v1350
        %v1358 = vsel %vm1354, %v1337, %v1348
        %1359 = vrot.lane.b32.xlu0 %v1321, 64
        %v1360 = vpop.permute.xlu0 %1359
        %1361 = vrot.lane.b32.xlu0 %v1323, 64
        %v1362 = vpop.permute.xlu0 %1361
        %1363 = vrot.lane.b32.xlu0 %v1322, 64
        %v1364 = vpop.permute.xlu0 %1363
        %1365 = vrot.lane.b32.xlu0 %v1324, 64
        %v1366 = vpop.permute.xlu0 %1365
        %vm1367 = vcmp.lt.s32.totalorder %v282, 64
        %v1368 = vsel %vm1367, %v1360, %v1364
        %v1369 = vsel %vm1367, %v1362, %v1366
        %v1370 = vsel %vm1367, %v1364, %v1360
        %v1371 = vsel %vm1367, %v1366, %v1362
        %v1372 = vpack.c.bf16 %v1368, %v1370
        %v1373 = vpack.c.bf16 %v1369, %v1371
        %1374 = vrot.lane.b32.xlu0 %v1277, 64
        %v1375 = vpop.permute.xlu0 %1374
        %1376 = vrot.lane.b32.xlu0 %v1279, 64
        %v1377 = vpop.permute.xlu0 %1376
        %1378 = vrot.lane.b32.xlu0 %v1278, 64
        %v1379 = vpop.permute.xlu0 %1378
        %1380 = vrot.lane.b32.xlu0 %v1280, 64
        %v1381 = vpop.permute.xlu0 %1380
        %v1382 = vsel %vm1367, %v1375, %v1379
        %v1383 = vsel %vm1367, %v1377, %v1381
        %v1384 = vsel %vm1367, %v1379, %v1375
        %v1385 = vsel %vm1367, %v1381, %v1377
        %v1386 = vpack.c.bf16 %v1382, %v1384
        %v1387 = vpack.c.bf16 %v1383, %v1385
        %1388 = vrot.lane.b32.xlu0 %v1355, 64
        %v1389 = vpop.permute.xlu0 %1388
        %1390 = vrot.lane.b32.xlu0 %v1357, 64
        %v1391 = vpop.permute.xlu0 %1390
        %1392 = vrot.lane.b32.xlu0 %v1356, 64
        %v1393 = vpop.permute.xlu0 %1392
        %1394 = vrot.lane.b32.xlu0 %v1358, 64
        %v1395 = vpop.permute.xlu0 %1394
        %v1396 = vsel %vm1367, %v1389, %v1393
        %v1397 = vsel %vm1367, %v1391, %v1395
        %v1398 = vsel %vm1367, %v1393, %v1389
        %v1399 = vsel %vm1367, %v1395, %v1391
        %v1400 = vpack.c.bf16 %v1396, %v1398
        %v1401 = vpack.c.bf16 %v1397, %v1399
        %v1402 = vpack.c.bf16 %v1322, %v1321
        %v1403 = vpack.c.bf16 %v1324, %v1323
        %v1404 = vpack.c.bf16 %v1278, %v1277
        %v1405 = vpack.c.bf16 %v1280, %v1279
        %v1406 = vpack.c.bf16 %v1356, %v1355
        %v1407 = vpack.c.bf16 %v1358, %v1357
        %v1408 = vpack.c.bf16 %v1370, %v1368
        %v1409 = vpack.c.bf16 %v1371, %v1369
        %v1410 = vpack.c.bf16 %v1384, %v1382
        %v1411 = vpack.c.bf16 %v1385, %v1383
        %v1412 = vpack.c.bf16 %v1398, %v1396
        %v1413 = vpack.c.bf16 %v1399, %v1397
        %v1416 = vunpack.c.l.b16 %v1372
        %v1417 = vunpack.c.h.b16 %v1372
        %v1418 = vunpack.c.l.b16 %v1373
        %v1419 = vunpack.c.h.b16 %v1373
        %v1420 = vpack.c.b16 %v1418, %v1416
        %v1421 = vpack.c.b16 %v1419, %v1417
        %v1426 = vunpack.c.l.b16 %v1386
        %v1427 = vunpack.c.h.b16 %v1386
        %v1428 = vunpack.c.l.b16 %v1387
        %v1429 = vunpack.c.h.b16 %v1387
        %v1430 = vpack.c.b16 %v1428, %v1426
        %v1431 = vpack.c.b16 %v1429, %v1427
        %v1436 = vunpack.c.l.b16 %v1400
        %v1437 = vunpack.c.h.b16 %v1400
        %v1438 = vunpack.c.l.b16 %v1401
        %v1439 = vunpack.c.h.b16 %v1401
        %v1440 = vpack.c.b16 %v1438, %v1436
        %v1441 = vpack.c.b16 %v1439, %v1437
        %v1446 = vunpack.c.l.b16 %v1402
        %v1447 = vunpack.c.h.b16 %v1402
        %v1448 = vunpack.c.l.b16 %v1403
        %v1449 = vunpack.c.h.b16 %v1403
        %v1450 = vpack.c.b16 %v1448, %v1446
        %v1451 = vpack.c.b16 %v1449, %v1447
        %v1456 = vunpack.c.l.b16 %v1404
        %v1457 = vunpack.c.h.b16 %v1404
        %v1458 = vunpack.c.l.b16 %v1405
        %v1459 = vunpack.c.h.b16 %v1405
        %v1460 = vpack.c.b16 %v1458, %v1456
        %v1461 = vpack.c.b16 %v1459, %v1457
        %v1466 = vunpack.c.l.b16 %v1406
        %v1467 = vunpack.c.h.b16 %v1406
        %v1468 = vunpack.c.l.b16 %v1407
        %v1469 = vunpack.c.h.b16 %v1407
        %v1470 = vpack.c.b16 %v1468, %v1466
        %v1471 = vpack.c.b16 %v1469, %v1467
        %v1476 = vunpack.c.l.b16 %v1408
        %v1477 = vunpack.c.h.b16 %v1408
        %v1478 = vunpack.c.l.b16 %v1409
        %v1479 = vunpack.c.h.b16 %v1409
        %v1480 = vpack.c.b16 %v1478, %v1476
        %v1481 = vpack.c.b16 %v1479, %v1477
        %v1486 = vunpack.c.l.b16 %v1410
        %v1487 = vunpack.c.h.b16 %v1410
        %v1488 = vunpack.c.l.b16 %v1411
        %v1489 = vunpack.c.h.b16 %v1411
        %v1490 = vpack.c.b16 %v1488, %v1486
        %v1491 = vpack.c.b16 %v1489, %v1487
        %v1496 = vunpack.c.l.b16 %v1412
        %v1497 = vunpack.c.h.b16 %v1412
        %v1498 = vunpack.c.l.b16 %v1413
        %v1499 = vunpack.c.h.b16 %v1413
        %v1500 = vpack.c.b16 %v1498, %v1496
        %v1501 = vpack.c.b16 %v1499, %v1497
        %1505 = vset.pattern.permute.xlu0 0
        %1506 = vperm.xlu0 %1505, %v1289
        %v1507 = vpop.permute.xlu0 %1506
        %1510 = vset.pattern.permute.xlu0 0
        %1511 = vperm.xlu0 %1510, %v1290
        %v1512 = vpop.permute.xlu0 %1511
        %v1516 = vunpack.c.l.b16 %v1285
        %v1517 = vunpack.c.h.b16 %v1285
        %v1518 = vunpack.c.l.b16 %v1286
        %v1519 = vunpack.c.h.b16 %v1286
        %v1520 = vpack.c.b16 %v1518, %v1516
        %v1521 = vpack.c.b16 %v1519, %v1517
        %v1524 = vsel %vm875, %v1521, 0
        %1526 = vmatpush.bf16.msra.mxu0 %v1490
        %1527 = vmatpush.bf16.msra.mxu0 %v1480
        %1528 = vmatpush.bf16.msra.mxu0 %v1470
        %1529 = vmatpush.bf16.msra.mxu0 %v1460
        %1530 = vmatpush.bf16.msra.mxu0 %v1450
        %1531 = vmatpush.bf16.msra.mxu0 %v1440
        %1532 = vmatpush.bf16.msra.mxu0 %v1430
        %1533 = vmatpush.bf16.msra.mxu0 %v1420
        %1534 = vmatmul.bf16.gmra.mxu0 %v1520
        %v1535 = vpop.f32.mrf.mxu0
        %v1536 = vadd.f32 %v1507, %v1535
        %v1537 = vpop.f32.mrf.mxu0
        %v1538 = vadd.f32 %v1512, %v1537
        %1539 = vdwg.mxu0
        %1540 = vmatpush.bf16.msra.mxu0 0
        %1541 = vmatpush.bf16.msra.mxu0 0
        %1542 = vmatpush.bf16.msra.mxu0 0
        %1543 = vmatpush.bf16.msra.mxu0 0
        %1544 = vmatpush.bf16.msra.mxu0 0
        %1545 = vmatpush.bf16.msra.mxu0 0
        %1546 = vmatpush.bf16.msra.mxu0 0
        %1547 = vmatpush.bf16.msra.mxu0 %v1500
        %1548 = vmatmul.bf16.gmra.mxu0 %v1524
        %v1549 = vpop.f32.mrf.mxu0
        %v1550 = vadd.f32 %v1536, %v1549
        %v1551 = vpop.f32.mrf.mxu0
        %v1552 = vadd.f32 %v1538, %v1551
        %1553 = vdwg.mxu0
        %1554 = vmatpush.bf16.msra.mxu0 %v1491
        %1555 = vmatpush.bf16.msra.mxu0 %v1481
        %1556 = vmatpush.bf16.msra.mxu0 %v1471
        %1557 = vmatpush.bf16.msra.mxu0 %v1461
        %1558 = vmatpush.bf16.msra.mxu0 %v1451
        %1559 = vmatpush.bf16.msra.mxu0 %v1441
        %1560 = vmatpush.bf16.msra.mxu0 %v1431
        %1561 = vmatpush.bf16.msra.mxu0 %v1421
        %1562 = vmatmul.bf16.gmra.mxu0 %v1520
        %v1563 = vpop.f32.mrf.mxu0
        %v1564 = vadd.f32 %v1507, %v1563
        %v1565 = vpop.f32.mrf.mxu0
        %v1566 = vadd.f32 %v1512, %v1565
        %1567 = vdwg.mxu0
        %1568 = vmatpush.bf16.msra.mxu0 0
        %1569 = vmatpush.bf16.msra.mxu0 0
        %1570 = vmatpush.bf16.msra.mxu0 0
        %1571 = vmatpush.bf16.msra.mxu0 0
        %1572 = vmatpush.bf16.msra.mxu0 0
        %1573 = vmatpush.bf16.msra.mxu0 0
        %1574 = vmatpush.bf16.msra.mxu0 0
        %1575 = vmatpush.bf16.msra.mxu0 %v1501
        %1576 = vmatmul.bf16.gmra.mxu0 %v1524
        %v1577 = vpop.f32.mrf.mxu0
        %v1578 = vadd.f32 %v1564, %v1577
        %v1579 = vpop.f32.mrf.mxu0
        %v1580 = vadd.f32 %v1566, %v1579
        %1581 = vdwg.mxu0
        %v1582 = vmax.f32 %v1550, 0.0
        %v1583 = vmax.f32 %v1578, 0.0
        %v1584 = vmax.f32 %v1552, 0.0
        %v1585 = vmax.f32 %v1580, 0.0
        %s1586 = sadd.s32 %s610, 3
        %s1587 = smul.u32 %s1586, 4
        %s1588 = smul.addr %s1587, 4
        %s1589 = scalar_lea.vmem %s3, %s1588
        %v1590 = vld [vmem:[%s1589] sm:$0xff]
        %v1591 = vld [vmem:[%s1589 + $0x8] sm:$0xff]
        %s1592 = smul.u32 %s1586, 16
        %s1593 = scalar_lea.vmem %s4, %s1592
        %v1594 = vld [vmem:[%s1593] sm:$0xff]
        %v1595 = vld [vmem:[%s1593 + $0x8] sm:$0xff]
        %1596 = vrot.lane.b32.xlu0 %v1582, 8
        %v1597 = vpop.permute.xlu0 %1596
        %1598 = vrot.lane.b32.xlu0 %v1584, 8
        %v1599 = vpop.permute.xlu0 %1598
        %1600 = vrot.lane.b32.xlu0 %v1583, 8
        %v1601 = vpop.permute.xlu0 %1600
        %1602 = vrot.lane.b32.xlu0 %v1585, 8
        %v1603 = vpop.permute.xlu0 %1602
        %vm1604 = vcmp.lt.s32.totalorder %v282, 8
        %v1605 = vsel %vm1604, %v1597, %v1601
        %v1606 = vsel %vm1604, %v1599, %v1603
        %v1607 = vsel %vm1604, %v1601, %v1597
        %v1608 = vsel %vm1604, %v1603, %v1599
        %1609 = vrot.lane.b32.xlu0 %v1582, 120
        %v1610 = vpop.permute.xlu0 %1609
        %1611 = vrot.lane.b32.xlu0 %v1584, 120
        %v1612 = vpop.permute.xlu0 %1611
        %1613 = vrot.lane.b32.xlu0 %v1583, 120
        %v1614 = vpop.permute.xlu0 %1613
        %1615 = vrot.lane.b32.xlu0 %v1585, 120
        %v1616 = vpop.permute.xlu0 %1615
        %vm1617 = vcmp.lt.s32.totalorder %v282, 120
        %v1618 = vsel %vm1617, %v1610, %v1614
        %v1619 = vsel %vm1617, %v1612, %v1616
        %v1620 = vsel %vm1617, %v1614, %v1610
        %v1621 = vsel %vm1617, %v1616, %v1612
        %v1622 = vsel %vm320, 1, 0
        %v1623 = vsel %vm321, 1, 0
        %vm1624 = vcmp.eq.s32.totalorder %v1622, 1
        %vm1625 = vcmp.eq.s32.totalorder %v1623, 1
        %v1626 = vsel %vm1624, %v1607, %v1618
        %v1627 = vsel %vm1625, %v1605, %v1620
        %v1628 = vsel %vm1624, %v1608, %v1619
        %v1629 = vsel %vm1625, %v1606, %v1621
        %v1630 = vsel %vm322, 1, 0
        %v1631 = vsel %vm323, 1, 0
        %vm1632 = vcmp.eq.s32.totalorder %v1630, 1
        %vm1633 = vcmp.eq.s32.totalorder %v1631, 1
        %v1634 = vsel %vm1632, %v1618, %v1607
        %v1635 = vsel %vm1633, %v1620, %v1605
        %v1636 = vsel %vm1632, %v1619, %v1608
        %v1637 = vsel %vm1633, %v1621, %v1606
        %v1638 = vpack.c.bf16 %v1626, %v1627
        %v1639 = vpack.c.bf16 %v1628, %v1629
        %v1640 = vpack.c.bf16 %v1582, %v1583
        %v1641 = vpack.c.bf16 %v1584, %v1585
        %v1642 = vpack.c.bf16 %v1634, %v1635
        %v1643 = vpack.c.bf16 %v1636, %v1637
        %v1644 = vpack.c.bf16 %v1627, %v1626
        %v1645 = vpack.c.bf16 %v1629, %v1628
        %v1646 = vpack.c.bf16 %v1583, %v1582
        %v1647 = vpack.c.bf16 %v1585, %v1584
        %v1648 = vpack.c.bf16 %v1635, %v1634
        %v1649 = vpack.c.bf16 %v1637, %v1636
        %v1652 = vunpack.c.l.b16 %v1638
        %v1653 = vunpack.c.h.b16 %v1638
        %v1654 = vunpack.c.l.b16 %v1639
        %v1655 = vunpack.c.h.b16 %v1639
        %v1656 = vpack.c.b16 %v1654, %v1652
        %v1657 = vpack.c.b16 %v1655, %v1653
        %v1662 = vunpack.c.l.b16 %v1640
        %v1663 = vunpack.c.h.b16 %v1640
        %v1664 = vunpack.c.l.b16 %v1641
        %v1665 = vunpack.c.h.b16 %v1641
        %v1666 = vpack.c.b16 %v1664, %v1662
        %v1667 = vpack.c.b16 %v1665, %v1663
        %v1672 = vunpack.c.l.b16 %v1642
        %v1673 = vunpack.c.h.b16 %v1642
        %v1674 = vunpack.c.l.b16 %v1643
        %v1675 = vunpack.c.h.b16 %v1643
        %v1676 = vpack.c.b16 %v1674, %v1672
        %v1677 = vpack.c.b16 %v1675, %v1673
        %v1682 = vunpack.c.l.b16 %v1644
        %v1683 = vunpack.c.h.b16 %v1644
        %v1684 = vunpack.c.l.b16 %v1645
        %v1685 = vunpack.c.h.b16 %v1645
        %v1686 = vpack.c.b16 %v1684, %v1682
        %v1687 = vpack.c.b16 %v1685, %v1683
        %v1692 = vunpack.c.l.b16 %v1646
        %v1693 = vunpack.c.h.b16 %v1646
        %v1694 = vunpack.c.l.b16 %v1647
        %v1695 = vunpack.c.h.b16 %v1647
        %v1696 = vpack.c.b16 %v1694, %v1692
        %v1697 = vpack.c.b16 %v1695, %v1693
        %v1702 = vunpack.c.l.b16 %v1648
        %v1703 = vunpack.c.h.b16 %v1648
        %v1704 = vunpack.c.l.b16 %v1649
        %v1705 = vunpack.c.h.b16 %v1649
        %v1706 = vpack.c.b16 %v1704, %v1702
        %v1707 = vpack.c.b16 %v1705, %v1703
        %1711 = vset.pattern.permute.xlu0 0
        %1712 = vperm.xlu0 %1711, %v1594
        %v1713 = vpop.permute.xlu0 %1712
        %1716 = vset.pattern.permute.xlu0 0
        %1717 = vperm.xlu0 %1716, %v1595
        %v1718 = vpop.permute.xlu0 %1717
        %v1722 = vunpack.c.l.b16 %v1590
        %v1723 = vunpack.c.h.b16 %v1590
        %v1724 = vunpack.c.l.b16 %v1591
        %v1725 = vunpack.c.h.b16 %v1591
        %v1726 = vpack.c.b16 %v1724, %v1722
        %v1727 = vpack.c.b16 %v1725, %v1723
        %v1730 = vsel %vm875, %v1727, 0
        %1732 = vmatpush.bf16.msra.mxu0 %v1666
        %1733 = vmatpush.bf16.msra.mxu0 %v1656
        %1734 = vmatpush.bf16.msra.mxu0 %v1706
        %1735 = vmatpush.bf16.msra.mxu0 %v1696
        %1736 = vmatpush.bf16.msra.mxu0 %v1686
        %1737 = vmatpush.bf16.msra.mxu0 %v1676
        %1738 = vmatpush.bf16.msra.mxu0 %v1666
        %1739 = vmatpush.bf16.msra.mxu0 %v1656
        %1740 = vmatmul.bf16.gmra.mxu0 %v1726
        %v1741 = vpop.f32.mrf.mxu0
        %v1742 = vadd.f32 %v1713, %v1741
        %v1743 = vpop.f32.mrf.mxu0
        %v1744 = vadd.f32 %v1718, %v1743
        %1745 = vdwg.mxu0
        %1746 = vmatpush.bf16.msra.mxu0 0
        %1747 = vmatpush.bf16.msra.mxu0 0
        %1748 = vmatpush.bf16.msra.mxu0 0
        %1749 = vmatpush.bf16.msra.mxu0 0
        %1750 = vmatpush.bf16.msra.mxu0 0
        %1751 = vmatpush.bf16.msra.mxu0 0
        %1752 = vmatpush.bf16.msra.mxu0 0
        %1753 = vmatpush.bf16.msra.mxu0 %v1676
        %1754 = vmatmul.bf16.gmra.mxu0 %v1730
        %v1755 = vpop.f32.mrf.mxu0
        %v1756 = vadd.f32 %v1742, %v1755
        %v1757 = vpop.f32.mrf.mxu0
        %v1758 = vadd.f32 %v1744, %v1757
        %1759 = vdwg.mxu0
        %1760 = vmatpush.bf16.msra.mxu0 %v1667
        %1761 = vmatpush.bf16.msra.mxu0 %v1657
        %1762 = vmatpush.bf16.msra.mxu0 %v1707
        %1763 = vmatpush.bf16.msra.mxu0 %v1697
        %1764 = vmatpush.bf16.msra.mxu0 %v1687
        %1765 = vmatpush.bf16.msra.mxu0 %v1677
        %1766 = vmatpush.bf16.msra.mxu0 %v1667
        %1767 = vmatpush.bf16.msra.mxu0 %v1657
        %1768 = vmatmul.bf16.gmra.mxu0 %v1726
        %v1769 = vpop.f32.mrf.mxu0
        %v1770 = vadd.f32 %v1713, %v1769
        %v1771 = vpop.f32.mrf.mxu0
        %v1772 = vadd.f32 %v1718, %v1771
        %1773 = vdwg.mxu0
        %1774 = vmatpush.bf16.msra.mxu0 0
        %1775 = vmatpush.bf16.msra.mxu0 0
        %1776 = vmatpush.bf16.msra.mxu0 0
        %1777 = vmatpush.bf16.msra.mxu0 0
        %1778 = vmatpush.bf16.msra.mxu0 0
        %1779 = vmatpush.bf16.msra.mxu0 0
        %1780 = vmatpush.bf16.msra.mxu0 0
        %1781 = vmatpush.bf16.msra.mxu0 %v1677
        %1782 = vmatmul.bf16.gmra.mxu0 %v1730
        %v1783 = vpop.f32.mrf.mxu0
        %v1784 = vadd.f32 %v1770, %v1783
        %v1785 = vpop.f32.mrf.mxu0
        %v1786 = vadd.f32 %v1772, %v1785
        %1787 = vdwg.mxu0
        %v1788 = vmax.f32 %v1756, 0.0
        %v1789 = vmax.f32 %v1784, 0.0
        %v1790 = vmax.f32 %v1758, 0.0
        %v1791 = vmax.f32 %v1786, 0.0
        %s1792 = sadd.s32 %s610, 4
        %s1793 = smul.u32 %s1792, 4
        %s1794 = smul.addr %s1793, 4
        %s1795 = scalar_lea.vmem %s3, %s1794
        %v1796 = vld [vmem:[%s1795] sm:$0xff]
        %v1797 = vld [vmem:[%s1795 + $0x8] sm:$0xff]
        %s1798 = smul.u32 %s1792, 16
        %s1799 = scalar_lea.vmem %s4, %s1798
        %v1800 = vld [vmem:[%s1799] sm:$0xff]
        %v1801 = vld [vmem:[%s1799 + $0x8] sm:$0xff]
        %1802 = vrot.lane.b32.xlu0 %v1788, 4
        %v1803 = vpop.permute.xlu0 %1802
        %1804 = vrot.lane.b32.xlu0 %v1790, 4
        %v1805 = vpop.permute.xlu0 %1804
        %1806 = vrot.lane.b32.xlu0 %v1789, 4
        %v1807 = vpop.permute.xlu0 %1806
        %1808 = vrot.lane.b32.xlu0 %v1791, 4
        %v1809 = vpop.permute.xlu0 %1808
        %v1810 = vsel %vm1299, %v1803, %v1807
        %v1811 = vsel %vm1299, %v1805, %v1809
        %v1812 = vsel %vm1299, %v1807, %v1803
        %v1813 = vsel %vm1299, %v1809, %v1805
        %1814 = vrot.lane.b32.xlu0 %v1788, 116
        %v1815 = vpop.permute.xlu0 %1814
        %1816 = vrot.lane.b32.xlu0 %v1790, 116
        %v1817 = vpop.permute.xlu0 %1816
        %1818 = vrot.lane.b32.xlu0 %v1789, 116
        %v1819 = vpop.permute.xlu0 %1818
        %1820 = vrot.lane.b32.xlu0 %v1791, 116
        %v1821 = vpop.permute.xlu0 %1820
        %v1822 = vsel %vm1312, %v1815, %v1819
        %v1823 = vsel %vm1312, %v1817, %v1821
        %v1824 = vsel %vm1312, %v1819, %v1815
        %v1825 = vsel %vm1312, %v1821, %v1817
        %v1826 = vsel %vm1319, %v1812, %v1822
        %v1827 = vsel %vm1320, %v1810, %v1824
        %v1828 = vsel %vm1319, %v1813, %v1823
        %v1829 = vsel %vm1320, %v1811, %v1825
        %1830 = vrot.lane.b32.xlu0 %v1788, 124
        %v1831 = vpop.permute.xlu0 %1830
        %1832 = vrot.lane.b32.xlu0 %v1790, 124
        %v1833 = vpop.permute.xlu0 %1832
        %1834 = vrot.lane.b32.xlu0 %v1789, 124
        %v1835 = vpop.permute.xlu0 %1834
        %1836 = vrot.lane.b32.xlu0 %v1791, 124
        %v1837 = vpop.permute.xlu0 %1836
        %v1838 = vsel %vm1333, %v1831, %v1835
        %v1839 = vsel %vm1333, %v1833, %v1837
        %v1840 = vsel %vm1333, %v1835, %v1831
        %v1841 = vsel %vm1333, %v1837, %v1833
        %1842 = vrot.lane.b32.xlu0 %v1788, 12
        %v1843 = vpop.permute.xlu0 %1842
        %1844 = vrot.lane.b32.xlu0 %v1790, 12
        %v1845 = vpop.permute.xlu0 %1844
        %1846 = vrot.lane.b32.xlu0 %v1789, 12
        %v1847 = vpop.permute.xlu0 %1846
        %1848 = vrot.lane.b32.xlu0 %v1791, 12
        %v1849 = vpop.permute.xlu0 %1848
        %v1850 = vsel %vm1346, %v1843, %v1847
        %v1851 = vsel %vm1346, %v1845, %v1849
        %v1852 = vsel %vm1346, %v1847, %v1843
        %v1853 = vsel %vm1346, %v1849, %v1845
        %v1854 = vsel %vm1353, %v1838, %v1852
        %v1855 = vsel %vm1354, %v1840, %v1850
        %v1856 = vsel %vm1353, %v1839, %v1853
        %v1857 = vsel %vm1354, %v1841, %v1851
        %1858 = vrot.lane.b32.xlu0 %v1826, 64
        %v1859 = vpop.permute.xlu0 %1858
        %1860 = vrot.lane.b32.xlu0 %v1828, 64
        %v1861 = vpop.permute.xlu0 %1860
        %1862 = vrot.lane.b32.xlu0 %v1827, 64
        %v1863 = vpop.permute.xlu0 %1862
        %1864 = vrot.lane.b32.xlu0 %v1829, 64
        %v1865 = vpop.permute.xlu0 %1864
        %v1866 = vsel %vm1367, %v1859, %v1863
        %v1867 = vsel %vm1367, %v1861, %v1865
        %v1868 = vsel %vm1367, %v1863, %v1859
        %v1869 = vsel %vm1367, %v1865, %v1861
        %v1870 = vpack.c.bf16 %v1866, %v1868
        %v1871 = vpack.c.bf16 %v1867, %v1869
        %1872 = vrot.lane.b32.xlu0 %v1788, 64
        %v1873 = vpop.permute.xlu0 %1872
        %1874 = vrot.lane.b32.xlu0 %v1790, 64
        %v1875 = vpop.permute.xlu0 %1874
        %1876 = vrot.lane.b32.xlu0 %v1789, 64
        %v1877 = vpop.permute.xlu0 %1876
        %1878 = vrot.lane.b32.xlu0 %v1791, 64
        %v1879 = vpop.permute.xlu0 %1878
        %v1880 = vsel %vm1367, %v1873, %v1877
        %v1881 = vsel %vm1367, %v1875, %v1879
        %v1882 = vsel %vm1367, %v1877, %v1873
        %v1883 = vsel %vm1367, %v1879, %v1875
        %v1884 = vpack.c.bf16 %v1880, %v1882
        %v1885 = vpack.c.bf16 %v1881, %v1883
        %1886 = vrot.lane.b32.xlu0 %v1854, 64
        %v1887 = vpop.permute.xlu0 %1886
        %1888 = vrot.lane.b32.xlu0 %v1856, 64
        %v1889 = vpop.permute.xlu0 %1888
        %1890 = vrot.lane.b32.xlu0 %v1855, 64
        %v1891 = vpop.permute.xlu0 %1890
        %1892 = vrot.lane.b32.xlu0 %v1857, 64
        %v1893 = vpop.permute.xlu0 %1892
        %v1894 = vsel %vm1367, %v1887, %v1891
        %v1895 = vsel %vm1367, %v1889, %v1893
        %v1896 = vsel %vm1367, %v1891, %v1887
        %v1897 = vsel %vm1367, %v1893, %v1889
        %v1898 = vpack.c.bf16 %v1894, %v1896
        %v1899 = vpack.c.bf16 %v1895, %v1897
        %v1900 = vpack.c.bf16 %v1827, %v1826
        %v1901 = vpack.c.bf16 %v1829, %v1828
        %v1902 = vpack.c.bf16 %v1789, %v1788
        %v1903 = vpack.c.bf16 %v1791, %v1790
        %v1904 = vpack.c.bf16 %v1855, %v1854
        %v1905 = vpack.c.bf16 %v1857, %v1856
        %v1906 = vpack.c.bf16 %v1868, %v1866
        %v1907 = vpack.c.bf16 %v1869, %v1867
        %v1908 = vpack.c.bf16 %v1882, %v1880
        %v1909 = vpack.c.bf16 %v1883, %v1881
        %v1910 = vpack.c.bf16 %v1896, %v1894
        %v1911 = vpack.c.bf16 %v1897, %v1895
        %v1914 = vunpack.c.l.b16 %v1870
        %v1915 = vunpack.c.h.b16 %v1870
        %v1916 = vunpack.c.l.b16 %v1871
        %v1917 = vunpack.c.h.b16 %v1871
        %v1918 = vpack.c.b16 %v1916, %v1914
        %v1919 = vpack.c.b16 %v1917, %v1915
        %v1924 = vunpack.c.l.b16 %v1884
        %v1925 = vunpack.c.h.b16 %v1884
        %v1926 = vunpack.c.l.b16 %v1885
        %v1927 = vunpack.c.h.b16 %v1885
        %v1928 = vpack.c.b16 %v1926, %v1924
        %v1929 = vpack.c.b16 %v1927, %v1925
        %v1934 = vunpack.c.l.b16 %v1898
        %v1935 = vunpack.c.h.b16 %v1898
        %v1936 = vunpack.c.l.b16 %v1899
        %v1937 = vunpack.c.h.b16 %v1899
        %v1938 = vpack.c.b16 %v1936, %v1934
        %v1939 = vpack.c.b16 %v1937, %v1935
        %v1944 = vunpack.c.l.b16 %v1900
        %v1945 = vunpack.c.h.b16 %v1900
        %v1946 = vunpack.c.l.b16 %v1901
        %v1947 = vunpack.c.h.b16 %v1901
        %v1948 = vpack.c.b16 %v1946, %v1944
        %v1949 = vpack.c.b16 %v1947, %v1945
        %v1954 = vunpack.c.l.b16 %v1902
        %v1955 = vunpack.c.h.b16 %v1902
        %v1956 = vunpack.c.l.b16 %v1903
        %v1957 = vunpack.c.h.b16 %v1903
        %v1958 = vpack.c.b16 %v1956, %v1954
        %v1959 = vpack.c.b16 %v1957, %v1955
        %v1964 = vunpack.c.l.b16 %v1904
        %v1965 = vunpack.c.h.b16 %v1904
        %v1966 = vunpack.c.l.b16 %v1905
        %v1967 = vunpack.c.h.b16 %v1905
        %v1968 = vpack.c.b16 %v1966, %v1964
        %v1969 = vpack.c.b16 %v1967, %v1965
        %v1974 = vunpack.c.l.b16 %v1906
        %v1975 = vunpack.c.h.b16 %v1906
        %v1976 = vunpack.c.l.b16 %v1907
        %v1977 = vunpack.c.h.b16 %v1907
        %v1978 = vpack.c.b16 %v1976, %v1974
        %v1979 = vpack.c.b16 %v1977, %v1975
        %v1984 = vunpack.c.l.b16 %v1908
        %v1985 = vunpack.c.h.b16 %v1908
        %v1986 = vunpack.c.l.b16 %v1909
        %v1987 = vunpack.c.h.b16 %v1909
        %v1988 = vpack.c.b16 %v1986, %v1984
        %v1989 = vpack.c.b16 %v1987, %v1985
        %v1994 = vunpack.c.l.b16 %v1910
        %v1995 = vunpack.c.h.b16 %v1910
        %v1996 = vunpack.c.l.b16 %v1911
        %v1997 = vunpack.c.h.b16 %v1911
        %v1998 = vpack.c.b16 %v1996, %v1994
        %v1999 = vpack.c.b16 %v1997, %v1995
        %2003 = vset.pattern.permute.xlu0 0
        %2004 = vperm.xlu0 %2003, %v1800
        %v2005 = vpop.permute.xlu0 %2004
        %2008 = vset.pattern.permute.xlu0 0
        %2009 = vperm.xlu0 %2008, %v1801
        %v2010 = vpop.permute.xlu0 %2009
        %v2014 = vunpack.c.l.b16 %v1796
        %v2015 = vunpack.c.h.b16 %v1796
        %v2016 = vunpack.c.l.b16 %v1797
        %v2017 = vunpack.c.h.b16 %v1797
        %v2018 = vpack.c.b16 %v2016, %v2014
        %v2019 = vpack.c.b16 %v2017, %v2015
        %v2022 = vsel %vm875, %v2019, 0
        %2024 = vmatpush.bf16.msra.mxu0 %v1988
        %2025 = vmatpush.bf16.msra.mxu0 %v1978
        %2026 = vmatpush.bf16.msra.mxu0 %v1968
        %2027 = vmatpush.bf16.msra.mxu0 %v1958
        %2028 = vmatpush.bf16.msra.mxu0 %v1948
        %2029 = vmatpush.bf16.msra.mxu0 %v1938
        %2030 = vmatpush.bf16.msra.mxu0 %v1928
        %2031 = vmatpush.bf16.msra.mxu0 %v1918
        %2032 = vmatmul.bf16.gmra.mxu0 %v2018
        %v2033 = vpop.f32.mrf.mxu0
        %v2034 = vadd.f32 %v2005, %v2033
        %v2035 = vpop.f32.mrf.mxu0
        %v2036 = vadd.f32 %v2010, %v2035
        %2037 = vdwg.mxu0
        %2038 = vmatpush.bf16.msra.mxu0 0
        %2039 = vmatpush.bf16.msra.mxu0 0
        %2040 = vmatpush.bf16.msra.mxu0 0
        %2041 = vmatpush.bf16.msra.mxu0 0
        %2042 = vmatpush.bf16.msra.mxu0 0
        %2043 = vmatpush.bf16.msra.mxu0 0
        %2044 = vmatpush.bf16.msra.mxu0 0
        %2045 = vmatpush.bf16.msra.mxu0 %v1998
        %2046 = vmatmul.bf16.gmra.mxu0 %v2022
        %v2047 = vpop.f32.mrf.mxu0
        %v2048 = vadd.f32 %v2034, %v2047
        %v2049 = vpop.f32.mrf.mxu0
        %v2050 = vadd.f32 %v2036, %v2049
        %2051 = vdwg.mxu0
        %2052 = vmatpush.bf16.msra.mxu0 %v1989
        %2053 = vmatpush.bf16.msra.mxu0 %v1979
        %2054 = vmatpush.bf16.msra.mxu0 %v1969
        %2055 = vmatpush.bf16.msra.mxu0 %v1959
        %2056 = vmatpush.bf16.msra.mxu0 %v1949
        %2057 = vmatpush.bf16.msra.mxu0 %v1939
        %2058 = vmatpush.bf16.msra.mxu0 %v1929
        %2059 = vmatpush.bf16.msra.mxu0 %v1919
        %2060 = vmatmul.bf16.gmra.mxu0 %v2018
        %v2061 = vpop.f32.mrf.mxu0
        %v2062 = vadd.f32 %v2005, %v2061
        %v2063 = vpop.f32.mrf.mxu0
        %v2064 = vadd.f32 %v2010, %v2063
        %2065 = vdwg.mxu0
        %2066 = vmatpush.bf16.msra.mxu0 0
        %2067 = vmatpush.bf16.msra.mxu0 0
        %2068 = vmatpush.bf16.msra.mxu0 0
        %2069 = vmatpush.bf16.msra.mxu0 0
        %2070 = vmatpush.bf16.msra.mxu0 0
        %2071 = vmatpush.bf16.msra.mxu0 0
        %2072 = vmatpush.bf16.msra.mxu0 0
        %2073 = vmatpush.bf16.msra.mxu0 %v1999
        %2074 = vmatmul.bf16.gmra.mxu0 %v2022
        %v2075 = vpop.f32.mrf.mxu0
        %v2076 = vadd.f32 %v2062, %v2075
        %v2077 = vpop.f32.mrf.mxu0
        %v2078 = vadd.f32 %v2064, %v2077
        %2079 = vdwg.mxu0
        %v2080 = vmax.f32 %v2048, 0.0
        %v2081 = vmax.f32 %v2076, 0.0
        %v2082 = vmax.f32 %v2050, 0.0
        %v2083 = vmax.f32 %v2078, 0.0
        %s2084 = sadd.s32 %s610, 5
        %s2085 = smul.u32 %s2084, 4
        %s2086 = smul.addr %s2085, 4
        %s2087 = scalar_lea.vmem %s3, %s2086
        %v2088 = vld [vmem:[%s2087] sm:$0xff]
        %v2089 = vld [vmem:[%s2087 + $0x8] sm:$0xff]
        %s2090 = smul.u32 %s2084, 16
        %s2091 = scalar_lea.vmem %s4, %s2090
        %v2092 = vld [vmem:[%s2091] sm:$0xff]
        %v2093 = vld [vmem:[%s2091 + $0x8] sm:$0xff]
        %2094 = vrot.lane.b32.xlu0 %v2080, 2
        %v2095 = vpop.permute.xlu0 %2094
        %2096 = vrot.lane.b32.xlu0 %v2082, 2
        %v2097 = vpop.permute.xlu0 %2096
        %2098 = vrot.lane.b32.xlu0 %v2081, 2
        %v2099 = vpop.permute.xlu0 %2098
        %2100 = vrot.lane.b32.xlu0 %v2083, 2
        %v2101 = vpop.permute.xlu0 %2100
        %v2102 = vsel %vm957, %v2095, %v2099
        %v2103 = vsel %vm957, %v2097, %v2101
        %v2104 = vsel %vm957, %v2099, %v2095
        %v2105 = vsel %vm957, %v2101, %v2097
        %2106 = vrot.lane.b32.xlu0 %v2080, 114
        %v2107 = vpop.permute.xlu0 %2106
        %2108 = vrot.lane.b32.xlu0 %v2082, 114
        %v2109 = vpop.permute.xlu0 %2108
        %2110 = vrot.lane.b32.xlu0 %v2081, 114
        %v2111 = vpop.permute.xlu0 %2110
        %2112 = vrot.lane.b32.xlu0 %v2083, 114
        %v2113 = vpop.permute.xlu0 %2112
        %v2114 = vsel %vm970, %v2107, %v2111
        %v2115 = vsel %vm970, %v2109, %v2113
        %v2116 = vsel %vm970, %v2111, %v2107
        %v2117 = vsel %vm970, %v2113, %v2109
        %v2118 = vsel %vm977, %v2104, %v2114
        %v2119 = vsel %vm978, %v2102, %v2116
        %v2120 = vsel %vm977, %v2105, %v2115
        %v2121 = vsel %vm978, %v2103, %v2117
        %2122 = vrot.lane.b32.xlu0 %v2080, 126
        %v2123 = vpop.permute.xlu0 %2122
        %2124 = vrot.lane.b32.xlu0 %v2082, 126
        %v2125 = vpop.permute.xlu0 %2124
        %2126 = vrot.lane.b32.xlu0 %v2081, 126
        %v2127 = vpop.permute.xlu0 %2126
        %2128 = vrot.lane.b32.xlu0 %v2083, 126
        %v2129 = vpop.permute.xlu0 %2128
        %v2130 = vsel %vm991, %v2123, %v2127
        %v2131 = vsel %vm991, %v2125, %v2129
        %v2132 = vsel %vm991, %v2127, %v2123
        %v2133 = vsel %vm991, %v2129, %v2125
        %2134 = vrot.lane.b32.xlu0 %v2080, 14
        %v2135 = vpop.permute.xlu0 %2134
        %2136 = vrot.lane.b32.xlu0 %v2082, 14
        %v2137 = vpop.permute.xlu0 %2136
        %2138 = vrot.lane.b32.xlu0 %v2081, 14
        %v2139 = vpop.permute.xlu0 %2138
        %2140 = vrot.lane.b32.xlu0 %v2083, 14
        %v2141 = vpop.permute.xlu0 %2140
        %v2142 = vsel %vm1004, %v2135, %v2139
        %v2143 = vsel %vm1004, %v2137, %v2141
        %v2144 = vsel %vm1004, %v2139, %v2135
        %v2145 = vsel %vm1004, %v2141, %v2137
        %v2146 = vsel %vm1011, %v2130, %v2144
        %v2147 = vsel %vm1012, %v2132, %v2142
        %v2148 = vsel %vm1011, %v2131, %v2145
        %v2149 = vsel %vm1012, %v2133, %v2143
        %2150 = vrot.lane.b32.xlu0 %v2118, 32
        %v2151 = vpop.permute.xlu0 %2150
        %2152 = vrot.lane.b32.xlu0 %v2120, 32
        %v2153 = vpop.permute.xlu0 %2152
        %2154 = vrot.lane.b32.xlu0 %v2119, 32
        %v2155 = vpop.permute.xlu0 %2154
        %2156 = vrot.lane.b32.xlu0 %v2121, 32
        %v2157 = vpop.permute.xlu0 %2156
        %v2158 = vsel %vm1025, %v2151, %v2155
        %v2159 = vsel %vm1025, %v2153, %v2157
        %v2160 = vsel %vm1025, %v2155, %v2151
        %v2161 = vsel %vm1025, %v2157, %v2153
        %v2162 = vpack.c.bf16 %v2158, %v2160
        %v2163 = vpack.c.bf16 %v2159, %v2161
        %2164 = vrot.lane.b32.xlu0 %v2080, 32
        %v2165 = vpop.permute.xlu0 %2164
        %2166 = vrot.lane.b32.xlu0 %v2082, 32
        %v2167 = vpop.permute.xlu0 %2166
        %2168 = vrot.lane.b32.xlu0 %v2081, 32
        %v2169 = vpop.permute.xlu0 %2168
        %2170 = vrot.lane.b32.xlu0 %v2083, 32
        %v2171 = vpop.permute.xlu0 %2170
        %v2172 = vsel %vm1025, %v2165, %v2169
        %v2173 = vsel %vm1025, %v2167, %v2171
        %v2174 = vsel %vm1025, %v2169, %v2165
        %v2175 = vsel %vm1025, %v2171, %v2167
        %v2176 = vpack.c.bf16 %v2172, %v2174
        %v2177 = vpack.c.bf16 %v2173, %v2175
        %2178 = vrot.lane.b32.xlu0 %v2146, 32
        %v2179 = vpop.permute.xlu0 %2178
        %2180 = vrot.lane.b32.xlu0 %v2148, 32
        %v2181 = vpop.permute.xlu0 %2180
        %2182 = vrot.lane.b32.xlu0 %v2147, 32
        %v2183 = vpop.permute.xlu0 %2182
        %2184 = vrot.lane.b32.xlu0 %v2149, 32
        %v2185 = vpop.permute.xlu0 %2184
        %v2186 = vsel %vm1025, %v2179, %v2183
        %v2187 = vsel %vm1025, %v2181, %v2185
        %v2188 = vsel %vm1025, %v2183, %v2179
        %v2189 = vsel %vm1025, %v2185, %v2181
        %v2190 = vpack.c.bf16 %v2186, %v2188
        %v2191 = vpack.c.bf16 %v2187, %v2189
        %v2192 = vpack.c.bf16 %v2119, %v2118
        %v2193 = vpack.c.bf16 %v2121, %v2120
        %v2194 = vpack.c.bf16 %v2081, %v2080
        %v2195 = vpack.c.bf16 %v2083, %v2082
        %v2196 = vpack.c.bf16 %v2147, %v2146
        %v2197 = vpack.c.bf16 %v2149, %v2148
        %2198 = vrot.lane.b32.xlu0 %v2118, 96
        %v2199 = vpop.permute.xlu0 %2198
        %2200 = vrot.lane.b32.xlu0 %v2120, 96
        %v2201 = vpop.permute.xlu0 %2200
        %2202 = vrot.lane.b32.xlu0 %v2119, 96
        %v2203 = vpop.permute.xlu0 %2202
        %2204 = vrot.lane.b32.xlu0 %v2121, 96
        %v2205 = vpop.permute.xlu0 %2204
        %v2206 = vsel %vm1074, %v2199, %v2203
        %v2207 = vsel %vm1074, %v2201, %v2205
        %v2208 = vsel %vm1074, %v2203, %v2199
        %v2209 = vsel %vm1074, %v2205, %v2201
        %v2210 = vpack.c.bf16 %v2208, %v2206
        %v2211 = vpack.c.bf16 %v2209, %v2207
        %2212 = vrot.lane.b32.xlu0 %v2080, 96
        %v2213 = vpop.permute.xlu0 %2212
        %2214 = vrot.lane.b32.xlu0 %v2082, 96
        %v2215 = vpop.permute.xlu0 %2214
        %2216 = vrot.lane.b32.xlu0 %v2081, 96
        %v2217 = vpop.permute.xlu0 %2216
        %2218 = vrot.lane.b32.xlu0 %v2083, 96
        %v2219 = vpop.permute.xlu0 %2218
        %v2220 = vsel %vm1074, %v2213, %v2217
        %v2221 = vsel %vm1074, %v2215, %v2219
        %v2222 = vsel %vm1074, %v2217, %v2213
        %v2223 = vsel %vm1074, %v2219, %v2215
        %v2224 = vpack.c.bf16 %v2222, %v2220
        %v2225 = vpack.c.bf16 %v2223, %v2221
        %2226 = vrot.lane.b32.xlu0 %v2146, 96
        %v2227 = vpop.permute.xlu0 %2226
        %2228 = vrot.lane.b32.xlu0 %v2148, 96
        %v2229 = vpop.permute.xlu0 %2228
        %2230 = vrot.lane.b32.xlu0 %v2147, 96
        %v2231 = vpop.permute.xlu0 %2230
        %2232 = vrot.lane.b32.xlu0 %v2149, 96
        %v2233 = vpop.permute.xlu0 %2232
        %v2234 = vsel %vm1074, %v2227, %v2231
        %v2235 = vsel %vm1074, %v2229, %v2233
        %v2236 = vsel %vm1074, %v2231, %v2227
        %v2237 = vsel %vm1074, %v2233, %v2229
        %v2238 = vpack.c.bf16 %v2236, %v2234
        %v2239 = vpack.c.bf16 %v2237, %v2235
        %v2242 = vunpack.c.l.b16 %v2162
        %v2243 = vunpack.c.h.b16 %v2162
        %v2244 = vunpack.c.l.b16 %v2163
        %v2245 = vunpack.c.h.b16 %v2163
        %v2246 = vpack.c.b16 %v2244, %v2242
        %v2247 = vpack.c.b16 %v2245, %v2243
        %v2252 = vunpack.c.l.b16 %v2176
        %v2253 = vunpack.c.h.b16 %v2176
        %v2254 = vunpack.c.l.b16 %v2177
        %v2255 = vunpack.c.h.b16 %v2177
        %v2256 = vpack.c.b16 %v2254, %v2252
        %v2257 = vpack.c.b16 %v2255, %v2253
        %v2262 = vunpack.c.l.b16 %v2190
        %v2263 = vunpack.c.h.b16 %v2190
        %v2264 = vunpack.c.l.b16 %v2191
        %v2265 = vunpack.c.h.b16 %v2191
        %v2266 = vpack.c.b16 %v2264, %v2262
        %v2267 = vpack.c.b16 %v2265, %v2263
        %v2272 = vunpack.c.l.b16 %v2192
        %v2273 = vunpack.c.h.b16 %v2192
        %v2274 = vunpack.c.l.b16 %v2193
        %v2275 = vunpack.c.h.b16 %v2193
        %v2276 = vpack.c.b16 %v2274, %v2272
        %v2277 = vpack.c.b16 %v2275, %v2273
        %v2282 = vunpack.c.l.b16 %v2194
        %v2283 = vunpack.c.h.b16 %v2194
        %v2284 = vunpack.c.l.b16 %v2195
        %v2285 = vunpack.c.h.b16 %v2195
        %v2286 = vpack.c.b16 %v2284, %v2282
        %v2287 = vpack.c.b16 %v2285, %v2283
        %v2292 = vunpack.c.l.b16 %v2196
        %v2293 = vunpack.c.h.b16 %v2196
        %v2294 = vunpack.c.l.b16 %v2197
        %v2295 = vunpack.c.h.b16 %v2197
        %v2296 = vpack.c.b16 %v2294, %v2292
        %v2297 = vpack.c.b16 %v2295, %v2293
        %v2302 = vunpack.c.l.b16 %v2210
        %v2303 = vunpack.c.h.b16 %v2210
        %v2304 = vunpack.c.l.b16 %v2211
        %v2305 = vunpack.c.h.b16 %v2211
        %v2306 = vpack.c.b16 %v2304, %v2302
        %v2307 = vpack.c.b16 %v2305, %v2303
        %v2312 = vunpack.c.l.b16 %v2224
        %v2313 = vunpack.c.h.b16 %v2224
        %v2314 = vunpack.c.l.b16 %v2225
        %v2315 = vunpack.c.h.b16 %v2225
        %v2316 = vpack.c.b16 %v2314, %v2312
        %v2317 = vpack.c.b16 %v2315, %v2313
        %v2322 = vunpack.c.l.b16 %v2238
        %v2323 = vunpack.c.h.b16 %v2238
        %v2324 = vunpack.c.l.b16 %v2239
        %v2325 = vunpack.c.h.b16 %v2239
        %v2326 = vpack.c.b16 %v2324, %v2322
        %v2327 = vpack.c.b16 %v2325, %v2323
        %2331 = vset.pattern.permute.xlu0 0
        %2332 = vperm.xlu0 %2331, %v2092
        %v2333 = vpop.permute.xlu0 %2332
        %2336 = vset.pattern.permute.xlu0 0
        %2337 = vperm.xlu0 %2336, %v2093
        %v2338 = vpop.permute.xlu0 %2337
        %v2342 = vunpack.c.l.b16 %v2088
        %v2343 = vunpack.c.h.b16 %v2088
        %v2344 = vunpack.c.l.b16 %v2089
        %v2345 = vunpack.c.h.b16 %v2089
        %v2346 = vpack.c.b16 %v2344, %v2342
        %v2347 = vpack.c.b16 %v2345, %v2343
        %v2350 = vsel %vm875, %v2347, 0
        %2352 = vmatpush.bf16.msra.mxu0 %v2316
        %2353 = vmatpush.bf16.msra.mxu0 %v2306
        %2354 = vmatpush.bf16.msra.mxu0 %v2296
        %2355 = vmatpush.bf16.msra.mxu0 %v2286
        %2356 = vmatpush.bf16.msra.mxu0 %v2276
        %2357 = vmatpush.bf16.msra.mxu0 %v2266
        %2358 = vmatpush.bf16.msra.mxu0 %v2256
        %2359 = vmatpush.bf16.msra.mxu0 %v2246
        %2360 = vmatmul.bf16.gmra.mxu0 %v2346
        %v2361 = vpop.f32.mrf.mxu0
        %v2362 = vadd.f32 %v2333, %v2361
        %v2363 = vpop.f32.mrf.mxu0
        %v2364 = vadd.f32 %v2338, %v2363
        %2365 = vdwg.mxu0
        %2366 = vmatpush.bf16.msra.mxu0 0
        %2367 = vmatpush.bf16.msra.mxu0 0
        %2368 = vmatpush.bf16.msra.mxu0 0
        %2369 = vmatpush.bf16.msra.mxu0 0
        %2370 = vmatpush.bf16.msra.mxu0 0
        %2371 = vmatpush.bf16.msra.mxu0 0
        %2372 = vmatpush.bf16.msra.mxu0 0
        %2373 = vmatpush.bf16.msra.mxu0 %v2326
        %2374 = vmatmul.bf16.gmra.mxu0 %v2350
        %v2375 = vpop.f32.mrf.mxu0
        %v2376 = vadd.f32 %v2362, %v2375
        %v2377 = vpop.f32.mrf.mxu0
        %v2378 = vadd.f32 %v2364, %v2377
        %2379 = vdwg.mxu0
        %2380 = vmatpush.bf16.msra.mxu0 %v2317
        %2381 = vmatpush.bf16.msra.mxu0 %v2307
        %2382 = vmatpush.bf16.msra.mxu0 %v2297
        %2383 = vmatpush.bf16.msra.mxu0 %v2287
        %2384 = vmatpush.bf16.msra.mxu0 %v2277
        %2385 = vmatpush.bf16.msra.mxu0 %v2267
        %2386 = vmatpush.bf16.msra.mxu0 %v2257
        %2387 = vmatpush.bf16.msra.mxu0 %v2247
        %2388 = vmatmul.bf16.gmra.mxu0 %v2346
        %v2389 = vpop.f32.mrf.mxu0
        %v2390 = vadd.f32 %v2333, %v2389
        %v2391 = vpop.f32.mrf.mxu0
        %v2392 = vadd.f32 %v2338, %v2391
        %2393 = vdwg.mxu0
        %2394 = vmatpush.bf16.msra.mxu0 0
        %2395 = vmatpush.bf16.msra.mxu0 0
        %2396 = vmatpush.bf16.msra.mxu0 0
        %2397 = vmatpush.bf16.msra.mxu0 0
        %2398 = vmatpush.bf16.msra.mxu0 0
        %2399 = vmatpush.bf16.msra.mxu0 0
        %2400 = vmatpush.bf16.msra.mxu0 0
        %2401 = vmatpush.bf16.msra.mxu0 %v2327
        %2402 = vmatmul.bf16.gmra.mxu0 %v2350
        %v2403 = vpop.f32.mrf.mxu0
        %v2404 = vadd.f32 %v2390, %v2403
        %v2405 = vpop.f32.mrf.mxu0
        %v2406 = vadd.f32 %v2392, %v2405
        %2407 = vdwg.mxu0
        %v2408 = vmax.f32 %v2376, 0.0
        %v2409 = vmax.f32 %v2404, 0.0
        %v2410 = vmax.f32 %v2378, 0.0
        %v2411 = vmax.f32 %v2406, 0.0
        %s2412 = sadd.s32 %s610, 6
        %s2413 = smul.u32 %s2412, 4
        %s2414 = smul.addr %s2413, 4
        %s2415 = scalar_lea.vmem %s3, %s2414
        %v2416 = vld [vmem:[%s2415] sm:$0xff]
        %v2417 = vld [vmem:[%s2415 + $0x8] sm:$0xff]
        %s2418 = smul.u32 %s2412, 16
        %s2419 = scalar_lea.vmem %s4, %s2418
        %v2420 = vld [vmem:[%s2419] sm:$0xff]
        %v2421 = vld [vmem:[%s2419 + $0x8] sm:$0xff]
        %2422 = vrot.lane.b32.xlu0 %v2408, 1
        %v2423 = vpop.permute.xlu0 %2422
        %2424 = vrot.lane.b32.xlu0 %v2410, 1
        %v2425 = vpop.permute.xlu0 %2424
        %2426 = vrot.lane.b32.xlu0 %v2409, 1
        %v2427 = vpop.permute.xlu0 %2426
        %2428 = vrot.lane.b32.xlu0 %v2411, 1
        %v2429 = vpop.permute.xlu0 %2428
        %v2430 = vsel %vm338, %v2423, %v2427
        %v2431 = vsel %vm338, %v2425, %v2429
        %v2432 = vsel %vm338, %v2427, %v2423
        %v2433 = vsel %vm338, %v2429, %v2425
        %2434 = vrot.lane.b32.xlu0 %v2408, 113
        %v2435 = vpop.permute.xlu0 %2434
        %2436 = vrot.lane.b32.xlu0 %v2410, 113
        %v2437 = vpop.permute.xlu0 %2436
        %2438 = vrot.lane.b32.xlu0 %v2409, 113
        %v2439 = vpop.permute.xlu0 %2438
        %2440 = vrot.lane.b32.xlu0 %v2411, 113
        %v2441 = vpop.permute.xlu0 %2440
        %v2442 = vsel %vm350, %v2435, %v2439
        %v2443 = vsel %vm350, %v2437, %v2441
        %v2444 = vsel %vm350, %v2439, %v2435
        %v2445 = vsel %vm350, %v2441, %v2437
        %v2446 = vsel %vm355, %v2432, %v2442
        %v2447 = vsel %vm356, %v2430, %v2444
        %v2448 = vsel %vm355, %v2433, %v2443
        %v2449 = vsel %vm356, %v2431, %v2445
        %2450 = vrot.lane.b32.xlu0 %v2408, 127
        %v2451 = vpop.permute.xlu0 %2450
        %2452 = vrot.lane.b32.xlu0 %v2410, 127
        %v2453 = vpop.permute.xlu0 %2452
        %2454 = vrot.lane.b32.xlu0 %v2409, 127
        %v2455 = vpop.permute.xlu0 %2454
        %2456 = vrot.lane.b32.xlu0 %v2411, 127
        %v2457 = vpop.permute.xlu0 %2456
        %v2458 = vsel %vm368, %v2451, %v2455
        %v2459 = vsel %vm368, %v2453, %v2457
        %v2460 = vsel %vm368, %v2455, %v2451
        %v2461 = vsel %vm368, %v2457, %v2453
        %2462 = vrot.lane.b32.xlu0 %v2408, 15
        %v2463 = vpop.permute.xlu0 %2462
        %2464 = vrot.lane.b32.xlu0 %v2410, 15
        %v2465 = vpop.permute.xlu0 %2464
        %2466 = vrot.lane.b32.xlu0 %v2409, 15
        %v2467 = vpop.permute.xlu0 %2466
        %2468 = vrot.lane.b32.xlu0 %v2411, 15
        %v2469 = vpop.permute.xlu0 %2468
        %v2470 = vsel %vm380, %v2463, %v2467
        %v2471 = vsel %vm380, %v2465, %v2469
        %v2472 = vsel %vm380, %v2467, %v2463
        %v2473 = vsel %vm380, %v2469, %v2465
        %v2474 = vsel %vm385, %v2458, %v2472
        %v2475 = vsel %vm386, %v2460, %v2470
        %v2476 = vsel %vm385, %v2459, %v2473
        %v2477 = vsel %vm386, %v2461, %v2471
        %2478 = vrot.lane.b32.xlu0 %v2446, 16
        %v2479 = vpop.permute.xlu0 %2478
        %2480 = vrot.lane.b32.xlu0 %v2448, 16
        %v2481 = vpop.permute.xlu0 %2480
        %2482 = vrot.lane.b32.xlu0 %v2447, 16
        %v2483 = vpop.permute.xlu0 %2482
        %2484 = vrot.lane.b32.xlu0 %v2449, 16
        %v2485 = vpop.permute.xlu0 %2484
        %v2486 = vsel %vm393, %v2479, %v2483
        %v2487 = vsel %vm393, %v2481, %v2485
        %v2488 = vsel %vm393, %v2483, %v2479
        %v2489 = vsel %vm393, %v2485, %v2481
        %v2490 = vpack.c.bf16 %v2486, %v2488
        %v2491 = vpack.c.bf16 %v2487, %v2489
        %2492 = vrot.lane.b32.xlu0 %v2408, 16
        %v2493 = vpop.permute.xlu0 %2492
        %2494 = vrot.lane.b32.xlu0 %v2410, 16
        %v2495 = vpop.permute.xlu0 %2494
        %2496 = vrot.lane.b32.xlu0 %v2409, 16
        %v2497 = vpop.permute.xlu0 %2496
        %2498 = vrot.lane.b32.xlu0 %v2411, 16
        %v2499 = vpop.permute.xlu0 %2498
        %v2500 = vsel %vm393, %v2493, %v2497
        %v2501 = vsel %vm393, %v2495, %v2499
        %v2502 = vsel %vm393, %v2497, %v2493
        %v2503 = vsel %vm393, %v2499, %v2495
        %v2504 = vpack.c.bf16 %v2500, %v2502
        %v2505 = vpack.c.bf16 %v2501, %v2503
        %2506 = vrot.lane.b32.xlu0 %v2474, 16
        %v2507 = vpop.permute.xlu0 %2506
        %2508 = vrot.lane.b32.xlu0 %v2476, 16
        %v2509 = vpop.permute.xlu0 %2508
        %2510 = vrot.lane.b32.xlu0 %v2475, 16
        %v2511 = vpop.permute.xlu0 %2510
        %2512 = vrot.lane.b32.xlu0 %v2477, 16
        %v2513 = vpop.permute.xlu0 %2512
        %v2514 = vsel %vm393, %v2507, %v2511
        %v2515 = vsel %vm393, %v2509, %v2513
        %v2516 = vsel %vm393, %v2511, %v2507
        %v2517 = vsel %vm393, %v2513, %v2509
        %v2518 = vpack.c.bf16 %v2514, %v2516
        %v2519 = vpack.c.bf16 %v2515, %v2517
        %v2520 = vpack.c.bf16 %v2447, %v2446
        %v2521 = vpack.c.bf16 %v2449, %v2448
        %v2522 = vpack.c.bf16 %v2409, %v2408
        %v2523 = vpack.c.bf16 %v2411, %v2410
        %v2524 = vpack.c.bf16 %v2475, %v2474
        %v2525 = vpack.c.bf16 %v2477, %v2476
        %2526 = vrot.lane.b32.xlu0 %v2446, 112
        %v2527 = vpop.permute.xlu0 %2526
        %2528 = vrot.lane.b32.xlu0 %v2448, 112
        %v2529 = vpop.permute.xlu0 %2528
        %2530 = vrot.lane.b32.xlu0 %v2447, 112
        %v2531 = vpop.permute.xlu0 %2530
        %2532 = vrot.lane.b32.xlu0 %v2449, 112
        %v2533 = vpop.permute.xlu0 %2532
        %v2534 = vsel %vm428, %v2527, %v2531
        %v2535 = vsel %vm428, %v2529, %v2533
        %v2536 = vsel %vm428, %v2531, %v2527
        %v2537 = vsel %vm428, %v2533, %v2529
        %v2538 = vpack.c.bf16 %v2536, %v2534
        %v2539 = vpack.c.bf16 %v2537, %v2535
        %2540 = vrot.lane.b32.xlu0 %v2408, 112
        %v2541 = vpop.permute.xlu0 %2540
        %2542 = vrot.lane.b32.xlu0 %v2410, 112
        %v2543 = vpop.permute.xlu0 %2542
        %2544 = vrot.lane.b32.xlu0 %v2409, 112
        %v2545 = vpop.permute.xlu0 %2544
        %2546 = vrot.lane.b32.xlu0 %v2411, 112
        %v2547 = vpop.permute.xlu0 %2546
        %v2548 = vsel %vm428, %v2541, %v2545
        %v2549 = vsel %vm428, %v2543, %v2547
        %v2550 = vsel %vm428, %v2545, %v2541
        %v2551 = vsel %vm428, %v2547, %v2543
        %v2552 = vpack.c.bf16 %v2550, %v2548
        %v2553 = vpack.c.bf16 %v2551, %v2549
        %2554 = vrot.lane.b32.xlu0 %v2474, 112
        %v2555 = vpop.permute.xlu0 %2554
        %2556 = vrot.lane.b32.xlu0 %v2476, 112
        %v2557 = vpop.permute.xlu0 %2556
        %2558 = vrot.lane.b32.xlu0 %v2475, 112
        %v2559 = vpop.permute.xlu0 %2558
        %2560 = vrot.lane.b32.xlu0 %v2477, 112
        %v2561 = vpop.permute.xlu0 %2560
        %v2562 = vsel %vm428, %v2555, %v2559
        %v2563 = vsel %vm428, %v2557, %v2561
        %v2564 = vsel %vm428, %v2559, %v2555
        %v2565 = vsel %vm428, %v2561, %v2557
        %v2566 = vpack.c.bf16 %v2564, %v2562
        %v2567 = vpack.c.bf16 %v2565, %v2563
        %v2570 = vunpack.c.l.b16 %v2490
        %v2571 = vunpack.c.h.b16 %v2490
        %v2572 = vunpack.c.l.b16 %v2491
        %v2573 = vunpack.c.h.b16 %v2491
        %v2574 = vpack.c.b16 %v2572, %v2570
        %v2575 = vpack.c.b16 %v2573, %v2571
        %v2580 = vunpack.c.l.b16 %v2504
        %v2581 = vunpack.c.h.b16 %v2504
        %v2582 = vunpack.c.l.b16 %v2505
        %v2583 = vunpack.c.h.b16 %v2505
        %v2584 = vpack.c.b16 %v2582, %v2580
        %v2585 = vpack.c.b16 %v2583, %v2581
        %v2590 = vunpack.c.l.b16 %v2518
        %v2591 = vunpack.c.h.b16 %v2518
        %v2592 = vunpack.c.l.b16 %v2519
        %v2593 = vunpack.c.h.b16 %v2519
        %v2594 = vpack.c.b16 %v2592, %v2590
        %v2595 = vpack.c.b16 %v2593, %v2591
        %v2600 = vunpack.c.l.b16 %v2520
        %v2601 = vunpack.c.h.b16 %v2520
        %v2602 = vunpack.c.l.b16 %v2521
        %v2603 = vunpack.c.h.b16 %v2521
        %v2604 = vpack.c.b16 %v2602, %v2600
        %v2605 = vpack.c.b16 %v2603, %v2601
        %v2610 = vunpack.c.l.b16 %v2522
        %v2611 = vunpack.c.h.b16 %v2522
        %v2612 = vunpack.c.l.b16 %v2523
        %v2613 = vunpack.c.h.b16 %v2523
        %v2614 = vpack.c.b16 %v2612, %v2610
        %v2615 = vpack.c.b16 %v2613, %v2611
        %v2620 = vunpack.c.l.b16 %v2524
        %v2621 = vunpack.c.h.b16 %v2524
        %v2622 = vunpack.c.l.b16 %v2525
        %v2623 = vunpack.c.h.b16 %v2525
        %v2624 = vpack.c.b16 %v2622, %v2620
        %v2625 = vpack.c.b16 %v2623, %v2621
        %v2630 = vunpack.c.l.b16 %v2538
        %v2631 = vunpack.c.h.b16 %v2538
        %v2632 = vunpack.c.l.b16 %v2539
        %v2633 = vunpack.c.h.b16 %v2539
        %v2634 = vpack.c.b16 %v2632, %v2630
        %v2635 = vpack.c.b16 %v2633, %v2631
        %v2640 = vunpack.c.l.b16 %v2552
        %v2641 = vunpack.c.h.b16 %v2552
        %v2642 = vunpack.c.l.b16 %v2553
        %v2643 = vunpack.c.h.b16 %v2553
        %v2644 = vpack.c.b16 %v2642, %v2640
        %v2645 = vpack.c.b16 %v2643, %v2641
        %v2650 = vunpack.c.l.b16 %v2566
        %v2651 = vunpack.c.h.b16 %v2566
        %v2652 = vunpack.c.l.b16 %v2567
        %v2653 = vunpack.c.h.b16 %v2567
        %v2654 = vpack.c.b16 %v2652, %v2650
        %v2655 = vpack.c.b16 %v2653, %v2651
        %2659 = vset.pattern.permute.xlu0 0
        %2660 = vperm.xlu0 %2659, %v2420
        %v2661 = vpop.permute.xlu0 %2660
        %2664 = vset.pattern.permute.xlu0 0
        %2665 = vperm.xlu0 %2664, %v2421
        %v2666 = vpop.permute.xlu0 %2665
        %v2670 = vunpack.c.l.b16 %v2416
        %v2671 = vunpack.c.h.b16 %v2416
        %v2672 = vunpack.c.l.b16 %v2417
        %v2673 = vunpack.c.h.b16 %v2417
        %v2674 = vpack.c.b16 %v2672, %v2670
        %v2675 = vpack.c.b16 %v2673, %v2671
        %v2678 = vsel %vm875, %v2675, 0
        %2680 = vmatpush.bf16.msra.mxu0 %v2644
        %2681 = vmatpush.bf16.msra.mxu0 %v2634
        %2682 = vmatpush.bf16.msra.mxu0 %v2624
        %2683 = vmatpush.bf16.msra.mxu0 %v2614
        %2684 = vmatpush.bf16.msra.mxu0 %v2604
        %2685 = vmatpush.bf16.msra.mxu0 %v2594
        %2686 = vmatpush.bf16.msra.mxu0 %v2584
        %2687 = vmatpush.bf16.msra.mxu0 %v2574
        %2688 = vmatmul.bf16.gmra.mxu0 %v2674
        %v2689 = vpop.f32.mrf.mxu0
        %v2690 = vadd.f32 %v2661, %v2689
        %v2691 = vpop.f32.mrf.mxu0
        %v2692 = vadd.f32 %v2666, %v2691
        %2693 = vdwg.mxu0
        %2694 = vmatpush.bf16.msra.mxu0 0
        %2695 = vmatpush.bf16.msra.mxu0 0
        %2696 = vmatpush.bf16.msra.mxu0 0
        %2697 = vmatpush.bf16.msra.mxu0 0
        %2698 = vmatpush.bf16.msra.mxu0 0
        %2699 = vmatpush.bf16.msra.mxu0 0
        %2700 = vmatpush.bf16.msra.mxu0 0
        %2701 = vmatpush.bf16.msra.mxu0 %v2654
        %2702 = vmatmul.bf16.gmra.mxu0 %v2678
        %v2703 = vpop.f32.mrf.mxu0
        %v2704 = vadd.f32 %v2690, %v2703
        %v2705 = vpop.f32.mrf.mxu0
        %v2706 = vadd.f32 %v2692, %v2705
        %2707 = vdwg.mxu0
        %2708 = vmatpush.bf16.msra.mxu0 %v2645
        %2709 = vmatpush.bf16.msra.mxu0 %v2635
        %2710 = vmatpush.bf16.msra.mxu0 %v2625
        %2711 = vmatpush.bf16.msra.mxu0 %v2615
        %2712 = vmatpush.bf16.msra.mxu0 %v2605
        %2713 = vmatpush.bf16.msra.mxu0 %v2595
        %2714 = vmatpush.bf16.msra.mxu0 %v2585
        %2715 = vmatpush.bf16.msra.mxu0 %v2575
        %2716 = vmatmul.bf16.gmra.mxu0 %v2674
        %v2717 = vpop.f32.mrf.mxu0
        %v2718 = vadd.f32 %v2661, %v2717
        %v2719 = vpop.f32.mrf.mxu0
        %v2720 = vadd.f32 %v2666, %v2719
        %2721 = vdwg.mxu0
        %2722 = vmatpush.bf16.msra.mxu0 0
        %2723 = vmatpush.bf16.msra.mxu0 0
        %2724 = vmatpush.bf16.msra.mxu0 0
        %2725 = vmatpush.bf16.msra.mxu0 0
        %2726 = vmatpush.bf16.msra.mxu0 0
        %2727 = vmatpush.bf16.msra.mxu0 0
        %2728 = vmatpush.bf16.msra.mxu0 0
        %2729 = vmatpush.bf16.msra.mxu0 %v2655
        %2730 = vmatmul.bf16.gmra.mxu0 %v2678
        %v2731 = vpop.f32.mrf.mxu0
        %v2732 = vadd.f32 %v2718, %v2731
        %v2733 = vpop.f32.mrf.mxu0
        %v2734 = vadd.f32 %v2720, %v2733
        %2735 = vdwg.mxu0
        %v2736 = vmax.f32 %v2704, 0.0
        %v2737 = vmax.f32 %v2732, 0.0
        %v2738 = vmax.f32 %v2706, 0.0
        %v2739 = vmax.f32 %v2734, 0.0
        %v2740 = vadd.f32 %v606, %v2736
        %v2741 = vadd.f32 %v607, %v2737
        %v2742 = vadd.f32 %v608, %v2738
        %v2743 = vadd.f32 %v609, %v2739
      $region53: #{dilated_resnet_forward.1} parent=47 // loop_footer
        %s605 = sadd.s32 1, %s601
      $region54: #{dilated_resnet_forward.1} parent=47 // loop_footer_branch
        %600 = sbr.rel target = $region50
      $region55: #{dilated_resnet_forward.1} parent=47 // loop_exit
        _
      %v2744 = vld [vmem:[%s5] sm:$0xf]
      %v2745 = vld [vmem:[%s6] sm:$0xf]
      %2746 = vrot.lane.b32.xlu0 %v606, 1
      %v2747 = vpop.permute.xlu0 %2746
      %2748 = vrot.lane.b32.xlu0 %v608, 1
      %v2749 = vpop.permute.xlu0 %2748
      %2750 = vrot.lane.b32.xlu0 %v607, 1
      %v2751 = vpop.permute.xlu0 %2750
      %2752 = vrot.lane.b32.xlu0 %v609, 1
      %v2753 = vpop.permute.xlu0 %2752
      %v2754 = vsel %vm338, %v2747, %v2751
      %v2755 = vsel %vm338, %v2749, %v2753
      %v2756 = vsel %vm338, %v2751, %v2747
      %v2757 = vsel %vm338, %v2753, %v2749
      %2758 = vrot.lane.b32.xlu0 %v606, 113
      %v2759 = vpop.permute.xlu0 %2758
      %2760 = vrot.lane.b32.xlu0 %v608, 113
      %v2761 = vpop.permute.xlu0 %2760
      %2762 = vrot.lane.b32.xlu0 %v607, 113
      %v2763 = vpop.permute.xlu0 %2762
      %2764 = vrot.lane.b32.xlu0 %v609, 113
      %v2765 = vpop.permute.xlu0 %2764
      %v2766 = vsel %vm350, %v2759, %v2763
      %v2767 = vsel %vm350, %v2761, %v2765
      %v2768 = vsel %vm350, %v2763, %v2759
      %v2769 = vsel %vm350, %v2765, %v2761
      %v2770 = vsel %vm355, %v2756, %v2766
      %v2771 = vsel %vm356, %v2754, %v2768
      %v2772 = vsel %vm355, %v2757, %v2767
      %v2773 = vsel %vm356, %v2755, %v2769
      %2774 = vrot.lane.b32.xlu0 %v606, 127
      %v2775 = vpop.permute.xlu0 %2774
      %2776 = vrot.lane.b32.xlu0 %v608, 127
      %v2777 = vpop.permute.xlu0 %2776
      %2778 = vrot.lane.b32.xlu0 %v607, 127
      %v2779 = vpop.permute.xlu0 %2778
      %2780 = vrot.lane.b32.xlu0 %v609, 127
      %v2781 = vpop.permute.xlu0 %2780
      %v2782 = vsel %vm368, %v2775, %v2779
      %v2783 = vsel %vm368, %v2777, %v2781
      %v2784 = vsel %vm368, %v2779, %v2775
      %v2785 = vsel %vm368, %v2781, %v2777
      %2786 = vrot.lane.b32.xlu0 %v606, 15
      %v2787 = vpop.permute.xlu0 %2786
      %2788 = vrot.lane.b32.xlu0 %v608, 15
      %v2789 = vpop.permute.xlu0 %2788
      %2790 = vrot.lane.b32.xlu0 %v607, 15
      %v2791 = vpop.permute.xlu0 %2790
      %2792 = vrot.lane.b32.xlu0 %v609, 15
      %v2793 = vpop.permute.xlu0 %2792
      %v2794 = vsel %vm380, %v2787, %v2791
      %v2795 = vsel %vm380, %v2789, %v2793
      %v2796 = vsel %vm380, %v2791, %v2787
      %v2797 = vsel %vm380, %v2793, %v2789
      %v2798 = vsel %vm385, %v2782, %v2796
      %v2799 = vsel %vm386, %v2784, %v2794
      %v2800 = vsel %vm385, %v2783, %v2797
      %v2801 = vsel %vm386, %v2785, %v2795
      %2802 = vrot.lane.b32.xlu0 %v2770, 16
      %v2803 = vpop.permute.xlu0 %2802
      %2804 = vrot.lane.b32.xlu0 %v2772, 16
      %v2805 = vpop.permute.xlu0 %2804
      %2806 = vrot.lane.b32.xlu0 %v2771, 16
      %v2807 = vpop.permute.xlu0 %2806
      %2808 = vrot.lane.b32.xlu0 %v2773, 16
      %v2809 = vpop.permute.xlu0 %2808
      %v2810 = vsel %vm393, %v2803, %v2807
      %v2811 = vsel %vm393, %v2805, %v2809
      %v2812 = vsel %vm393, %v2807, %v2803
      %v2813 = vsel %vm393, %v2809, %v2805
      %v2814 = vpack.c.bf16 %v2810, %v2812
      %v2815 = vpack.c.bf16 %v2811, %v2813
      %2816 = vrot.lane.b32.xlu0 %v606, 16
      %v2817 = vpop.permute.xlu0 %2816
      %2818 = vrot.lane.b32.xlu0 %v608, 16
      %v2819 = vpop.permute.xlu0 %2818
      %2820 = vrot.lane.b32.xlu0 %v607, 16
      %v2821 = vpop.permute.xlu0 %2820
      %2822 = vrot.lane.b32.xlu0 %v609, 16
      %v2823 = vpop.permute.xlu0 %2822
      %v2824 = vsel %vm393, %v2817, %v2821
      %v2825 = vsel %vm393, %v2819, %v2823
      %v2826 = vsel %vm393, %v2821, %v2817
      %v2827 = vsel %vm393, %v2823, %v2819
      %v2828 = vpack.c.bf16 %v2824, %v2826
      %v2829 = vpack.c.bf16 %v2825, %v2827
      %2830 = vrot.lane.b32.xlu0 %v2798, 16
      %v2831 = vpop.permute.xlu0 %2830
      %2832 = vrot.lane.b32.xlu0 %v2800, 16
      %v2833 = vpop.permute.xlu0 %2832
      %2834 = vrot.lane.b32.xlu0 %v2799, 16
      %v2835 = vpop.permute.xlu0 %2834
      %2836 = vrot.lane.b32.xlu0 %v2801, 16
      %v2837 = vpop.permute.xlu0 %2836
      %v2838 = vsel %vm393, %v2831, %v2835
      %v2839 = vsel %vm393, %v2833, %v2837
      %v2840 = vsel %vm393, %v2835, %v2831
      %v2841 = vsel %vm393, %v2837, %v2833
      %v2842 = vpack.c.bf16 %v2838, %v2840
      %v2843 = vpack.c.bf16 %v2839, %v2841
      %v2844 = vpack.c.bf16 %v2771, %v2770
      %v2845 = vpack.c.bf16 %v2773, %v2772
      %v2846 = vpack.c.bf16 %v607, %v606
      %v2847 = vpack.c.bf16 %v609, %v608
      %v2848 = vpack.c.bf16 %v2799, %v2798
      %v2849 = vpack.c.bf16 %v2801, %v2800
      %2850 = vrot.lane.b32.xlu0 %v2770, 112
      %v2851 = vpop.permute.xlu0 %2850
      %2852 = vrot.lane.b32.xlu0 %v2772, 112
      %v2853 = vpop.permute.xlu0 %2852
      %2854 = vrot.lane.b32.xlu0 %v2771, 112
      %v2855 = vpop.permute.xlu0 %2854
      %2856 = vrot.lane.b32.xlu0 %v2773, 112
      %v2857 = vpop.permute.xlu0 %2856
      %v2858 = vsel %vm428, %v2851, %v2855
      %v2859 = vsel %vm428, %v2853, %v2857
      %v2860 = vsel %vm428, %v2855, %v2851
      %v2861 = vsel %vm428, %v2857, %v2853
      %v2862 = vpack.c.bf16 %v2860, %v2858
      %v2863 = vpack.c.bf16 %v2861, %v2859
      %2864 = vrot.lane.b32.xlu0 %v606, 112
      %v2865 = vpop.permute.xlu0 %2864
      %2866 = vrot.lane.b32.xlu0 %v608, 112
      %v2867 = vpop.permute.xlu0 %2866
      %2868 = vrot.lane.b32.xlu0 %v607, 112
      %v2869 = vpop.permute.xlu0 %2868
      %2870 = vrot.lane.b32.xlu0 %v609, 112
      %v2871 = vpop.permute.xlu0 %2870
      %v2872 = vsel %vm428, %v2865, %v2869
      %v2873 = vsel %vm428, %v2867, %v2871
      %v2874 = vsel %vm428, %v2869, %v2865
      %v2875 = vsel %vm428, %v2871, %v2867
      %v2876 = vpack.c.bf16 %v2874, %v2872
      %v2877 = vpack.c.bf16 %v2875, %v2873
      %2878 = vrot.lane.b32.xlu0 %v2798, 112
      %v2879 = vpop.permute.xlu0 %2878
      %2880 = vrot.lane.b32.xlu0 %v2800, 112
      %v2881 = vpop.permute.xlu0 %2880
      %2882 = vrot.lane.b32.xlu0 %v2799, 112
      %v2883 = vpop.permute.xlu0 %2882
      %2884 = vrot.lane.b32.xlu0 %v2801, 112
      %v2885 = vpop.permute.xlu0 %2884
      %v2886 = vsel %vm428, %v2879, %v2883
      %v2887 = vsel %vm428, %v2881, %v2885
      %v2888 = vsel %vm428, %v2883, %v2879
      %v2889 = vsel %vm428, %v2885, %v2881
      %v2890 = vpack.c.bf16 %v2888, %v2886
      %v2891 = vpack.c.bf16 %v2889, %v2887
      %v2894 = vunpack.c.l.b16 %v2814
      %v2895 = vunpack.c.h.b16 %v2814
      %v2896 = vunpack.c.l.b16 %v2815
      %v2897 = vunpack.c.h.b16 %v2815
      %v2898 = vpack.c.b16 %v2896, %v2894
      %v2899 = vpack.c.b16 %v2897, %v2895
      %v2904 = vunpack.c.l.b16 %v2828
      %v2905 = vunpack.c.h.b16 %v2828
      %v2906 = vunpack.c.l.b16 %v2829
      %v2907 = vunpack.c.h.b16 %v2829
      %v2908 = vpack.c.b16 %v2906, %v2904
      %v2909 = vpack.c.b16 %v2907, %v2905
      %v2914 = vunpack.c.l.b16 %v2842
      %v2915 = vunpack.c.h.b16 %v2842
      %v2916 = vunpack.c.l.b16 %v2843
      %v2917 = vunpack.c.h.b16 %v2843
      %v2918 = vpack.c.b16 %v2916, %v2914
      %v2919 = vpack.c.b16 %v2917, %v2915
      %v2924 = vunpack.c.l.b16 %v2844
      %v2925 = vunpack.c.h.b16 %v2844
      %v2926 = vunpack.c.l.b16 %v2845
      %v2927 = vunpack.c.h.b16 %v2845
      %v2928 = vpack.c.b16 %v2926, %v2924
      %v2929 = vpack.c.b16 %v2927, %v2925
      %v2934 = vunpack.c.l.b16 %v2846
      %v2935 = vunpack.c.h.b16 %v2846
      %v2936 = vunpack.c.l.b16 %v2847
      %v2937 = vunpack.c.h.b16 %v2847
      %v2938 = vpack.c.b16 %v2936, %v2934
      %v2939 = vpack.c.b16 %v2937, %v2935
      %v2944 = vunpack.c.l.b16 %v2848
      %v2945 = vunpack.c.h.b16 %v2848
      %v2946 = vunpack.c.l.b16 %v2849
      %v2947 = vunpack.c.h.b16 %v2849
      %v2948 = vpack.c.b16 %v2946, %v2944
      %v2949 = vpack.c.b16 %v2947, %v2945
      %v2954 = vunpack.c.l.b16 %v2862
      %v2955 = vunpack.c.h.b16 %v2862
      %v2956 = vunpack.c.l.b16 %v2863
      %v2957 = vunpack.c.h.b16 %v2863
      %v2958 = vpack.c.b16 %v2956, %v2954
      %v2959 = vpack.c.b16 %v2957, %v2955
      %v2964 = vunpack.c.l.b16 %v2876
      %v2965 = vunpack.c.h.b16 %v2876
      %v2966 = vunpack.c.l.b16 %v2877
      %v2967 = vunpack.c.h.b16 %v2877
      %v2968 = vpack.c.b16 %v2966, %v2964
      %v2969 = vpack.c.b16 %v2967, %v2965
      %v2974 = vunpack.c.l.b16 %v2890
      %v2975 = vunpack.c.h.b16 %v2890
      %v2976 = vunpack.c.l.b16 %v2891
      %v2977 = vunpack.c.h.b16 %v2891
      %v2978 = vpack.c.b16 %v2976, %v2974
      %v2979 = vpack.c.b16 %v2977, %v2975
      %2983 = vset.pattern.permute.xlu0 0
      %2984 = vperm.xlu0 %2983, %v2745
      %v2985 = vpop.permute.xlu0 %2984
      %2988 = vst [vmem:[#allocation1] ss:$4 sm:$0xff] %v2744
      %v2989 = vld.sshfl [vmem:[#allocation1] sm:$0xff pattern:$0x73625140]
      %v2990 = vld.sshfl [vmem:[#allocation1 + $0x8] sm:$0xff pattern:$0x73625140]
      %vm2992 = vcmask 130048
      %v2993 = vsel %vm2992, %v2990, 0
      %2995 = vmatpush.bf16.msra.mxu0 %v2968
      %2996 = vmatpush.bf16.msra.mxu0 %v2958
      %2997 = vmatpush.bf16.msra.mxu0 %v2948
      %2998 = vmatpush.bf16.msra.mxu0 %v2938
      %2999 = vmatpush.bf16.msra.mxu0 %v2928
      %3000 = vmatpush.bf16.msra.mxu0 %v2918
      %3001 = vmatpush.bf16.msra.mxu0 %v2908
      %3002 = vmatpush.bf16.msra.mxu0 %v2898
      %3003 = vmatmul.bf16.gmra.mxu0 %v2989
      %v3004 = vpop.f32.mrf.mxu0
      %v3005 = vadd.f32 %v2985, %v3004
      %v3006 = vpop.f32.mrf.mxu0
      %3007 = vdwg.mxu0
      %3008 = vmatpush.bf16.msra.mxu0 0
      %3009 = vmatpush.bf16.msra.mxu0 0
      %3010 = vmatpush.bf16.msra.mxu0 0
      %3011 = vmatpush.bf16.msra.mxu0 0
      %3012 = vmatpush.bf16.msra.mxu0 0
      %3013 = vmatpush.bf16.msra.mxu0 0
      %3014 = vmatpush.bf16.msra.mxu0 0
      %3015 = vmatpush.bf16.msra.mxu0 %v2978
      %3016 = vmatmul.bf16.gmra.mxu0 %v2993
      %v3017 = vpop.f32.mrf.mxu0
      %v3018 = vadd.f32 %v3005, %v3017
      %v3019 = vpop.f32.mrf.mxu0
      %3020 = vdwg.mxu0
      %3021 = vmatpush.bf16.msra.mxu0 %v2969
      %3022 = vmatpush.bf16.msra.mxu0 %v2959
      %3023 = vmatpush.bf16.msra.mxu0 %v2949
      %3024 = vmatpush.bf16.msra.mxu0 %v2939
      %3025 = vmatpush.bf16.msra.mxu0 %v2929
      %3026 = vmatpush.bf16.msra.mxu0 %v2919
      %3027 = vmatpush.bf16.msra.mxu0 %v2909
      %3028 = vmatpush.bf16.msra.mxu0 %v2899
      %3029 = vmatmul.bf16.gmra.mxu0 %v2989
      %v3030 = vpop.f32.mrf.mxu0
      %v3031 = vadd.f32 %v2985, %v3030
      %v3032 = vpop.f32.mrf.mxu0
      %3033 = vdwg.mxu0
      %3034 = vmatpush.bf16.msra.mxu0 0
      %3035 = vmatpush.bf16.msra.mxu0 0
      %3036 = vmatpush.bf16.msra.mxu0 0
      %3037 = vmatpush.bf16.msra.mxu0 0
      %3038 = vmatpush.bf16.msra.mxu0 0
      %3039 = vmatpush.bf16.msra.mxu0 0
      %3040 = vmatpush.bf16.msra.mxu0 0
      %3041 = vmatpush.bf16.msra.mxu0 %v2979
      %3042 = vmatmul.bf16.gmra.mxu0 %v2993
      %v3043 = vpop.f32.mrf.mxu0
      %v3044 = vadd.f32 %v3031, %v3043
      %v3045 = vpop.f32.mrf.mxu0
      %3046 = vdwg.mxu0
      %3047 = vrot.lane.b32.xlu0 %v3018, 127
      %v3048 = vpop.permute.xlu0 %3047
      %3049 = vrot.lane.b32.xlu0 %v3044, 127
      %v3050 = vpop.permute.xlu0 %3049
      %v3051 = vsel %vm368, %v3048, %v3050
      %v3052 = vsel %vm368, %v3050, %v3048
      %3053 = vrot.lane.b32.xlu0 %v3018, 15
      %v3054 = vpop.permute.xlu0 %3053
      %3055 = vrot.lane.b32.xlu0 %v3044, 15
      %v3056 = vpop.permute.xlu0 %3055
      %v3057 = vsel %vm380, %v3054, %v3056
      %v3058 = vsel %vm380, %v3056, %v3054
      %v3059 = vsel %vm385, %v3051, %v3058
      %v3060 = vsel %vm386, %v3052, %v3057
      %v3061 = vsub.f32 %v3018, %v3059
      %v3062 = vsub.f32 %v3044, %v3060
      %3063 = vrot.lane.b32.xlu0 %v3018, 112
      %v3064 = vpop.permute.xlu0 %3063
      %3065 = vrot.lane.b32.xlu0 %v3044, 112
      %v3066 = vpop.permute.xlu0 %3065
      %v3067 = vsel %vm428, %v3064, %v3066
      %v3068 = vsel %vm428, %v3066, %v3064
      %v3069 = vsub.f32 %v3018, %v3067
      %v3070 = vsub.f32 %v3044, %v3068
      %v3073 = vrot.slane %v3062, 6
      %v3074 = vsel %vm515, %v3061, %v3073
      %v3076 = vadd.f32 %v280, %v3074
      %v3079 = vrot.slane %v3070, 6
      %v3080 = vsel %vm515, %v3069, %v3079
      %v3081 = vrot.slane %v3080, 7
      %v3082 = vrot.slane %v3081, 2
      %v3084 = vadd.f32 %v3076, %v3082
      %3085 = vst.sshfl [vmem:[#allocation1] sm:$0xff pattern:$0x73625140] %v3061
      %3086 = vst.sshfl [vmem:[#allocation1 + $0x8] sm:$0xff pattern:$0x73625140] %v3062
      %s3087 = scalar_lea.vmem [#allocation1], 1
      %v3088 = vld [vmem:[%s3087] ss:$4 sm:$0xff]
      %v3089 = vrot.slane %v3088, 7
      %v3091 = vadd.f32 %v280, %v3089
      %3092 = vst.sshfl [vmem:[#allocation1] sm:$0xff pattern:$0x73625140] %v3069
      %3093 = vst.sshfl [vmem:[#allocation1 + $0x8] sm:$0xff pattern:$0x73625140] %v3070
      %s3094 = scalar_lea.vmem [#allocation1], 1
      %v3095 = vld [vmem:[%s3094] ss:$4 sm:$0xff]
      %v3097 = vadd.f32 %v3091, %v3095
      %v3099 = vperm.slane %v3084, 0
      %v3100 = vperm.slane %v3084, 2
      %v3104 = vperm.slane %v3097, 1
      %v3105 = vperm.slane %v3097, 3
      %v3108 = vsel %vm508, %v3099, %v3104
      %v3109 = vsel %vm508, %v3100, %v3105
      %v3112 = vrot.slane %v3109, 6
      %v3113 = vsel %vm515, %v3108, %v3112
      %3115 = vst [vmem:[%s278] sm:$0xf] %v3113
      %p3116 = scmp.lt.s32.totalorder %s18, 1
      %s3117 = scalar_select %p3116, %s18, 1
      %s3118 = smul.addr %s3117, 2
      %s3119 = smul.addr %s3118, 2
      %s3120 = scalar_lea.vmem %s7, %s3119
      // Predicated region
      $region56: #{dilated_resnet_forward.1} parent=47 // pred_check
        %p3121 = pneg %p188
      $region57: #{dilated_resnet_forward.1} parent=47 // pred_check_branch
        %3123 = sbr.rel (%p3121) target = $region59
      $region58: #{dilated_resnet_forward.1} parent=47 // pred_region
        _
      $region59: #{dilated_resnet_forward.1} parent=47 // pred_fallthru
        _
    $region48: #{dilated_resnet_forward.1} parent=5 // pred_fallthru
      _
    %p3124 = scmp.le.s32.totalorder 2, %s13
    // Predicated region
    $region60: #{dilated_resnet_forward.1} parent=5 // pred_check
      %p3125 = pneg %p3124
    $region61: #{dilated_resnet_forward.1} parent=5 // pred_check_branch
      %3127 = sbr.rel (%p3125) target = $region63
    $region62: #{dilated_resnet_forward.1} parent=5 // pred_region
      %s3128 = ssub.s32 %s13, 2
      // Predicated region
      $region64: #{dilated_resnet_forward.1} parent=62 // pred_check
        %p3129 = pneg %p194
      $region65: #{dilated_resnet_forward.1} parent=62 // pred_check_branch
        %3131 = sbr.rel (%p3129) target = $region67
      $region66: #{dilated_resnet_forward.1} parent=62 // pred_region
        %p3132 = scmp.lt.s32.totalorder %s19, 1
        %s3133 = scalar_select %p3132, %s19, 1
        %s3134 = smul.addr %s3133, 2
        %s3135 = smul.addr %s3134, 2
        %s3136 = scalar_lea.vmem %s7, %s3135
      $region67: #{dilated_resnet_forward.1} parent=62 // pred_fallthru
        _
    $region63: #{dilated_resnet_forward.1} parent=5 // pred_fallthru
      _
  $region6: #{dilated_resnet_forward.1} parent=0 // loop_footer
    %s17 = sadd.s32 1, %s13
  $region7: #{dilated_resnet_forward.1} parent=0 // loop_footer_branch
    %12 = sbr.rel target = $region3
  $region8: #{dilated_resnet_forward.1} parent=0 // loop_exit
    _

</llo_original>
